<compile_context>
chip_gen: v5e
topology: v5e:2x2
jax: 0.10.0
libtpu: 0.0.40
codegen_flags: <defaults>
</compile_context>

<pallas_src>
import jax
import jax.numpy as jnp
from jax import lax
from jax.experimental import pallas as pl
from jax.experimental.pallas import tpu as pltpu


_LANE = 128


def _round_up(x, m):
    return (x + m - 1) // m * m


def _pick_chunk(oh, ow, target_rows=512):
    """Largest divisor of oh whose chunk (d*ow matmul rows) stays near target."""
    best = 1
    for d in range(1, oh + 1):
        if oh % d == 0 and d * ow <= max(ow, target_rows):
            best = d
    return best


def _vmem_limit_bytes():
    try:
        cap = int(pltpu.get_tpu_info().vmem_capacity_bytes)
    except Exception:
        cap = 64 * 1024 * 1024            # conservative fallback (v7x physical VMEM)
    return min(int(cap * 0.85), 112 * 1024 * 1024)


def _conv1_weight(w1_oihw, cin_p, cout, cmid):
    """(Cout,Cin,3,3) -> (9*cin_p, cmid) bf16, rows in (ki,kj,ci) order.
    conv1 output channels land in lanes [cout:2*cout) of the fused feature map
    (lanes [0:cout) are reserved for `rem`)."""
    _, cin, kh, kw = w1_oihw.shape
    w = jnp.transpose(w1_oihw, (2, 3, 1, 0))                       # (3,3,cin,cout)
    w = jnp.pad(w, ((0, 0), (0, 0), (0, cin_p - cin), (cout, cmid - 2 * cout)))
    return w.reshape(kh * kw * cin_p, cmid).astype(jnp.bfloat16)


def _conv2_weight(w2_oihw, cout, cmid):
    """(Cout,2*Cout,3,3) -> (9*cmid, cout) bf16 with the channel concat folded:
    input lanes [0:cout) multiply the `rem` half of w2, lanes [cout:2*cout) the
    conv1 half; remaining lanes are zero."""
    w = jnp.transpose(w2_oihw, (2, 3, 1, 0))                       # (3,3,2cout,cout)
    w = jnp.concatenate([w[:, :, cout:, :], w[:, :, :cout, :]], axis=2)
    w = jnp.pad(w, ((0, 0), (0, 0), (0, cmid - 2 * cout), (0, 0)))
    return w.reshape(9 * cmid, cout).astype(jnp.bfloat16)


def _make_fused_kernel(oh, ow, cin_p, cout, cmid, wp2, ch):
    n_chunks = oh // ch

    def kernel(x_ref, rem_ref, w1_ref, w2_ref, o_ref, feat_ref, acc1_ref, acc2_ref):
        # x_ref   : (hp2, 2*wp2, 2*cin_p)   parity-packed padded input (bf16)
        # rem_ref : (oh, ow, cout)          skip connection (bf16)
        # w1_ref  : (9*cin_p, cmid)         conv1 weight (bf16)
        # w2_ref  : (9*cmid, cout)          folded conv2 weight (bf16)
        # o_ref   : (oh, ow, cout)          output (f32)
        # feat_ref: (oh+2, ow+2, cmid)      resident padded feature map (bf16)

        # ---- zero the 1-pixel padding ring of the resident feature map -------
        feat_ref[0:1, :, :] = jnp.zeros((1, ow + 2, cmid), jnp.bfloat16)
        feat_ref[oh + 1:oh + 2, :, :] = jnp.zeros((1, ow + 2, cmid), jnp.bfloat16)
        feat_ref[:, 0:1, :] = jnp.zeros((oh + 2, 1, cmid), jnp.bfloat16)
        feat_ref[:, ow + 1:ow + 2, :] = jnp.zeros((oh + 2, 1, cmid), jnp.bfloat16)

        # ---- phase A: conv1 (3x3, stride 2) + ReLU into lanes [cout:2cout),
        #      `rem` copied into lanes [0:cout) of the padded VMEM feature map.
        def conv1_chunk(r, carry):
            i0 = pl.multiple_of(r * ch, ch)
            acc1_ref[...] = jnp.zeros_like(acc1_ref)
            for ki in range(3):
                rows = pl.ds(i0 + (1 if ki == 2 else 0), ch)   # row-pair index per tap row
                cbase = wp2 if ki == 1 else 0                  # row-parity select
                # taps (ki,0) and (ki,1): both column parities = all 2*cin_p lanes
                a01 = x_ref[rows, pl.ds(cbase, ow), :].reshape(ch * ow, 2 * cin_p)
                acc1_ref[...] += jnp.dot(
                    a01, w1_ref[pl.ds(ki * 3 * cin_p, 2 * cin_p), :],
                    preferred_element_type=jnp.float32)
                # tap (ki,2): next column pair, even column parity
                a2 = x_ref[rows, pl.ds(cbase + 1, ow), 0:cin_p].reshape(ch * ow, cin_p)
                acc1_ref[...] += jnp.dot(
                    a2, w1_ref[pl.ds(ki * 3 * cin_p + 2 * cin_p, cin_p), :],
                    preferred_element_type=jnp.float32)
            y = jnp.maximum(acc1_ref[...], 0.0).astype(jnp.bfloat16).reshape(ch, ow, cmid)
            feat_ref[pl.ds(i0 + 1, ch), 1:ow + 1, :] = y
            feat_ref[pl.ds(i0 + 1, ch), 1:ow + 1, 0:cout] = rem_ref[pl.ds(i0, ch), :, :]
            return carry

        lax.fori_loop(0, n_chunks, conv1_chunk, 0)

        # ---- phase B: conv2 (3x3, stride 1) + ReLU straight from VMEM --------
        def conv2_chunk(r, carry):
            o0 = pl.multiple_of(r * ch, ch)
            acc2_ref[...] = jnp.zeros_like(acc2_ref)
            for ki in range(3):
                for kj in range(3):
                    t = ki * 3 + kj
                    slab = feat_ref[pl.ds(o0 + ki, ch), pl.ds(kj, ow), :]
                    acc2_ref[...] += jnp.dot(
                        slab.reshape(ch * ow, cmid),
                        w2_ref[pl.ds(t * cmid, cmid), :],
                        preferred_element_type=jnp.float32)
            out = jnp.maximum(acc2_ref[...], 0.0).reshape(ch, ow, cout)
            o_ref[pl.ds(o0, ch), :, :] = out.astype(o_ref.dtype)
            return carry

        lax.fori_loop(0, n_chunks, conv2_chunk, 0)

    return kernel


# ---------------------------------------------------------------------------
# Forward pass (NCHW in / NCHW out, matching the PyTorch module contract)
# ---------------------------------------------------------------------------
@jax.jit
def conv2x_forward(x_nchw, rem_nchw, w1_oihw, w2_oihw):
    n, cin, h, w = x_nchw.shape
    cout = w1_oihw.shape[0]
    assert h % 2 == 0 and w % 2 == 0, "stride-2 parity packing expects even H, W"
    oh, ow = h // 2, w // 2
    assert rem_nchw.shape == (n, cout, oh, ow)

    cin_p = _round_up(cin, 8)                # sublane-aligned per-tap weight slices
    cmid = _round_up(2 * cout, _LANE)        # lanes of the fused (rem | y) feature map

    # conv1 input: NHWC, channel pad, 1-px halo pad, row/col parity packing.
    # (This single small pad of the raw input is the only wrapper-side copy left.)
    x = jnp.transpose(x_nchw, (0, 2, 3, 1)).astype(jnp.bfloat16)
    x = jnp.pad(x, ((0, 0), (1, 1), (1, 1), (0, cin_p - cin)))
    hp2, wp2 = (h + 2) // 2, (w + 2) // 2
    xr = x.reshape(n, hp2, 2 * wp2, 2 * cin_p)      # free reshape: parity phase packing

    rem = jnp.transpose(rem_nchw, (0, 2, 3, 1)).astype(jnp.bfloat16)   # no pad needed

    w1m = _conv1_weight(w1_oihw, cin_p, cout, cmid)
    w2m = _conv2_weight(w2_oihw, cout, cmid)

    ch = _pick_chunk(oh, ow)

    out_nhwc = pl.pallas_call(
        _make_fused_kernel(oh, ow, cin_p, cout, cmid, wp2, ch),
        out_shape=jax.ShapeDtypeStruct((n, oh, ow, cout), jnp.float32),
        grid_spec=pltpu.PrefetchScalarGridSpec(
            num_scalar_prefetch=0,
            grid=(n,),
            in_specs=[
                pl.BlockSpec((None, hp2, 2 * wp2, 2 * cin_p), lambda b: (b, 0, 0, 0)),
                pl.BlockSpec((None, oh, ow, cout), lambda b: (b, 0, 0, 0)),
                pl.BlockSpec((9 * cin_p, cmid), lambda b: (0, 0)),
                pl.BlockSpec((9 * cmid, cout), lambda b: (0, 0)),
            ],
            out_specs=pl.BlockSpec((None, oh, ow, cout), lambda b: (b, 0, 0, 0)),
            scratch_shapes=[
                pltpu.VMEM((oh + 2, ow + 2, cmid), jnp.bfloat16),   # resident feature map
                pltpu.VMEM((ch * ow, cmid), jnp.float32),           # conv1 accumulator
                pltpu.VMEM((ch * ow, cout), jnp.float32),           # conv2 accumulator
            ]),
        compiler_params=pltpu.CompilerParams(
            dimension_semantics=("parallel",),
            vmem_limit_bytes=_vmem_limit_bytes()),
    )(xr, rem, w1m, w2m)

    return jnp.transpose(out_nhwc, (0, 3, 1, 2))    # NHWC -> NCHW module contract


class Conv2xPallas:
    """Conv2x(deconv=False, is_3d=False, concat=True).  BatchNorm is created in
    BasicConv.__init__ but never applied in its forward(), so it is omitted."""

    def __init__(self, in_channels, out_channels, key):
        k1, k2 = jax.random.split(key)
        self.w1 = jax.random.normal(
            k1, (out_channels, in_channels, 3, 3), jnp.float32) / jnp.sqrt(in_channels * 9.0)
        self.w2 = jax.random.normal(
            k2, (out_channels, 2 * out_channels, 3, 3), jnp.float32) / jnp.sqrt(2 * out_channels * 9.0)

    def __call__(self, x_nchw, rem_nchw):
        return conv2x_forward(x_nchw, rem_nchw, self.w1, self.w2)


# ---------------------------------------------------------------------------
# Pure-JAX reference (f32, highest precision) for the correctness check
# ---------------------------------------------------------------------------
def _ref_conv2x(x, rem, w1, w2):
    hp = lax.Precision.HIGHEST
    dn1 = lax.conv_dimension_numbers(x.shape, w1.shape, ("NCHW", "OIHW", "NCHW"))
    y = lax.conv_general_dilated(x, w1, (2, 2), ((1, 1), (1, 1)),
                                 dimension_numbers=dn1, precision=hp)
    y = jnp.maximum(y, 0.0)
    y = jnp.concatenate([y, rem], axis=1)
    dn2 = lax.conv_dimension_numbers(y.shape, w2.shape, ("NCHW", "OIHW", "NCHW"))
    y = lax.conv_general_dilated(y, w2, (1, 1), ((1, 1), (1, 1)),
                                 dimension_numbers=dn2, precision=hp)
    return jnp.maximum(y, 0.0)


if __name__ == "__main__":
    key = jax.random.PRNGKey(0)
    kx, kr, kw = jax.random.split(key, 3)

    batch, in_c, out_c, H, W = 2, 8, 8, 16, 16
    x = jax.random.normal(kx, (batch, in_c, H, W), jnp.float32)             # NCHW
    rem = jax.random.normal(kr, (batch, out_c, H // 2, W // 2), jnp.float32)

    model = Conv2xPallas(in_c, out_c, kw)
    out = jax.block_until_ready(model(x, rem))
    assert out.shape == (batch, out_c, H // 2, W // 2), out.shape

    ref = jax.block_until_ready(_ref_conv2x(x, rem, model.w1, model.w2))
    err = float(jnp.max(jnp.abs(out.astype(jnp.float32) - ref)))
    assert err < 1e-1, err   # bf16 operand / intermediate rounding budget (f32 MXU accum)

    print("KERNEL_OK")
</pallas_src>

<mosaic_0001>
module attributes {stable_mosaic.version = 11 : i64} {
  func.func @kernel(%arg0: i32, %arg1: memref<1x9x18x16xbf16, #tpu.memory_space<vmem>>, %arg2: memref<1x8x8x8xbf16, #tpu.memory_space<vmem>>, %arg3: memref<72x128xbf16, #tpu.memory_space<vmem>>, %arg4: memref<1152x8xbf16, #tpu.memory_space<vmem>>, %arg5: memref<1x8x8x8xf32, #tpu.memory_space<vmem>>, %arg6: memref<10x10x128xbf16, #tpu.memory_space<vmem>>, %arg7: memref<64x128xf32, #tpu.memory_space<vmem>>, %arg8: memref<64x8xf32, #tpu.memory_space<vmem>>) attributes {dimension_semantics = [#tpu.dimension_semantics<parallel>], iteration_bounds = array<i64: 2>, scalar_prefetch = 0 : i64, scratch_operands = 3 : i64, tpu.core_type = #tpu.core_type<tc>, window_params = [{transform_indices = @transform_0, window_bounds = array<i64: 1, 9, 18, 16>}, {transform_indices = @transform_1, window_bounds = array<i64: 1, 8, 8, 8>}, {pipeline_mode = #tpu.pipeline_mode<synchronous>, transform_indices = @transform_2, window_bounds = array<i64: 72, 128>}, {pipeline_mode = #tpu.pipeline_mode<synchronous>, transform_indices = @transform_3, window_bounds = array<i64: 1152, 8>}, {transform_indices = @transform_4, window_bounds = array<i64: 1, 8, 8, 8>}]} {
    %cst = arith.constant 0.000000e+00 : bf16
    %0 = vector.broadcast %cst : bf16 to vector<1x10x128xbf16>
    %c0 = arith.constant 0 : index
    %c0_0 = arith.constant 0 : index
    %c0_1 = arith.constant 0 : index
    %1 = vector.load %arg6[%c0, %c0_0, %c0_1] : memref<10x10x128xbf16, #tpu.memory_space<vmem>>, vector<1x10x128xbf16>
    tpu.vector_store %arg6[%c0, %c0_0, %c0_1], %0 {strides = array<i32>} : memref<10x10x128xbf16, #tpu.memory_space<vmem>>, vector<1x10x128xbf16>,
    %cst_2 = arith.constant 0.000000e+00 : bf16
    %2 = vector.broadcast %cst_2 : bf16 to vector<1x10x128xbf16>
    %c9 = arith.constant 9 : index
    %c0_3 = arith.constant 0 : index
    %c0_4 = arith.constant 0 : index
    %3 = vector.load %arg6[%c9, %c0_3, %c0_4] : memref<10x10x128xbf16, #tpu.memory_space<vmem>>, vector<1x10x128xbf16>
    tpu.vector_store %arg6[%c9, %c0_3, %c0_4], %2 {strides = array<i32>} : memref<10x10x128xbf16, #tpu.memory_space<vmem>>, vector<1x10x128xbf16>,
    %cst_5 = arith.constant 0.000000e+00 : bf16
    %4 = vector.broadcast %cst_5 : bf16 to vector<10x1x128xbf16>
    %c0_6 = arith.constant 0 : index
    %c0_7 = arith.constant 0 : index
    %c0_8 = arith.constant 0 : index
    %5 = vector.load %arg6[%c0_6, %c0_7, %c0_8] : memref<10x10x128xbf16, #tpu.memory_space<vmem>>, vector<10x1x128xbf16>
    tpu.vector_store %arg6[%c0_6, %c0_7, %c0_8], %4 {strides = array<i32>} : memref<10x10x128xbf16, #tpu.memory_space<vmem>>, vector<10x1x128xbf16>,
    %cst_9 = arith.constant 0.000000e+00 : bf16
    %6 = vector.broadcast %cst_9 : bf16 to vector<10x1x128xbf16>
    %c0_10 = arith.constant 0 : index
    %c9_11 = arith.constant 9 : index
    %c0_12 = arith.constant 0 : index
    %7 = vector.load %arg6[%c0_10, %c9_11, %c0_12] : memref<10x10x128xbf16, #tpu.memory_space<vmem>>, vector<10x1x128xbf16>
    tpu.vector_store %arg6[%c0_10, %c9_11, %c0_12], %6 {strides = array<i32>} : memref<10x10x128xbf16, #tpu.memory_space<vmem>>, vector<10x1x128xbf16>,
    %c0_i32 = arith.constant 0 : i32
    %c8_i32 = arith.constant 8 : i32
    %8 = arith.muli %c0_i32, %c8_i32 : i32
    %9 = tpu.assume_multiple %8, 8 : i32
    %cst_13 = arith.constant 0.000000e+00 : f32
    %10 = vector.broadcast %cst_13 : f32 to vector<64x128xf32>
    %c0_14 = arith.constant 0 : index
    %c0_15 = arith.constant 0 : index
    %11 = vector.load %arg7[%c0_14, %c0_15] : memref<64x128xf32, #tpu.memory_space<vmem>>, vector<64x128xf32>
    tpu.vector_store %arg7[%c0_14, %c0_15], %10 {strides = array<i32>} : memref<64x128xf32, #tpu.memory_space<vmem>>, vector<64x128xf32>,
    %c0_i32_16 = arith.constant 0 : i32
    %12 = arith.addi %9, %c0_i32_16 : i32
    %c0_17 = arith.constant 0 : index
    %13 = arith.index_cast %12 : i32 to index
    %c0_18 = arith.constant 0 : index
    %c0_19 = arith.constant 0 : index
    %14 = vector.load %arg1[%c0_17, %13, %c0_18, %c0_19] : memref<1x9x18x16xbf16, #tpu.memory_space<vmem>>, vector<1x8x8x16xbf16>
    %15 = vector.shape_cast %14 : vector<1x8x8x16xbf16> to vector<8x8x16xbf16>
    %16 = vector.shape_cast %15 : vector<8x8x16xbf16> to vector<64x16xbf16>
    %c0_20 = arith.constant 0 : index
    %c0_21 = arith.constant 0 : index
    %17 = vector.load %arg7[%c0_20, %c0_21] : memref<64x128xf32, #tpu.memory_space<vmem>>, vector<64x128xf32>
    %c0_22 = arith.constant 0 : index
    %c0_23 = arith.constant 0 : index
    %18 = vector.load %arg3[%c0_22, %c0_23] : memref<72x128xbf16, #tpu.memory_space<vmem>>, vector<16x128xbf16>
    %cst_24 = arith.constant dense<0.000000e+00> : vector<64x128xf32>
    %19 = tpu.matmul %16, %18, %cst_24 {dimension_numbers = #tpu.dot_dimension_numbers<[1], [0], [0], [1], [0, 0, 1, 1], [], []>} : vector<64x16xbf16>, vector<16x128xbf16>, vector<64x128xf32> -> vector<64x128xf32>
    %20 = arith.addf %17, %19 : vector<64x128xf32>
    %c0_25 = arith.constant 0 : index
    %c0_26 = arith.constant 0 : index
    %21 = vector.load %arg7[%c0_25, %c0_26] : memref<64x128xf32, #tpu.memory_space<vmem>>, vector<64x128xf32>
    tpu.vector_store %arg7[%c0_25, %c0_26], %20 {strides = array<i32>} : memref<64x128xf32, #tpu.memory_space<vmem>>, vector<64x128xf32>,
    %c0_27 = arith.constant 0 : index
    %22 = arith.index_cast %12 : i32 to index
    %c1 = arith.constant 1 : index
    %c0_28 = arith.constant 0 : index
    %23 = vector.load %arg1[%c0_27, %22, %c1, %c0_28] : memref<1x9x18x16xbf16, #tpu.memory_space<vmem>>, vector<1x8x8x8xbf16>
    %24 = vector.shape_cast %23 : vector<1x8x8x8xbf16> to vector<8x8x8xbf16>
    %25 = vector.shape_cast %24 : vector<8x8x8xbf16> to vector<64x8xbf16>
    %c0_29 = arith.constant 0 : index
    %c0_30 = arith.constant 0 : index
    %26 = vector.load %arg7[%c0_29, %c0_30] : memref<64x128xf32, #tpu.memory_space<vmem>>, vector<64x128xf32>
    %c16 = arith.constant 16 : index
    %c0_31 = arith.constant 0 : index
    %27 = vector.load %arg3[%c16, %c0_31] : memref<72x128xbf16, #tpu.memory_space<vmem>>, vector<8x128xbf16>
    %cst_32 = arith.constant dense<0.000000e+00> : vector<64x128xf32>
    %28 = tpu.matmul %25, %27, %cst_32 {dimension_numbers = #tpu.dot_dimension_numbers<[1], [0], [0], [1], [0, 0, 1, 1], [], []>} : vector<64x8xbf16>, vector<8x128xbf16>, vector<64x128xf32> -> vector<64x128xf32>
    %29 = arith.addf %26, %28 : vector<64x128xf32>
    %c0_33 = arith.constant 0 : index
    %c0_34 = arith.constant 0 : index
    %30 = vector.load %arg7[%c0_33, %c0_34] : memref<64x128xf32, #tpu.memory_space<vmem>>, vector<64x128xf32>
    tpu.vector_store %arg7[%c0_33, %c0_34], %29 {strides = array<i32>} : memref<64x128xf32, #tpu.memory_space<vmem>>, vector<64x128xf32>,
    %c0_i32_35 = arith.constant 0 : i32
    %31 = arith.addi %9, %c0_i32_35 : i32
    %c0_36 = arith.constant 0 : index
    %32 = arith.index_cast %31 : i32 to index
    %c9_37 = arith.constant 9 : index
    %c0_38 = arith.constant 0 : index
    %33 = vector.load %arg1[%c0_36, %32, %c9_37, %c0_38] : memref<1x9x18x16xbf16, #tpu.memory_space<vmem>>, vector<1x8x8x16xbf16>
    %34 = vector.shape_cast %33 : vector<1x8x8x16xbf16> to vector<8x8x16xbf16>
    %35 = vector.shape_cast %34 : vector<8x8x16xbf16> to vector<64x16xbf16>
    %c0_39 = arith.constant 0 : index
    %c0_40 = arith.constant 0 : index
    %36 = vector.load %arg7[%c0_39, %c0_40] : memref<64x128xf32, #tpu.memory_space<vmem>>, vector<64x128xf32>
    %c24 = arith.constant 24 : index
    %c0_41 = arith.constant 0 : index
    %37 = vector.load %arg3[%c24, %c0_41] : memref<72x128xbf16, #tpu.memory_space<vmem>>, vector<16x128xbf16>
    %cst_42 = arith.constant dense<0.000000e+00> : vector<64x128xf32>
    %38 = tpu.matmul %35, %37, %cst_42 {dimension_numbers = #tpu.dot_dimension_numbers<[1], [0], [0], [1], [0, 0, 1, 1], [], []>} : vector<64x16xbf16>, vector<16x128xbf16>, vector<64x128xf32> -> vector<64x128xf32>
    %39 = arith.addf %36, %38 : vector<64x128xf32>
    %c0_43 = arith.constant 0 : index
    %c0_44 = arith.constant 0 : index
    %40 = vector.load %arg7[%c0_43, %c0_44] : memref<64x128xf32, #tpu.memory_space<vmem>>, vector<64x128xf32>
    tpu.vector_store %arg7[%c0_43, %c0_44], %39 {strides = array<i32>} : memref<64x128xf32, #tpu.memory_space<vmem>>, vector<64x128xf32>,
    %c0_45 = arith.constant 0 : index
    %41 = arith.index_cast %31 : i32 to index
    %c10 = arith.constant 10 : index
    %c0_46 = arith.constant 0 : index
    %42 = vector.load %arg1[%c0_45, %41, %c10, %c0_46] : memref<1x9x18x16xbf16, #tpu.memory_space<vmem>>, vector<1x8x8x8xbf16>
    %43 = vector.shape_cast %42 : vector<1x8x8x8xbf16> to vector<8x8x8xbf16>
    %44 = vector.shape_cast %43 : vector<8x8x8xbf16> to vector<64x8xbf16>
    %c0_47 = arith.constant 0 : index
    %c0_48 = arith.constant 0 : index
    %45 = vector.load %arg7[%c0_47, %c0_48] : memref<64x128xf32, #tpu.memory_space<vmem>>, vector<64x128xf32>
    %c40 = arith.constant 40 : index
    %c0_49 = arith.constant 0 : index
    %46 = vector.load %arg3[%c40, %c0_49] : memref<72x128xbf16, #tpu.memory_space<vmem>>, vector<8x128xbf16>
    %cst_50 = arith.constant dense<0.000000e+00> : vector<64x128xf32>
    %47 = tpu.matmul %44, %46, %cst_50 {dimension_numbers = #tpu.dot_dimension_numbers<[1], [0], [0], [1], [0, 0, 1, 1], [], []>} : vector<64x8xbf16>, vector<8x128xbf16>, vector<64x128xf32> -> vector<64x128xf32>
    %48 = arith.addf %45, %47 : vector<64x128xf32>
    %c0_51 = arith.constant 0 : index
    %c0_52 = arith.constant 0 : index
    %49 = vector.load %arg7[%c0_51, %c0_52] : memref<64x128xf32, #tpu.memory_space<vmem>>, vector<64x128xf32>
    tpu.vector_store %arg7[%c0_51, %c0_52], %48 {strides = array<i32>} : memref<64x128xf32, #tpu.memory_space<vmem>>, vector<64x128xf32>,
    %c1_i32 = arith.constant 1 : i32
    %50 = arith.addi %9, %c1_i32 : i32
    %c0_53 = arith.constant 0 : index
    %51 = arith.index_cast %50 : i32 to index
    %c0_54 = arith.constant 0 : index
    %c0_55 = arith.constant 0 : index
    %52 = vector.load %arg1[%c0_53, %51, %c0_54, %c0_55] : memref<1x9x18x16xbf16, #tpu.memory_space<vmem>>, vector<1x8x8x16xbf16>
    %53 = vector.shape_cast %52 : vector<1x8x8x16xbf16> to vector<8x8x16xbf16>
    %54 = vector.shape_cast %53 : vector<8x8x16xbf16> to vector<64x16xbf16>
    %c0_56 = arith.constant 0 : index
    %c0_57 = arith.constant 0 : index
    %55 = vector.load %arg7[%c0_56, %c0_57] : memref<64x128xf32, #tpu.memory_space<vmem>>, vector<64x128xf32>
    %c48 = arith.constant 48 : index
    %c0_58 = arith.constant 0 : index
    %56 = vector.load %arg3[%c48, %c0_58] : memref<72x128xbf16, #tpu.memory_space<vmem>>, vector<16x128xbf16>
    %cst_59 = arith.constant dense<0.000000e+00> : vector<64x128xf32>
    %57 = tpu.matmul %54, %56, %cst_59 {dimension_numbers = #tpu.dot_dimension_numbers<[1], [0], [0], [1], [0, 0, 1, 1], [], []>} : vector<64x16xbf16>, vector<16x128xbf16>, vector<64x128xf32> -> vector<64x128xf32>
    %58 = arith.addf %55, %57 : vector<64x128xf32>
    %c0_60 = arith.constant 0 : index
    %c0_61 = arith.constant 0 : index
    %59 = vector.load %arg7[%c0_60, %c0_61] : memref<64x128xf32, #tpu.memory_space<vmem>>, vector<64x128xf32>
    tpu.vector_store %arg7[%c0_60, %c0_61], %58 {strides = array<i32>} : memref<64x128xf32, #tpu.memory_space<vmem>>, vector<64x128xf32>,
    %c0_62 = arith.constant 0 : index
    %60 = arith.index_cast %50 : i32 to index
    %c1_63 = arith.constant 1 : index
    %c0_64 = arith.constant 0 : index
    %61 = vector.load %arg1[%c0_62, %60, %c1_63, %c0_64] : memref<1x9x18x16xbf16, #tpu.memory_space<vmem>>, vector<1x8x8x8xbf16>
    %62 = vector.shape_cast %61 : vector<1x8x8x8xbf16> to vector<8x8x8xbf16>
    %63 = vector.shape_cast %62 : vector<8x8x8xbf16> to vector<64x8xbf16>
    %c0_65 = arith.constant 0 : index
    %c0_66 = arith.constant 0 : index
    %64 = vector.load %arg7[%c0_65, %c0_66] : memref<64x128xf32, #tpu.memory_space<vmem>>, vector<64x128xf32>
    %c64 = arith.constant 64 : index
    %c0_67 = arith.constant 0 : index
    %65 = vector.load %arg3[%c64, %c0_67] : memref<72x128xbf16, #tpu.memory_space<vmem>>, vector<8x128xbf16>
    %cst_68 = arith.constant dense<0.000000e+00> : vector<64x128xf32>
    %66 = tpu.matmul %63, %65, %cst_68 {dimension_numbers = #tpu.dot_dimension_numbers<[1], [0], [0], [1], [0, 0, 1, 1], [], []>} : vector<64x8xbf16>, vector<8x128xbf16>, vector<64x128xf32> -> vector<64x128xf32>
    %67 = arith.addf %64, %66 : vector<64x128xf32>
    %c0_69 = arith.constant 0 : index
    %c0_70 = arith.constant 0 : index
    %68 = vector.load %arg7[%c0_69, %c0_70] : memref<64x128xf32, #tpu.memory_space<vmem>>, vector<64x128xf32>
    tpu.vector_store %arg7[%c0_69, %c0_70], %67 {strides = array<i32>} : memref<64x128xf32, #tpu.memory_space<vmem>>, vector<64x128xf32>,
    %c0_71 = arith.constant 0 : index
    %c0_72 = arith.constant 0 : index
    %69 = vector.load %arg7[%c0_71, %c0_72] : memref<64x128xf32, #tpu.memory_space<vmem>>, vector<64x128xf32>
    %cst_73 = arith.constant 0.000000e+00 : f32
    %70 = vector.broadcast %cst_73 : f32 to vector<64x128xf32>
    %71 = arith.maximumf %69, %70 : vector<64x128xf32>
    %72 = arith.truncf %71 : vector<64x128xf32> to vector<64x128xbf16>
    %73 = vector.shape_cast %72 : vector<64x128xbf16> to vector<8x8x128xbf16>
    %c1_i32_74 = arith.constant 1 : i32
    %74 = arith.addi %9, %c1_i32_74 : i32
    %75 = arith.index_cast %74 : i32 to index
    %c1_75 = arith.constant 1 : index
    %c0_76 = arith.constant 0 : index
    %76 = vector.load %arg6[%75, %c1_75, %c0_76] : memref<10x10x128xbf16, #tpu.memory_space<vmem>>, vector<8x8x128xbf16>
    tpu.vector_store %arg6[%75, %c1_75, %c0_76], %73 {strides = array<i32>} : memref<10x10x128xbf16, #tpu.memory_space<vmem>>, vector<8x8x128xbf16>,
    %c0_77 = arith.constant 0 : index
    %77 = arith.index_cast %9 : i32 to index
    %c0_78 = arith.constant 0 : index
    %c0_79 = arith.constant 0 : index
    %78 = vector.load %arg2[%c0_77, %77, %c0_78, %c0_79] : memref<1x8x8x8xbf16, #tpu.memory_space<vmem>>, vector<1x8x8x8xbf16>
    %79 = vector.shape_cast %78 : vector<1x8x8x8xbf16> to vector<8x8x8xbf16>
    %c1_i32_80 = arith.constant 1 : i32
    %80 = arith.addi %9, %c1_i32_80 : i32
    %81 = arith.index_cast %80 : i32 to index
    %c1_81 = arith.constant 1 : index
    %c0_82 = arith.constant 0 : index
    %82 = vector.load %arg6[%81, %c1_81, %c0_82] : memref<10x10x128xbf16, #tpu.memory_space<vmem>>, vector<8x8x8xbf16>
    tpu.vector_store %arg6[%81, %c1_81, %c0_82], %79 {strides = array<i32>} : memref<10x10x128xbf16, #tpu.memory_space<vmem>>, vector<8x8x8xbf16>,
    %c1_i32_83 = arith.constant 1 : i32
    %c0_i32_84 = arith.constant 0 : i32
    %c8_i32_85 = arith.constant 8 : i32
    %83 = arith.muli %c0_i32_84, %c8_i32_85 : i32
    %84 = tpu.assume_multiple %83, 8 : i32
    %cst_86 = arith.constant 0.000000e+00 : f32
    %85 = vector.broadcast %cst_86 : f32 to vector<64x8xf32>
    %c0_87 = arith.constant 0 : index
    %c0_88 = arith.constant 0 : index
    %86 = vector.load %arg8[%c0_87, %c0_88] : memref<64x8xf32, #tpu.memory_space<vmem>>, vector<64x8xf32>
    tpu.vector_store %arg8[%c0_87, %c0_88], %85 {strides = array<i32>} : memref<64x8xf32, #tpu.memory_space<vmem>>, vector<64x8xf32>,
    %c0_i32_89 = arith.constant 0 : i32
    %87 = arith.addi %84, %c0_i32_89 : i32
    %88 = arith.index_cast %87 : i32 to index
    %c0_90 = arith.constant 0 : index
    %c0_91 = arith.constant 0 : index
    %89 = vector.load %arg6[%88, %c0_90, %c0_91] : memref<10x10x128xbf16, #tpu.memory_space<vmem>>, vector<8x8x128xbf16>
    %c0_92 = arith.constant 0 : index
    %c0_93 = arith.constant 0 : index
    %90 = vector.load %arg8[%c0_92, %c0_93] : memref<64x8xf32, #tpu.memory_space<vmem>>, vector<64x8xf32>
    %91 = vector.shape_cast %89 : vector<8x8x128xbf16> to vector<64x128xbf16>
    %c0_94 = arith.constant 0 : index
    %c0_95 = arith.constant 0 : index
    %92 = vector.load %arg4[%c0_94, %c0_95] : memref<1152x8xbf16, #tpu.memory_space<vmem>>, vector<128x8xbf16>
    %cst_96 = arith.constant dense<0.000000e+00> : vector<64x8xf32>
    %93 = tpu.matmul %91, %92, %cst_96 {dimension_numbers = #tpu.dot_dimension_numbers<[1], [0], [0], [1], [0, 0, 1, 1], [], []>} : vector<64x128xbf16>, vector<128x8xbf16>, vector<64x8xf32> -> vector<64x8xf32>
    %94 = arith.addf %90, %93 : vector<64x8xf32>
    %c0_97 = arith.constant 0 : index
    %c0_98 = arith.constant 0 : index
    %95 = vector.load %arg8[%c0_97, %c0_98] : memref<64x8xf32, #tpu.memory_space<vmem>>, vector<64x8xf32>
    tpu.vector_store %arg8[%c0_97, %c0_98], %94 {strides = array<i32>} : memref<64x8xf32, #tpu.memory_space<vmem>>, vector<64x8xf32>,
    %c0_i32_99 = arith.constant 0 : i32
    %96 = arith.addi %84, %c0_i32_99 : i32
    %97 = arith.index_cast %96 : i32 to index
    %c1_100 = arith.constant 1 : index
    %c0_101 = arith.constant 0 : index
    %98 = vector.load %arg6[%97, %c1_100, %c0_101] : memref<10x10x128xbf16, #tpu.memory_space<vmem>>, vector<8x8x128xbf16>
    %c0_102 = arith.constant 0 : index
    %c0_103 = arith.constant 0 : index
    %99 = vector.load %arg8[%c0_102, %c0_103] : memref<64x8xf32, #tpu.memory_space<vmem>>, vector<64x8xf32>
    %100 = vector.shape_cast %98 : vector<8x8x128xbf16> to vector<64x128xbf16>
    %c128 = arith.constant 128 : index
    %c0_104 = arith.constant 0 : index
    %101 = vector.load %arg4[%c128, %c0_104] : memref<1152x8xbf16, #tpu.memory_space<vmem>>, vector<128x8xbf16>
    %cst_105 = arith.constant dense<0.000000e+00> : vector<64x8xf32>
    %102 = tpu.matmul %100, %101, %cst_105 {dimension_numbers = #tpu.dot_dimension_numbers<[1], [0], [0], [1], [0, 0, 1, 1], [], []>} : vector<64x128xbf16>, vector<128x8xbf16>, vector<64x8xf32> -> vector<64x8xf32>
    %103 = arith.addf %99, %102 : vector<64x8xf32>
    %c0_106 = arith.constant 0 : index
    %c0_107 = arith.constant 0 : index
    %104 = vector.load %arg8[%c0_106, %c0_107] : memref<64x8xf32, #tpu.memory_space<vmem>>, vector<64x8xf32>
    tpu.vector_store %arg8[%c0_106, %c0_107], %103 {strides = array<i32>} : memref<64x8xf32, #tpu.memory_space<vmem>>, vector<64x8xf32>,
    %c0_i32_108 = arith.constant 0 : i32
    %105 = arith.addi %84, %c0_i32_108 : i32
    %106 = arith.index_cast %105 : i32 to index
    %c2 = arith.constant 2 : index
    %c0_109 = arith.constant 0 : index
    %107 = vector.load %arg6[%106, %c2, %c0_109] : memref<10x10x128xbf16, #tpu.memory_space<vmem>>, vector<8x8x128xbf16>
    %c0_110 = arith.constant 0 : index
    %c0_111 = arith.constant 0 : index
    %108 = vector.load %arg8[%c0_110, %c0_111] : memref<64x8xf32, #tpu.memory_space<vmem>>, vector<64x8xf32>
    %109 = vector.shape_cast %107 : vector<8x8x128xbf16> to vector<64x128xbf16>
    %c256 = arith.constant 256 : index
    %c0_112 = arith.constant 0 : index
    %110 = vector.load %arg4[%c256, %c0_112] : memref<1152x8xbf16, #tpu.memory_space<vmem>>, vector<128x8xbf16>
    %cst_113 = arith.constant dense<0.000000e+00> : vector<64x8xf32>
    %111 = tpu.matmul %109, %110, %cst_113 {dimension_numbers = #tpu.dot_dimension_numbers<[1], [0], [0], [1], [0, 0, 1, 1], [], []>} : vector<64x128xbf16>, vector<128x8xbf16>, vector<64x8xf32> -> vector<64x8xf32>
    %112 = arith.addf %108, %111 : vector<64x8xf32>
    %c0_114 = arith.constant 0 : index
    %c0_115 = arith.constant 0 : index
    %113 = vector.load %arg8[%c0_114, %c0_115] : memref<64x8xf32, #tpu.memory_space<vmem>>, vector<64x8xf32>
    tpu.vector_store %arg8[%c0_114, %c0_115], %112 {strides = array<i32>} : memref<64x8xf32, #tpu.memory_space<vmem>>, vector<64x8xf32>,
    %c1_i32_116 = arith.constant 1 : i32
    %114 = arith.addi %84, %c1_i32_116 : i32
    %115 = arith.index_cast %114 : i32 to index
    %c0_117 = arith.constant 0 : index
    %c0_118 = arith.constant 0 : index
    %116 = vector.load %arg6[%115, %c0_117, %c0_118] : memref<10x10x128xbf16, #tpu.memory_space<vmem>>, vector<8x8x128xbf16>
    %c0_119 = arith.constant 0 : index
    %c0_120 = arith.constant 0 : index
    %117 = vector.load %arg8[%c0_119, %c0_120] : memref<64x8xf32, #tpu.memory_space<vmem>>, vector<64x8xf32>
    %118 = vector.shape_cast %116 : vector<8x8x128xbf16> to vector<64x128xbf16>
    %c384 = arith.constant 384 : index
    %c0_121 = arith.constant 0 : index
    %119 = vector.load %arg4[%c384, %c0_121] : memref<1152x8xbf16, #tpu.memory_space<vmem>>, vector<128x8xbf16>
    %cst_122 = arith.constant dense<0.000000e+00> : vector<64x8xf32>
    %120 = tpu.matmul %118, %119, %cst_122 {dimension_numbers = #tpu.dot_dimension_numbers<[1], [0], [0], [1], [0, 0, 1, 1], [], []>} : vector<64x128xbf16>, vector<128x8xbf16>, vector<64x8xf32> -> vector<64x8xf32>
    %121 = arith.addf %117, %120 : vector<64x8xf32>
    %c0_123 = arith.constant 0 : index
    %c0_124 = arith.constant 0 : index
    %122 = vector.load %arg8[%c0_123, %c0_124] : memref<64x8xf32, #tpu.memory_space<vmem>>, vector<64x8xf32>
    tpu.vector_store %arg8[%c0_123, %c0_124], %121 {strides = array<i32>} : memref<64x8xf32, #tpu.memory_space<vmem>>, vector<64x8xf32>,
    %c1_i32_125 = arith.constant 1 : i32
    %123 = arith.addi %84, %c1_i32_125 : i32
    %124 = arith.index_cast %123 : i32 to index
    %c1_126 = arith.constant 1 : index
    %c0_127 = arith.constant 0 : index
    %125 = vector.load %arg6[%124, %c1_126, %c0_127] : memref<10x10x128xbf16, #tpu.memory_space<vmem>>, vector<8x8x128xbf16>
    %c0_128 = arith.constant 0 : index
    %c0_129 = arith.constant 0 : index
    %126 = vector.load %arg8[%c0_128, %c0_129] : memref<64x8xf32, #tpu.memory_space<vmem>>, vector<64x8xf32>
    %127 = vector.shape_cast %125 : vector<8x8x128xbf16> to vector<64x128xbf16>
    %c512 = arith.constant 512 : index
    %c0_130 = arith.constant 0 : index
    %128 = vector.load %arg4[%c512, %c0_130] : memref<1152x8xbf16, #tpu.memory_space<vmem>>, vector<128x8xbf16>
    %cst_131 = arith.constant dense<0.000000e+00> : vector<64x8xf32>
    %129 = tpu.matmul %127, %128, %cst_131 {dimension_numbers = #tpu.dot_dimension_numbers<[1], [0], [0], [1], [0, 0, 1, 1], [], []>} : vector<64x128xbf16>, vector<128x8xbf16>, vector<64x8xf32> -> vector<64x8xf32>
    %130 = arith.addf %126, %129 : vector<64x8xf32>
    %c0_132 = arith.constant 0 : index
    %c0_133 = arith.constant 0 : index
    %131 = vector.load %arg8[%c0_132, %c0_133] : memref<64x8xf32, #tpu.memory_space<vmem>>, vector<64x8xf32>
    tpu.vector_store %arg8[%c0_132, %c0_133], %130 {strides = array<i32>} : memref<64x8xf32, #tpu.memory_space<vmem>>, vector<64x8xf32>,
    %c1_i32_134 = arith.constant 1 : i32
    %132 = arith.addi %84, %c1_i32_134 : i32
    %133 = arith.index_cast %132 : i32 to index
    %c2_135 = arith.constant 2 : index
    %c0_136 = arith.constant 0 : index
    %134 = vector.load %arg6[%133, %c2_135, %c0_136] : memref<10x10x128xbf16, #tpu.memory_space<vmem>>, vector<8x8x128xbf16>
    %c0_137 = arith.constant 0 : index
    %c0_138 = arith.constant 0 : index
    %135 = vector.load %arg8[%c0_137, %c0_138] : memref<64x8xf32, #tpu.memory_space<vmem>>, vector<64x8xf32>
    %136 = vector.shape_cast %134 : vector<8x8x128xbf16> to vector<64x128xbf16>
    %c640 = arith.constant 640 : index
    %c0_139 = arith.constant 0 : index
    %137 = vector.load %arg4[%c640, %c0_139] : memref<1152x8xbf16, #tpu.memory_space<vmem>>, vector<128x8xbf16>
    %cst_140 = arith.constant dense<0.000000e+00> : vector<64x8xf32>
    %138 = tpu.matmul %136, %137, %cst_140 {dimension_numbers = #tpu.dot_dimension_numbers<[1], [0], [0], [1], [0, 0, 1, 1], [], []>} : vector<64x128xbf16>, vector<128x8xbf16>, vector<64x8xf32> -> vector<64x8xf32>
    %139 = arith.addf %135, %138 : vector<64x8xf32>
    %c0_141 = arith.constant 0 : index
    %c0_142 = arith.constant 0 : index
    %140 = vector.load %arg8[%c0_141, %c0_142] : memref<64x8xf32, #tpu.memory_space<vmem>>, vector<64x8xf32>
    tpu.vector_store %arg8[%c0_141, %c0_142], %139 {strides = array<i32>} : memref<64x8xf32, #tpu.memory_space<vmem>>, vector<64x8xf32>,
    %c2_i32 = arith.constant 2 : i32
    %141 = arith.addi %84, %c2_i32 : i32
    %142 = arith.index_cast %141 : i32 to index
    %c0_143 = arith.constant 0 : index
    %c0_144 = arith.constant 0 : index
    %143 = vector.load %arg6[%142, %c0_143, %c0_144] : memref<10x10x128xbf16, #tpu.memory_space<vmem>>, vector<8x8x128xbf16>
    %c0_145 = arith.constant 0 : index
    %c0_146 = arith.constant 0 : index
    %144 = vector.load %arg8[%c0_145, %c0_146] : memref<64x8xf32, #tpu.memory_space<vmem>>, vector<64x8xf32>
    %145 = vector.shape_cast %143 : vector<8x8x128xbf16> to vector<64x128xbf16>
    %c768 = arith.constant 768 : index
    %c0_147 = arith.constant 0 : index
    %146 = vector.load %arg4[%c768, %c0_147] : memref<1152x8xbf16, #tpu.memory_space<vmem>>, vector<128x8xbf16>
    %cst_148 = arith.constant dense<0.000000e+00> : vector<64x8xf32>
    %147 = tpu.matmul %145, %146, %cst_148 {dimension_numbers = #tpu.dot_dimension_numbers<[1], [0], [0], [1], [0, 0, 1, 1], [], []>} : vector<64x128xbf16>, vector<128x8xbf16>, vector<64x8xf32> -> vector<64x8xf32>
    %148 = arith.addf %144, %147 : vector<64x8xf32>
    %c0_149 = arith.constant 0 : index
    %c0_150 = arith.constant 0 : index
    %149 = vector.load %arg8[%c0_149, %c0_150] : memref<64x8xf32, #tpu.memory_space<vmem>>, vector<64x8xf32>
    tpu.vector_store %arg8[%c0_149, %c0_150], %148 {strides = array<i32>} : memref<64x8xf32, #tpu.memory_space<vmem>>, vector<64x8xf32>,
    %c2_i32_151 = arith.constant 2 : i32
    %150 = arith.addi %84, %c2_i32_151 : i32
    %151 = arith.index_cast %150 : i32 to index
    %c1_152 = arith.constant 1 : index
    %c0_153 = arith.constant 0 : index
    %152 = vector.load %arg6[%151, %c1_152, %c0_153] : memref<10x10x128xbf16, #tpu.memory_space<vmem>>, vector<8x8x128xbf16>
    %c0_154 = arith.constant 0 : index
    %c0_155 = arith.constant 0 : index
    %153 = vector.load %arg8[%c0_154, %c0_155] : memref<64x8xf32, #tpu.memory_space<vmem>>, vector<64x8xf32>
    %154 = vector.shape_cast %152 : vector<8x8x128xbf16> to vector<64x128xbf16>
    %c896 = arith.constant 896 : index
    %c0_156 = arith.constant 0 : index
    %155 = vector.load %arg4[%c896, %c0_156] : memref<1152x8xbf16, #tpu.memory_space<vmem>>, vector<128x8xbf16>
    %cst_157 = arith.constant dense<0.000000e+00> : vector<64x8xf32>
    %156 = tpu.matmul %154, %155, %cst_157 {dimension_numbers = #tpu.dot_dimension_numbers<[1], [0], [0], [1], [0, 0, 1, 1], [], []>} : vector<64x128xbf16>, vector<128x8xbf16>, vector<64x8xf32> -> vector<64x8xf32>
    %157 = arith.addf %153, %156 : vector<64x8xf32>
    %c0_158 = arith.constant 0 : index
    %c0_159 = arith.constant 0 : index
    %158 = vector.load %arg8[%c0_158, %c0_159] : memref<64x8xf32, #tpu.memory_space<vmem>>, vector<64x8xf32>
    tpu.vector_store %arg8[%c0_158, %c0_159], %157 {strides = array<i32>} : memref<64x8xf32, #tpu.memory_space<vmem>>, vector<64x8xf32>,
    %c2_i32_160 = arith.constant 2 : i32
    %159 = arith.addi %84, %c2_i32_160 : i32
    %160 = arith.index_cast %159 : i32 to index
    %c2_161 = arith.constant 2 : index
    %c0_162 = arith.constant 0 : index
    %161 = vector.load %arg6[%160, %c2_161, %c0_162] : memref<10x10x128xbf16, #tpu.memory_space<vmem>>, vector<8x8x128xbf16>
    %c0_163 = arith.constant 0 : index
    %c0_164 = arith.constant 0 : index
    %162 = vector.load %arg8[%c0_163, %c0_164] : memref<64x8xf32, #tpu.memory_space<vmem>>, vector<64x8xf32>
    %163 = vector.shape_cast %161 : vector<8x8x128xbf16> to vector<64x128xbf16>
    %c1024 = arith.constant 1024 : index
    %c0_165 = arith.constant 0 : index
    %164 = vector.load %arg4[%c1024, %c0_165] : memref<1152x8xbf16, #tpu.memory_space<vmem>>, vector<128x8xbf16>
    %cst_166 = arith.constant dense<0.000000e+00> : vector<64x8xf32>
    %165 = tpu.matmul %163, %164, %cst_166 {dimension_numbers = #tpu.dot_dimension_numbers<[1], [0], [0], [1], [0, 0, 1, 1], [], []>} : vector<64x128xbf16>, vector<128x8xbf16>, vector<64x8xf32> -> vector<64x8xf32>
    %166 = arith.addf %162, %165 : vector<64x8xf32>
    %c0_167 = arith.constant 0 : index
    %c0_168 = arith.constant 0 : index
    %167 = vector.load %arg8[%c0_167, %c0_168] : memref<64x8xf32, #tpu.memory_space<vmem>>, vector<64x8xf32>
    tpu.vector_store %arg8[%c0_167, %c0_168], %166 {strides = array<i32>} : memref<64x8xf32, #tpu.memory_space<vmem>>, vector<64x8xf32>,
    %c0_169 = arith.constant 0 : index
    %c0_170 = arith.constant 0 : index
    %168 = vector.load %arg8[%c0_169, %c0_170] : memref<64x8xf32, #tpu.memory_space<vmem>>, vector<64x8xf32>
    %cst_171 = arith.constant 0.000000e+00 : f32
    %169 = vector.broadcast %cst_171 : f32 to vector<64x8xf32>
    %170 = arith.maximumf %168, %169 : vector<64x8xf32>
    %171 = vector.shape_cast %170 : vector<64x8xf32> to vector<8x8x8xf32>
    %c0_172 = arith.constant 0 : index
    %172 = arith.index_cast %84 : i32 to index
    %c0_173 = arith.constant 0 : index
    %c0_174 = arith.constant 0 : index
    %173 = vector.load %arg5[%c0_172, %172, %c0_173, %c0_174] : memref<1x8x8x8xf32, #tpu.memory_space<vmem>>, vector<1x8x8x8xf32>
    %174 = vector.shape_cast %173 : vector<1x8x8x8xf32> to vector<8x8x8xf32>
    %175 = vector.shape_cast %171 : vector<8x8x8xf32> to vector<1x8x8x8xf32>
    tpu.vector_store %arg5[%c0_172, %172, %c0_173, %c0_174], %175 {strides = array<i32>} : memref<1x8x8x8xf32, #tpu.memory_space<vmem>>, vector<1x8x8x8xf32>,
    %c1_i32_175 = arith.constant 1 : i32
    return
  }
  func.func @transform_0(%arg0: i32) -> (i32, i32, i32, i32) {
    %c0_i32 = arith.constant 0 : i32
    %c0_i32_0 = arith.constant 0 : i32
    %c0_i32_1 = arith.constant 0 : i32
    %c0_i32_2 = arith.constant 0 : i32
    return %arg0, %c0_i32, %c0_i32_0, %c0_i32_1 : i32, i32, i32, i32
  }
  func.func @transform_1(%arg0: i32) -> (i32, i32, i32, i32) {
    %c0_i32 = arith.constant 0 : i32
    %c0_i32_0 = arith.constant 0 : i32
    %c0_i32_1 = arith.constant 0 : i32
    %c0_i32_2 = arith.constant 0 : i32
    return %arg0, %c0_i32, %c0_i32_0, %c0_i32_1 : i32, i32, i32, i32
  }
  func.func @transform_2(%arg0: i32) -> (i32, i32) {
    %c0_i32 = arith.constant 0 : i32
    %c0_i32_0 = arith.constant 0 : i32
    %c0_i32_1 = arith.constant 0 : i32
    return %c0_i32, %c0_i32_0 : i32, i32
  }
  func.func @transform_3(%arg0: i32) -> (i32, i32) {
    %c0_i32 = arith.constant 0 : i32
    %c0_i32_0 = arith.constant 0 : i32
    %c0_i32_1 = arith.constant 0 : i32
    return %c0_i32, %c0_i32_0 : i32, i32
  }
  func.func @transform_4(%arg0: i32) -> (i32, i32, i32, i32) {
    %c0_i32 = arith.constant 0 : i32
    %c0_i32_0 = arith.constant 0 : i32
    %c0_i32_1 = arith.constant 0 : i32
    %c0_i32_2 = arith.constant 0 : i32
    return %arg0, %c0_i32, %c0_i32_0, %c0_i32_1 : i32, i32, i32, i32
  }
}

</mosaic_0001>

<llo_original>
// kernel: conv2x_forward.1
$region0: #{conv2x_forward.1}
  #allocation0 [shape = 'u32[]', space=smem, size = 0x4, offset = 0x4, fixed_abs, tag = 'smem constant byte address 0x4 - core index']
  #allocation1 [shape = 'u32[72,128]{1,0:T(1,128)}', space=vmem, size = 0x9000, scoped, tag = 'internal scratch']
  #allocation2 [shape = 'bf16[10,10,128]{2,1,0:T(8,128)(2,1)}', space=vmem, size = 0xa000, scoped, tag = 'scratch operand']
  #allocation3 [shape = 'f32[64,128]{1,0:T(8,128)}', space=vmem, size = 0x8000, scoped, tag = 'scratch operand']
  #allocation4 [shape = 'f32[64,8]{1,0:T(8,128)}', space=vmem, size = 0x8000, scoped, tag = 'scratch operand']
  %s0 = inlined_call_operand.vmem [shape: bf16[2,9,18,16], index: 0, kind: input, shape index: {}]
  %s1 = inlined_call_operand.vmem [shape: bf16[2,8,8,8], index: 1, kind: input, shape index: {}]
  %s2 = inlined_call_operand.vmem [shape: bf16[72,128], index: 2, kind: input, shape index: {}]
  %s3 = inlined_call_operand.vmem [shape: bf16[1152,8], index: 3, kind: input, shape index: {}]
  %s4 = inlined_call_operand.vmem [shape: f32[2,8,8,8], index: 4, kind: output, shape index: {}]
  %s5 = sld [smem:[#allocation0]]
  $region49: #{conv2x_forward.1} parent=0
    _
  %s7 = ssub.s32 1, %s5
  %s8 = scalar_select 0, %s7, %s5
  loop: start=0, step=1, limit=4
  $region2: #{conv2x_forward.1} parent=0 // loop_pre_header
    _
  $region3: #{conv2x_forward.1} parent=0 // loop_header
    %s10 = sphi 0, %s14
    %p11 = scmp.ge.s32.totalorder %s10, 4
    %s20 = sphi 0, %s22
    %s23 = sphi 0, %s20
    %s24 = sphi 0, %s23
    %s40 = sphi 0, %s24
    %s46 = sphi 0, %s48
    %s49 = sphi 0, %s46
    %s50 = sphi 0, %s49
    %s66 = sphi 0, %s50
    %s70 = sphi 0, %s70
    %s72 = sphi 0, %s70
    %s73 = sphi 0, %s72
    %s87 = sphi 0, %s73
    %s91 = sphi 0, %s91
    %s93 = sphi 0, %s91
    %s94 = sphi 0, %s93
    %s108 = sphi 0, %s94
    %s114 = sphi 0, %s116
    %s117 = sphi 0, %s114
    %s118 = sphi 0, %s117
    %s134 = sphi 0, %s118
  $region4: #{conv2x_forward.1} parent=0 // loop_header_branch
    %13 = sbr.rel (%p11) target = $region8
  $region5: #{conv2x_forward.1} parent=0 // loop_body
    %s15 = ssub.s32 %s10, 1
    %s16 = ssub.s32 %s10, 2
    %s17 = sadd.s32 %s10, 1
    %s18 = ssub.s32 %s10, %s17
    %p19 = scmp.eq.s32.totalorder %s18, 0
    %s21 = sadd.s32 %s20, 1
    %s22 = scalar_select %p19, %s20, %s21
    %p25 = pneg %p19
    %p26 = scmp.eq.s32.totalorder %s10, 1
    %p27 = por %p25, %p26
    %p28 = scmp.ne.s32.totalorder %s20, %s23
    %p29 = scmp.eq.s32.totalorder %s10, 0
    %p30 = por %p28, %p29
    %p31 = scmp.ne.s32.totalorder %s20, %s23
    %p32 = scmp.eq.s32.totalorder %s15, 1
    %p33 = por %p31, %p32
    %p34 = scmp.ne.s32.totalorder %s23, %s24
    %p35 = scmp.eq.s32.totalorder %s15, 0
    %p36 = por %p34, %p35
    %p37 = scmp.ne.s32.totalorder %s23, %s24
    %p38 = scmp.eq.s32.totalorder %s16, 1
    %p39 = por %p37, %p38
    %p41 = scmp.ne.s32.totalorder %s24, %s40
    %p42 = scmp.eq.s32.totalorder %s16, 0
    %p43 = por %p41, %p42
    %s44 = ssub.s32 %s10, %s17
    %p45 = scmp.eq.s32.totalorder %s44, 0
    %s47 = sadd.s32 %s46, 1
    %s48 = scalar_select %p45, %s46, %s47
    %p51 = pneg %p45
    %p52 = scmp.eq.s32.totalorder %s10, 1
    %p53 = por %p51, %p52
    %p54 = scmp.ne.s32.totalorder %s46, %s49
    %p55 = scmp.eq.s32.totalorder %s10, 0
    %p56 = por %p54, %p55
    %p57 = scmp.ne.s32.totalorder %s46, %s49
    %p58 = scmp.eq.s32.totalorder %s15, 1
    %p59 = por %p57, %p58
    %p60 = scmp.ne.s32.totalorder %s49, %s50
    %p61 = scmp.eq.s32.totalorder %s15, 0
    %p62 = por %p60, %p61
    %p63 = scmp.ne.s32.totalorder %s49, %s50
    %p64 = scmp.eq.s32.totalorder %s16, 1
    %p65 = por %p63, %p64
    %p67 = scmp.ne.s32.totalorder %s50, %s66
    %p68 = scmp.eq.s32.totalorder %s16, 0
    %p69 = por %p67, %p68
    %s71 = sadd.s32 %s70, 1
    %p74 = scmp.eq.s32.totalorder %s10, 1
    %p75 = scmp.ne.s32.totalorder %s70, %s72
    %p76 = scmp.eq.s32.totalorder %s10, 0
    %p77 = por %p75, %p76
    %p78 = scmp.ne.s32.totalorder %s70, %s72
    %p79 = scmp.eq.s32.totalorder %s15, 1
    %p80 = por %p78, %p79
    %p81 = scmp.ne.s32.totalorder %s72, %s73
    %p82 = scmp.eq.s32.totalorder %s15, 0
    %p83 = por %p81, %p82
    %p84 = scmp.ne.s32.totalorder %s72, %s73
    %p85 = scmp.eq.s32.totalorder %s16, 1
    %p86 = por %p84, %p85
    %p88 = scmp.ne.s32.totalorder %s73, %s87
    %p89 = scmp.eq.s32.totalorder %s16, 0
    %p90 = por %p88, %p89
    %s92 = sadd.s32 %s91, 1
    %p95 = scmp.eq.s32.totalorder %s10, 1
    %p96 = scmp.ne.s32.totalorder %s91, %s93
    %p97 = scmp.eq.s32.totalorder %s10, 0
    %p98 = por %p96, %p97
    %p99 = scmp.ne.s32.totalorder %s91, %s93
    %p100 = scmp.eq.s32.totalorder %s15, 1
    %p101 = por %p99, %p100
    %p102 = scmp.ne.s32.totalorder %s93, %s94
    %p103 = scmp.eq.s32.totalorder %s15, 0
    %p104 = por %p102, %p103
    %p105 = scmp.ne.s32.totalorder %s93, %s94
    %p106 = scmp.eq.s32.totalorder %s16, 1
    %p107 = por %p105, %p106
    %p109 = scmp.ne.s32.totalorder %s94, %s108
    %p110 = scmp.eq.s32.totalorder %s16, 0
    %p111 = por %p109, %p110
    %s112 = ssub.s32 %s10, %s17
    %p113 = scmp.eq.s32.totalorder %s112, 0
    %s115 = sadd.s32 %s114, 1
    %s116 = scalar_select %p113, %s114, %s115
    %p119 = pneg %p113
    %p120 = scmp.eq.s32.totalorder %s10, 1
    %p121 = por %p119, %p120
    %p122 = scmp.ne.s32.totalorder %s114, %s117
    %p123 = scmp.eq.s32.totalorder %s10, 0
    %p124 = por %p122, %p123
    %p125 = scmp.ne.s32.totalorder %s114, %s117
    %p126 = scmp.eq.s32.totalorder %s15, 1
    %p127 = por %p125, %p126
    %p128 = scmp.ne.s32.totalorder %s117, %s118
    %p129 = scmp.eq.s32.totalorder %s15, 0
    %p130 = por %p128, %p129
    %p131 = scmp.ne.s32.totalorder %s117, %s118
    %p132 = scmp.eq.s32.totalorder %s16, 1
    %p133 = por %p131, %p132
    %p135 = scmp.ne.s32.totalorder %s118, %s134
    %p136 = scmp.eq.s32.totalorder %s16, 0
    %p137 = por %p135, %p136
    %p138 = scmp.le.s32.totalorder 1, %s10
    %p139 = scmp.lt.s32.totalorder %s10, 3
    %p140 = pnand %p138, %p139
    %p141 = pneg %p140
    // Predicated region
    $region9: #{conv2x_forward.1} parent=5 // pred_check
      _
    $region10: #{conv2x_forward.1} parent=5 // pred_check_branch
      %143 = sbr.rel (%p140) target = $region12
    $region11: #{conv2x_forward.1} parent=5 // pred_region
      %s144 = ssub.s32 %s10, 1
      // Predicated region
      $region13: #{conv2x_forward.1} parent=11 // pred_check
        %p145 = pneg %p83
      $region14: #{conv2x_forward.1} parent=11 // pred_check_branch
        %147 = sbr.rel (%p145) target = $region16
      $region15: #{conv2x_forward.1} parent=11 // pred_region
        _
      $region16: #{conv2x_forward.1} parent=11 // pred_fallthru
        _
      // Predicated region
      $region17: #{conv2x_forward.1} parent=11 // pred_check
        %p148 = pneg %p104
      $region18: #{conv2x_forward.1} parent=11 // pred_check_branch
        %150 = sbr.rel (%p148) target = $region20
      $region19: #{conv2x_forward.1} parent=11 // pred_region
        _
      $region20: #{conv2x_forward.1} parent=11 // pred_fallthru
        _
    $region12: #{conv2x_forward.1} parent=5 // pred_fallthru
      _
    %p151 = scmp.lt.s32.totalorder %s10, 2
    // Predicated region
    $region21: #{conv2x_forward.1} parent=5 // pred_check
      %p152 = pneg %p151
    $region22: #{conv2x_forward.1} parent=5 // pred_check_branch
      %154 = sbr.rel (%p152) target = $region24
    $region23: #{conv2x_forward.1} parent=5 // pred_region
      // Predicated region
      $region25: #{conv2x_forward.1} parent=23 // pred_check
        %p155 = pneg %p30
      $region26: #{conv2x_forward.1} parent=23 // pred_check_branch
        %157 = sbr.rel (%p155) target = $region28
      $region27: #{conv2x_forward.1} parent=23 // pred_region
        %p158 = scmp.lt.s32.totalorder %s10, 1
        %s159 = scalar_select %p158, %s10, 1
        %s160 = smul.addr %s159, 27
        %s161 = smul.addr %s160, 4
        %s162 = scalar_lea.vmem %s0, %s161
      $region28: #{conv2x_forward.1} parent=23 // pred_fallthru
        _
      // Predicated region
      $region29: #{conv2x_forward.1} parent=23 // pred_check
        %p163 = pneg %p56
      $region30: #{conv2x_forward.1} parent=23 // pred_check_branch
        %165 = sbr.rel (%p163) target = $region32
      $region31: #{conv2x_forward.1} parent=23 // pred_region
        %p166 = scmp.lt.s32.totalorder %s10, 1
        %s167 = scalar_select %p166, %s10, 1
        %s168 = smul.addr %s167, 8
        %s169 = smul.addr %s168, 4
        %s170 = scalar_lea.vmem %s1, %s169
      $region32: #{conv2x_forward.1} parent=23 // pred_fallthru
        _
    $region24: #{conv2x_forward.1} parent=5 // pred_fallthru
      _
    %p171 = scmp.le.s32.totalorder 1, %s10
    %p172 = scmp.lt.s32.totalorder %s10, 3
    %p173 = pnand %p171, %p172
    %p174 = pneg %p173
    // Predicated region
    $region33: #{conv2x_forward.1} parent=5 // pred_check
      _
    $region34: #{conv2x_forward.1} parent=5 // pred_check_branch
      %176 = sbr.rel (%p173) target = $region36
    $region35: #{conv2x_forward.1} parent=5 // pred_region
      %s177 = ssub.s32 %s10, 1
      %p178 = scmp.lt.s32.totalorder %s15, 1
      %s179 = scalar_select %p178, %s15, 1
      %s180 = smul.addr %s179, 27
      %s181 = smul.addr %s180, 4
      %s182 = scalar_lea.vmem %s0, %s181
      %p183 = pneg %p36
      %p184 = pneg %p33
      %p185 = scmp.lt.s32.totalorder %s15, 1
      %s186 = scalar_select %p185, %s15, 1
      %s187 = smul.addr %s186, 8
      %s188 = smul.addr %s187, 4
      %s189 = scalar_lea.vmem %s1, %s188
      %p190 = pneg %p62
      %p191 = pneg %p59
      %p192 = pneg %p83
      %p193 = pneg %p80
      %p194 = pneg %p104
      %p195 = pneg %p101
      %p196 = pneg %p130
      %p197 = pneg %p127
      %p198 = scmp.lt.s32.totalorder %s15, 1
      %s199 = scalar_select %p198, %s15, 1
      %s200 = smul.addr %s199, 8
      %s201 = smul.addr %s200, 8
      %s202 = scalar_lea.vmem %s4, %s201
      %p203 = scmp.lt.s32.totalorder %s15, 1
      %s204 = scalar_select %p203, %s15, 1
      %s205 = smul.addr %s204, 27
      %s206 = smul.addr %s205, 4
      %s207 = scalar_lea.vmem %s0, %s206
      %p208 = scmp.lt.s32.totalorder %s15, 1
      %s209 = scalar_select %p208, %s15, 1
      %s210 = smul.addr %s209, 8
      %s211 = smul.addr %s210, 4
      %s212 = scalar_lea.vmem %s1, %s211
      %p213 = scmp.lt.s32.totalorder %s15, 1
      %s214 = scalar_select %p213, %s15, 1
      %s215 = smul.addr %s214, 8
      %s216 = smul.addr %s215, 8
      %s217 = scalar_lea.vmem %s4, %s216
      %219 = vst [vmem:[#allocation2] sm:$0xf] 0
      %220 = vst [vmem:[#allocation2 + $0x4] sm:$0x1] 0
      %s221 = scalar_lea.vmem [#allocation2], 72
      %222 = vst [vmem:[%s221] sm:$0xf] 0
      %223 = vst [vmem:[%s221 + $0x4] sm:$0x1] 0
      %vm224 = vcmask 1040384
      %vm225 = vsmask.f32 256
      %vm226 = vmand %vm224, %vm225
      %v227 = vld [vmem:[#allocation2] sm:$0x1]
      %v228 = vsel %vm226, 0, %v227
      %229 = vst [vmem:[#allocation2] sm:$0x1] %v228
      %v230 = vld [vmem:[#allocation2 + $0x8] sm:$0x1]
      %v231 = vsel %vm226, 0, %v230
      %232 = vst [vmem:[#allocation2 + $0x8] sm:$0x1] %v231
      %v233 = vld [vmem:[#allocation2 + $0x10] sm:$0x1]
      %v234 = vsel %vm226, 0, %v233
      %235 = vst [vmem:[#allocation2 + $0x10] sm:$0x1] %v234
      %v236 = vld [vmem:[#allocation2 + $0x18] sm:$0x1]
      %v237 = vsel %vm226, 0, %v236
      %238 = vst [vmem:[#allocation2 + $0x18] sm:$0x1] %v237
      %v239 = vld [vmem:[#allocation2 + $0x20] sm:$0x1]
      %v240 = vsel %vm226, 0, %v239
      %241 = vst [vmem:[#allocation2 + $0x20] sm:$0x1] %v240
      %v242 = vld [vmem:[#allocation2 + $0x28] sm:$0x1]
      %v243 = vsel %vm226, 0, %v242
      %244 = vst [vmem:[#allocation2 + $0x28] sm:$0x1] %v243
      %v245 = vld [vmem:[#allocation2 + $0x30] sm:$0x1]
      %v246 = vsel %vm226, 0, %v245
      %247 = vst [vmem:[#allocation2 + $0x30] sm:$0x1] %v246
      %v248 = vld [vmem:[#allocation2 + $0x38] sm:$0x1]
      %v249 = vsel %vm226, 0, %v248
      %250 = vst [vmem:[#allocation2 + $0x38] sm:$0x1] %v249
      %v251 = vld [vmem:[#allocation2 + $0x40] sm:$0x1]
      %v252 = vsel %vm226, 0, %v251
      %253 = vst [vmem:[#allocation2 + $0x40] sm:$0x1] %v252
      %v254 = vld [vmem:[#allocation2 + $0x48] sm:$0x1]
      %v255 = vsel %vm226, 0, %v254
      %256 = vst [vmem:[#allocation2 + $0x48] sm:$0x1] %v255
      %vm257 = vsmask.f32 7938
      %vm258 = vmand %vm224, %vm257
      %v259 = vld [vmem:[#allocation2 + $0x4] sm:$0x1]
      %v260 = vsel %vm258, 0, %v259
      %261 = vst [vmem:[#allocation2 + $0x4] sm:$0x1] %v260
      %v262 = vld [vmem:[#allocation2 + $0xc] sm:$0x1]
      %v263 = vsel %vm258, 0, %v262
      %264 = vst [vmem:[#allocation2 + $0xc] sm:$0x1] %v263
      %v265 = vld [vmem:[#allocation2 + $0x14] sm:$0x1]
      %v266 = vsel %vm258, 0, %v265
      %267 = vst [vmem:[#allocation2 + $0x14] sm:$0x1] %v266
      %v268 = vld [vmem:[#allocation2 + $0x1c] sm:$0x1]
      %v269 = vsel %vm258, 0, %v268
      %270 = vst [vmem:[#allocation2 + $0x1c] sm:$0x1] %v269
      %v271 = vld [vmem:[#allocation2 + $0x24] sm:$0x1]
      %v272 = vsel %vm258, 0, %v271
      %273 = vst [vmem:[#allocation2 + $0x24] sm:$0x1] %v272
      %v274 = vld [vmem:[#allocation2 + $0x2c] sm:$0x1]
      %v275 = vsel %vm258, 0, %v274
      %276 = vst [vmem:[#allocation2 + $0x2c] sm:$0x1] %v275
      %v277 = vld [vmem:[#allocation2 + $0x34] sm:$0x1]
      %v278 = vsel %vm258, 0, %v277
      %279 = vst [vmem:[#allocation2 + $0x34] sm:$0x1] %v278
      %v280 = vld [vmem:[#allocation2 + $0x3c] sm:$0x1]
      %v281 = vsel %vm258, 0, %v280
      %282 = vst [vmem:[#allocation2 + $0x3c] sm:$0x1] %v281
      %v283 = vld [vmem:[#allocation2 + $0x44] sm:$0x1]
      %v284 = vsel %vm258, 0, %v283
      %285 = vst [vmem:[#allocation2 + $0x44] sm:$0x1] %v284
      %v286 = vld [vmem:[#allocation2 + $0x4c] sm:$0x1]
      %v287 = vsel %vm258, 0, %v286
      %288 = vst [vmem:[#allocation2 + $0x4c] sm:$0x1] %v287
      %289 = vst [vmem:[#allocation3] sm:$0xff] 0.0
      %290 = vst [vmem:[#allocation3 + $0x8] sm:$0xff] 0.0
      %291 = vst [vmem:[#allocation3 + $0x10] sm:$0xff] 0.0
      %292 = vst [vmem:[#allocation3 + $0x18] sm:$0xff] 0.0
      %293 = vst [vmem:[#allocation3 + $0x20] sm:$0xff] 0.0
      %294 = vst [vmem:[#allocation3 + $0x28] sm:$0xff] 0.0
      %295 = vst [vmem:[#allocation3 + $0x30] sm:$0xff] 0.0
      %296 = vst [vmem:[#allocation3 + $0x38] sm:$0xff] 0.0
      %s297 = smul.u32 0, 3
      %s298 = smul.addr %s297, 4
      %s299 = scalar_lea.vmem %s207, %s298
      %v300 = vld [vmem:[%s299] sm:$0xf]
      %v301 = vld [vmem:[%s299 + $0xc] sm:$0xf]
      %v302 = vld [vmem:[%s299 + $0x18] sm:$0xf]
      %v303 = vld [vmem:[%s299 + $0x24] sm:$0xf]
      %v304 = vld [vmem:[%s299 + $0x30] sm:$0xf]
      %v305 = vld [vmem:[%s299 + $0x3c] sm:$0xf]
      %v306 = vld [vmem:[%s299 + $0x48] sm:$0xf]
      %v307 = vld [vmem:[%s299 + $0x54] sm:$0xf]
      %v308 = vld [vmem:[#allocation3] sm:$0xff]
      %v309 = vld [vmem:[#allocation3 + $0x8] sm:$0xff]
      %v310 = vld [vmem:[#allocation3 + $0x10] sm:$0xff]
      %v311 = vld [vmem:[#allocation3 + $0x18] sm:$0xff]
      %v312 = vld [vmem:[#allocation3 + $0x20] sm:$0xff]
      %v313 = vld [vmem:[#allocation3 + $0x28] sm:$0xff]
      %v314 = vld [vmem:[#allocation3 + $0x30] sm:$0xff]
      %v315 = vld [vmem:[#allocation3 + $0x38] sm:$0xff]
      %v316 = vld [vmem:[%s2] sm:$0xf]
      %v317 = vld [vmem:[%s2 + $0x4] sm:$0xf]
      %v326 = vunpack.c.l.b16 %v300
      %v327 = vunpack.c.l.b16 %v301
      %v328 = vunpack.c.l.b16 %v302
      %v329 = vunpack.c.l.b16 %v303
      %v330 = vunpack.c.l.b16 %v304
      %v331 = vunpack.c.l.b16 %v305
      %v332 = vunpack.c.l.b16 %v306
      %v333 = vunpack.c.l.b16 %v307
      %v334 = vpack.c.b16 %v327, %v326
      %v335 = vpack.c.b16 %v329, %v328
      %v336 = vpack.c.b16 %v331, %v330
      %v337 = vpack.c.b16 %v333, %v332
      %v340 = vunpack.c.l.b16 %v316
      %v341 = vunpack.c.l.b16 %v317
      %v342 = vpack.c.b16 %v341, %v340
      %vm344 = vcmask 130048
      %v346 = vsel %vm344, %v334, 0
      %v349 = vsel %vm344, %v335, 0
      %v352 = vsel %vm344, %v336, 0
      %v355 = vsel %vm344, %v337, 0
      %357 = vmatpush.bf16.msra.mxu0 0
      %358 = vmatpush.bf16.msra.mxu0 0
      %359 = vmatpush.bf16.msra.mxu0 0
      %360 = vmatpush.bf16.msra.mxu0 0
      %361 = vmatpush.bf16.msra.mxu0 0
      %362 = vmatpush.bf16.msra.mxu0 0
      %363 = vmatpush.bf16.msra.mxu0 0
      %364 = vmatpush.bf16.msra.mxu0 %v342
      %365 = vmatmul.bf16.gmra.mxu0 %v346
      %v366 = vpop.f32.mrf.mxu0
      %v367 = vadd.f32 0.0, %v366
      %v368 = vpop.f32.mrf.mxu0
      %v369 = vadd.f32 0.0, %v368
      %370 = vmatmul.bf16.gmra.mxu0 %v349
      %v371 = vpop.f32.mrf.mxu0
      %v372 = vadd.f32 0.0, %v371
      %v373 = vpop.f32.mrf.mxu0
      %v374 = vadd.f32 0.0, %v373
      %375 = vmatmul.bf16.gmra.mxu0 %v352
      %v376 = vpop.f32.mrf.mxu0
      %v377 = vadd.f32 0.0, %v376
      %v378 = vpop.f32.mrf.mxu0
      %v379 = vadd.f32 0.0, %v378
      %380 = vmatmul.bf16.gmra.mxu0 %v355
      %v381 = vpop.f32.mrf.mxu0
      %v382 = vadd.f32 0.0, %v381
      %v383 = vpop.f32.mrf.mxu0
      %v384 = vadd.f32 0.0, %v383
      %385 = vdwg.mxu0
      %v386 = vadd.f32 %v308, %v367
      %v387 = vadd.f32 %v309, %v369
      %v388 = vadd.f32 %v310, %v372
      %v389 = vadd.f32 %v311, %v374
      %v390 = vadd.f32 %v312, %v377
      %v391 = vadd.f32 %v313, %v379
      %v392 = vadd.f32 %v314, %v382
      %v393 = vadd.f32 %v315, %v384
      %394 = vst [vmem:[#allocation3] sm:$0xff] %v386
      %395 = vst [vmem:[#allocation3 + $0x8] sm:$0xff] %v387
      %396 = vst [vmem:[#allocation3 + $0x10] sm:$0xff] %v388
      %397 = vst [vmem:[#allocation3 + $0x18] sm:$0xff] %v389
      %398 = vst [vmem:[#allocation3 + $0x20] sm:$0xff] %v390
      %399 = vst [vmem:[#allocation3 + $0x28] sm:$0xff] %v391
      %400 = vst [vmem:[#allocation3 + $0x30] sm:$0xff] %v392
      %401 = vst [vmem:[#allocation3 + $0x38] sm:$0xff] %v393
      %v402 = vld [vmem:[%s299] sm:$0xf]
      %v403 = vld [vmem:[%s299 + $0x4] sm:$0x1]
      %v404 = vld [vmem:[%s299 + $0xc] sm:$0xf]
      %v405 = vld [vmem:[%s299 + $0x10] sm:$0x1]
      %v406 = vld [vmem:[%s299 + $0x18] sm:$0xf]
      %v407 = vld [vmem:[%s299 + $0x1c] sm:$0x1]
      %v408 = vld [vmem:[%s299 + $0x24] sm:$0xf]
      %v409 = vld [vmem:[%s299 + $0x28] sm:$0x1]
      %v410 = vld [vmem:[%s299 + $0x30] sm:$0xf]
      %v411 = vld [vmem:[%s299 + $0x34] sm:$0x1]
      %v412 = vld [vmem:[%s299 + $0x3c] sm:$0xf]
      %v413 = vld [vmem:[%s299 + $0x40] sm:$0x1]
      %v414 = vld [vmem:[%s299 + $0x48] sm:$0xf]
      %v415 = vld [vmem:[%s299 + $0x4c] sm:$0x1]
      %v416 = vld [vmem:[%s299 + $0x54] sm:$0xf]
      %v417 = vld [vmem:[%s299 + $0x58] sm:$0x1]
      %vm418 = vsmask.f32 3328
      %vm419 = vsmask.f32 7440
      %vm420 = vmor %vm418, %vm419
      %v422 = vshrl.u32 %v402, 16
      %v424 = vrot.slane %v422, 4
      %v425 = vshll.u32 %v402, 16
      %v427 = vrot.slane %v425, 5
      %v428 = vor.u32 %v424, %v427
      %v429 = vrot.slane %v428, 4
      %v431 = vshll.u32 %v403, 16
      %v433 = vrot.slane %v431, 5
      %v434 = vsel %vm420, %v429, %v433
      %v436 = vshrl.u32 %v404, 16
      %v438 = vrot.slane %v436, 4
      %v439 = vshll.u32 %v404, 16
      %v441 = vrot.slane %v439, 5
      %v442 = vor.u32 %v438, %v441
      %v443 = vrot.slane %v442, 4
      %v445 = vshll.u32 %v405, 16
      %v447 = vrot.slane %v445, 5
      %v448 = vsel %vm420, %v443, %v447
      %v450 = vshrl.u32 %v406, 16
      %v452 = vrot.slane %v450, 4
      %v453 = vshll.u32 %v406, 16
      %v455 = vrot.slane %v453, 5
      %v456 = vor.u32 %v452, %v455
      %v457 = vrot.slane %v456, 4
      %v459 = vshll.u32 %v407, 16
      %v461 = vrot.slane %v459, 5
      %v462 = vsel %vm420, %v457, %v461
      %v464 = vshrl.u32 %v408, 16
      %v466 = vrot.slane %v464, 4
      %v467 = vshll.u32 %v408, 16
      %v469 = vrot.slane %v467, 5
      %v470 = vor.u32 %v466, %v469
      %v471 = vrot.slane %v470, 4
      %v473 = vshll.u32 %v409, 16
      %v475 = vrot.slane %v473, 5
      %v476 = vsel %vm420, %v471, %v475
      %v478 = vshrl.u32 %v410, 16
      %v480 = vrot.slane %v478, 4
      %v481 = vshll.u32 %v410, 16
      %v483 = vrot.slane %v481, 5
      %v484 = vor.u32 %v480, %v483
      %v485 = vrot.slane %v484, 4
      %v487 = vshll.u32 %v411, 16
      %v489 = vrot.slane %v487, 5
      %v490 = vsel %vm420, %v485, %v489
      %v492 = vshrl.u32 %v412, 16
      %v494 = vrot.slane %v492, 4
      %v495 = vshll.u32 %v412, 16
      %v497 = vrot.slane %v495, 5
      %v498 = vor.u32 %v494, %v497
      %v499 = vrot.slane %v498, 4
      %v501 = vshll.u32 %v413, 16
      %v503 = vrot.slane %v501, 5
      %v504 = vsel %vm420, %v499, %v503
      %v506 = vshrl.u32 %v414, 16
      %v508 = vrot.slane %v506, 4
      %v509 = vshll.u32 %v414, 16
      %v511 = vrot.slane %v509, 5
      %v512 = vor.u32 %v508, %v511
      %v513 = vrot.slane %v512, 4
      %v515 = vshll.u32 %v415, 16
      %v517 = vrot.slane %v515, 5
      %v518 = vsel %vm420, %v513, %v517
      %v520 = vshrl.u32 %v416, 16
      %v522 = vrot.slane %v520, 4
      %v523 = vshll.u32 %v416, 16
      %v525 = vrot.slane %v523, 5
      %v526 = vor.u32 %v522, %v525
      %v527 = vrot.slane %v526, 4
      %v529 = vshll.u32 %v417, 16
      %v531 = vrot.slane %v529, 5
      %v532 = vsel %vm420, %v527, %v531
      %v533 = vld [vmem:[#allocation3] sm:$0xff]
      %v534 = vld [vmem:[#allocation3 + $0x8] sm:$0xff]
      %v535 = vld [vmem:[#allocation3 + $0x10] sm:$0xff]
      %v536 = vld [vmem:[#allocation3 + $0x18] sm:$0xff]
      %v537 = vld [vmem:[#allocation3 + $0x20] sm:$0xff]
      %v538 = vld [vmem:[#allocation3 + $0x28] sm:$0xff]
      %v539 = vld [vmem:[#allocation3 + $0x30] sm:$0xff]
      %v540 = vld [vmem:[#allocation3 + $0x38] sm:$0xff]
      %v541 = vld [vmem:[%s2 + $0x8] sm:$0xf]
      %v542 = vunpack.c.l.b16 %v434
      %v543 = vunpack.c.l.b16 %v448
      %v544 = vunpack.c.l.b16 %v462
      %v545 = vunpack.c.l.b16 %v476
      %v546 = vunpack.c.l.b16 %v490
      %v547 = vunpack.c.l.b16 %v504
      %v548 = vunpack.c.l.b16 %v518
      %v549 = vunpack.c.l.b16 %v532
      %v550 = vpack.c.b16 %v543, %v542
      %v551 = vpack.c.b16 %v545, %v544
      %v552 = vpack.c.b16 %v547, %v546
      %v553 = vpack.c.b16 %v549, %v548
      %vm554 = vcmask 64512
      %v556 = vsel %vm554, %v550, 0
      %v559 = vsel %vm554, %v551, 0
      %v562 = vsel %vm554, %v552, 0
      %v565 = vsel %vm554, %v553, 0
      %vm567 = vcmask 1043456
      %v569 = vsel %vm567, %v541, 0
      %571 = vmatpush.bf16.msra.mxu0 0
      %572 = vmatpush.bf16.msra.mxu0 0
      %573 = vmatpush.bf16.msra.mxu0 0
      %574 = vmatpush.bf16.msra.mxu0 0
      %575 = vmatpush.bf16.msra.mxu0 0
      %576 = vmatpush.bf16.msra.mxu0 0
      %577 = vmatpush.bf16.msra.mxu0 0
      %578 = vmatpush.bf16.msra.mxu0 %v569
      %579 = vmatmul.bf16.gmra.mxu0 %v556
      %v580 = vpop.f32.mrf.mxu0
      %v581 = vadd.f32 0.0, %v580
      %v582 = vpop.f32.mrf.mxu0
      %v583 = vadd.f32 0.0, %v582
      %584 = vmatmul.bf16.gmra.mxu0 %v559
      %v585 = vpop.f32.mrf.mxu0
      %v586 = vadd.f32 0.0, %v585
      %v587 = vpop.f32.mrf.mxu0
      %v588 = vadd.f32 0.0, %v587
      %589 = vmatmul.bf16.gmra.mxu0 %v562
      %v590 = vpop.f32.mrf.mxu0
      %v591 = vadd.f32 0.0, %v590
      %v592 = vpop.f32.mrf.mxu0
      %v593 = vadd.f32 0.0, %v592
      %594 = vmatmul.bf16.gmra.mxu0 %v565
      %v595 = vpop.f32.mrf.mxu0
      %v596 = vadd.f32 0.0, %v595
      %v597 = vpop.f32.mrf.mxu0
      %v598 = vadd.f32 0.0, %v597
      %599 = vdwg.mxu0
      %v600 = vadd.f32 %v533, %v581
      %v601 = vadd.f32 %v534, %v583
      %v602 = vadd.f32 %v535, %v586
      %v603 = vadd.f32 %v536, %v588
      %v604 = vadd.f32 %v537, %v591
      %v605 = vadd.f32 %v538, %v593
      %v606 = vadd.f32 %v539, %v596
      %v607 = vadd.f32 %v540, %v598
      %608 = vst [vmem:[#allocation3] sm:$0xff] %v600
      %609 = vst [vmem:[#allocation3 + $0x8] sm:$0xff] %v601
      %610 = vst [vmem:[#allocation3 + $0x10] sm:$0xff] %v602
      %611 = vst [vmem:[#allocation3 + $0x18] sm:$0xff] %v603
      %612 = vst [vmem:[#allocation3 + $0x20] sm:$0xff] %v604
      %613 = vst [vmem:[#allocation3 + $0x28] sm:$0xff] %v605
      %614 = vst [vmem:[#allocation3 + $0x30] sm:$0xff] %v606
      %615 = vst [vmem:[#allocation3 + $0x38] sm:$0xff] %v607
      %v616 = vld [vmem:[%s299 + $0x4] sm:$0xf]
      %v617 = vld [vmem:[%s299 + $0x8] sm:$0x1]
      %v618 = vld [vmem:[%s299 + $0x10] sm:$0xf]
      %v619 = vld [vmem:[%s299 + $0x14] sm:$0x1]
      %v620 = vld [vmem:[%s299 + $0x1c] sm:$0xf]
      %v621 = vld [vmem:[%s299 + $0x20] sm:$0x1]
      %v622 = vld [vmem:[%s299 + $0x28] sm:$0xf]
      %v623 = vld [vmem:[%s299 + $0x2c] sm:$0x1]
      %v624 = vld [vmem:[%s299 + $0x34] sm:$0xf]
      %v625 = vld [vmem:[%s299 + $0x38] sm:$0x1]
      %v626 = vld [vmem:[%s299 + $0x40] sm:$0xf]
      %v627 = vld [vmem:[%s299 + $0x44] sm:$0x1]
      %v628 = vld [vmem:[%s299 + $0x4c] sm:$0xf]
      %v629 = vld [vmem:[%s299 + $0x50] sm:$0x1]
      %v630 = vld [vmem:[%s299 + $0x58] sm:$0xf]
      %v631 = vld [vmem:[%s299 + $0x5c] sm:$0x1]
      %v633 = vshrl.u32 %v616, 16
      %v635 = vrot.slane %v633, 4
      %v636 = vshll.u32 %v616, 16
      %v638 = vrot.slane %v636, 5
      %v639 = vor.u32 %v635, %v638
      %v640 = vrot.slane %v639, 4
      %v642 = vshll.u32 %v617, 16
      %v644 = vrot.slane %v642, 5
      %v645 = vsel %vm420, %v640, %v644
      %v647 = vshrl.u32 %v618, 16
      %v649 = vrot.slane %v647, 4
      %v650 = vshll.u32 %v618, 16
      %v652 = vrot.slane %v650, 5
      %v653 = vor.u32 %v649, %v652
      %v654 = vrot.slane %v653, 4
      %v656 = vshll.u32 %v619, 16
      %v658 = vrot.slane %v656, 5
      %v659 = vsel %vm420, %v654, %v658
      %v661 = vshrl.u32 %v620, 16
      %v663 = vrot.slane %v661, 4
      %v664 = vshll.u32 %v620, 16
      %v666 = vrot.slane %v664, 5
      %v667 = vor.u32 %v663, %v666
      %v668 = vrot.slane %v667, 4
      %v670 = vshll.u32 %v621, 16
      %v672 = vrot.slane %v670, 5
      %v673 = vsel %vm420, %v668, %v672
      %v675 = vshrl.u32 %v622, 16
      %v677 = vrot.slane %v675, 4
      %v678 = vshll.u32 %v622, 16
      %v680 = vrot.slane %v678, 5
      %v681 = vor.u32 %v677, %v680
      %v682 = vrot.slane %v681, 4
      %v684 = vshll.u32 %v623, 16
      %v686 = vrot.slane %v684, 5
      %v687 = vsel %vm420, %v682, %v686
      %v689 = vshrl.u32 %v624, 16
      %v691 = vrot.slane %v689, 4
      %v692 = vshll.u32 %v624, 16
      %v694 = vrot.slane %v692, 5
      %v695 = vor.u32 %v691, %v694
      %v696 = vrot.slane %v695, 4
      %v698 = vshll.u32 %v625, 16
      %v700 = vrot.slane %v698, 5
      %v701 = vsel %vm420, %v696, %v700
      %v703 = vshrl.u32 %v626, 16
      %v705 = vrot.slane %v703, 4
      %v706 = vshll.u32 %v626, 16
      %v708 = vrot.slane %v706, 5
      %v709 = vor.u32 %v705, %v708
      %v710 = vrot.slane %v709, 4
      %v712 = vshll.u32 %v627, 16
      %v714 = vrot.slane %v712, 5
      %v715 = vsel %vm420, %v710, %v714
      %v717 = vshrl.u32 %v628, 16
      %v719 = vrot.slane %v717, 4
      %v720 = vshll.u32 %v628, 16
      %v722 = vrot.slane %v720, 5
      %v723 = vor.u32 %v719, %v722
      %v724 = vrot.slane %v723, 4
      %v726 = vshll.u32 %v629, 16
      %v728 = vrot.slane %v726, 5
      %v729 = vsel %vm420, %v724, %v728
      %v731 = vshrl.u32 %v630, 16
      %v733 = vrot.slane %v731, 4
      %v734 = vshll.u32 %v630, 16
      %v736 = vrot.slane %v734, 5
      %v737 = vor.u32 %v733, %v736
      %v738 = vrot.slane %v737, 4
      %v740 = vshll.u32 %v631, 16
      %v742 = vrot.slane %v740, 5
      %v743 = vsel %vm420, %v738, %v742
      %v744 = vld [vmem:[#allocation3] sm:$0xff]
      %v745 = vld [vmem:[#allocation3 + $0x8] sm:$0xff]
      %v746 = vld [vmem:[#allocation3 + $0x10] sm:$0xff]
      %v747 = vld [vmem:[#allocation3 + $0x18] sm:$0xff]
      %v748 = vld [vmem:[#allocation3 + $0x20] sm:$0xff]
      %v749 = vld [vmem:[#allocation3 + $0x28] sm:$0xff]
      %v750 = vld [vmem:[#allocation3 + $0x30] sm:$0xff]
      %v751 = vld [vmem:[#allocation3 + $0x38] sm:$0xff]
      %v752 = vld [vmem:[%s2 + $0xc] sm:$0xf]
      %v753 = vld [vmem:[%s2 + $0x10] sm:$0xf]
      %v754 = vunpack.c.l.b16 %v645
      %v755 = vunpack.c.l.b16 %v659
      %v756 = vunpack.c.l.b16 %v673
      %v757 = vunpack.c.l.b16 %v687
      %v758 = vunpack.c.l.b16 %v701
      %v759 = vunpack.c.l.b16 %v715
      %v760 = vunpack.c.l.b16 %v729
      %v761 = vunpack.c.l.b16 %v743
      %v762 = vpack.c.b16 %v755, %v754
      %v763 = vpack.c.b16 %v757, %v756
      %v764 = vpack.c.b16 %v759, %v758
      %v765 = vpack.c.b16 %v761, %v760
      %v768 = vunpack.c.l.b16 %v752
      %v769 = vunpack.c.l.b16 %v753
      %v770 = vpack.c.b16 %v769, %v768
      %v773 = vsel %vm344, %v762, 0
      %v776 = vsel %vm344, %v763, 0
      %v779 = vsel %vm344, %v764, 0
      %v782 = vsel %vm344, %v765, 0
      %784 = vmatpush.bf16.msra.mxu0 0
      %785 = vmatpush.bf16.msra.mxu0 0
      %786 = vmatpush.bf16.msra.mxu0 0
      %787 = vmatpush.bf16.msra.mxu0 0
      %788 = vmatpush.bf16.msra.mxu0 0
      %789 = vmatpush.bf16.msra.mxu0 0
      %790 = vmatpush.bf16.msra.mxu0 0
      %791 = vmatpush.bf16.msra.mxu0 %v770
      %792 = vmatmul.bf16.gmra.mxu0 %v773
      %v793 = vpop.f32.mrf.mxu0
      %v794 = vadd.f32 0.0, %v793
      %v795 = vpop.f32.mrf.mxu0
      %v796 = vadd.f32 0.0, %v795
      %797 = vmatmul.bf16.gmra.mxu0 %v776
      %v798 = vpop.f32.mrf.mxu0
      %v799 = vadd.f32 0.0, %v798
      %v800 = vpop.f32.mrf.mxu0
      %v801 = vadd.f32 0.0, %v800
      %802 = vmatmul.bf16.gmra.mxu0 %v779
      %v803 = vpop.f32.mrf.mxu0
      %v804 = vadd.f32 0.0, %v803
      %v805 = vpop.f32.mrf.mxu0
      %v806 = vadd.f32 0.0, %v805
      %807 = vmatmul.bf16.gmra.mxu0 %v782
      %v808 = vpop.f32.mrf.mxu0
      %v809 = vadd.f32 0.0, %v808
      %v810 = vpop.f32.mrf.mxu0
      %v811 = vadd.f32 0.0, %v810
      %812 = vdwg.mxu0
      %v813 = vadd.f32 %v744, %v794
      %v814 = vadd.f32 %v745, %v796
      %v815 = vadd.f32 %v746, %v799
      %v816 = vadd.f32 %v747, %v801
      %v817 = vadd.f32 %v748, %v804
      %v818 = vadd.f32 %v749, %v806
      %v819 = vadd.f32 %v750, %v809
      %v820 = vadd.f32 %v751, %v811
      %821 = vst [vmem:[#allocation3] sm:$0xff] %v813
      %822 = vst [vmem:[#allocation3 + $0x8] sm:$0xff] %v814
      %823 = vst [vmem:[#allocation3 + $0x10] sm:$0xff] %v815
      %824 = vst [vmem:[#allocation3 + $0x18] sm:$0xff] %v816
      %825 = vst [vmem:[#allocation3 + $0x20] sm:$0xff] %v817
      %826 = vst [vmem:[#allocation3 + $0x28] sm:$0xff] %v818
      %827 = vst [vmem:[#allocation3 + $0x30] sm:$0xff] %v819
      %828 = vst [vmem:[#allocation3 + $0x38] sm:$0xff] %v820
      %v829 = vld [vmem:[%s299 + $0x4] sm:$0xe]
      %v830 = vld [vmem:[%s299 + $0x8] sm:$0x1]
      %v831 = vld [vmem:[%s299 + $0x10] sm:$0xe]
      %v832 = vld [vmem:[%s299 + $0x14] sm:$0x1]
      %v833 = vld [vmem:[%s299 + $0x1c] sm:$0xe]
      %v834 = vld [vmem:[%s299 + $0x20] sm:$0x1]
      %v835 = vld [vmem:[%s299 + $0x28] sm:$0xe]
      %v836 = vld [vmem:[%s299 + $0x2c] sm:$0x1]
      %v837 = vld [vmem:[%s299 + $0x34] sm:$0xe]
      %v838 = vld [vmem:[%s299 + $0x38] sm:$0x1]
      %v839 = vld [vmem:[%s299 + $0x40] sm:$0xe]
      %v840 = vld [vmem:[%s299 + $0x44] sm:$0x1]
      %v841 = vld [vmem:[%s299 + $0x4c] sm:$0xe]
      %v842 = vld [vmem:[%s299 + $0x50] sm:$0x1]
      %v843 = vld [vmem:[%s299 + $0x58] sm:$0xe]
      %v844 = vld [vmem:[%s299 + $0x5c] sm:$0x1]
      %vm861 = vcmask 1042432
      %vm862 = vcmask 1046532
      %vm863 = vmor %vm861, %vm862
      %v864 = vrot.slane %v829, 5
      %v865 = vrot.slane %v864, 4
      %v866 = vrot.slane %v830, 5
      %v867 = vsel %vm863, %v865, %v866
      %v868 = vrot.slane %v831, 5
      %v869 = vrot.slane %v868, 4
      %v870 = vrot.slane %v832, 5
      %v871 = vsel %vm863, %v869, %v870
      %v872 = vrot.slane %v833, 5
      %v873 = vrot.slane %v872, 4
      %v874 = vrot.slane %v834, 5
      %v875 = vsel %vm863, %v873, %v874
      %v876 = vrot.slane %v835, 5
      %v877 = vrot.slane %v876, 4
      %v878 = vrot.slane %v836, 5
      %v879 = vsel %vm863, %v877, %v878
      %v880 = vrot.slane %v837, 5
      %v881 = vrot.slane %v880, 4
      %v882 = vrot.slane %v838, 5
      %v883 = vsel %vm863, %v881, %v882
      %v884 = vrot.slane %v839, 5
      %v885 = vrot.slane %v884, 4
      %v886 = vrot.slane %v840, 5
      %v887 = vsel %vm863, %v885, %v886
      %v888 = vrot.slane %v841, 5
      %v889 = vrot.slane %v888, 4
      %v890 = vrot.slane %v842, 5
      %v891 = vsel %vm863, %v889, %v890
      %v892 = vrot.slane %v843, 5
      %v893 = vrot.slane %v892, 4
      %v894 = vrot.slane %v844, 5
      %v895 = vsel %vm863, %v893, %v894
      %v896 = vld [vmem:[#allocation3] sm:$0xff]
      %v897 = vld [vmem:[#allocation3 + $0x8] sm:$0xff]
      %v898 = vld [vmem:[#allocation3 + $0x10] sm:$0xff]
      %v899 = vld [vmem:[#allocation3 + $0x18] sm:$0xff]
      %v900 = vld [vmem:[#allocation3 + $0x20] sm:$0xff]
      %v901 = vld [vmem:[#allocation3 + $0x28] sm:$0xff]
      %v902 = vld [vmem:[#allocation3 + $0x30] sm:$0xff]
      %v903 = vld [vmem:[#allocation3 + $0x38] sm:$0xff]
      %v904 = vld [vmem:[%s2 + $0x14] sm:$0xf]
      %v905 = vunpack.c.l.b16 %v867
      %v906 = vunpack.c.l.b16 %v871
      %v907 = vunpack.c.l.b16 %v875
      %v908 = vunpack.c.l.b16 %v879
      %v909 = vunpack.c.l.b16 %v883
      %v910 = vunpack.c.l.b16 %v887
      %v911 = vunpack.c.l.b16 %v891
      %v912 = vunpack.c.l.b16 %v895
      %v913 = vpack.c.b16 %v906, %v905
      %v914 = vpack.c.b16 %v908, %v907
      %v915 = vpack.c.b16 %v910, %v909
      %v916 = vpack.c.b16 %v912, %v911
      %v918 = vsel %vm554, %v913, 0
      %v921 = vsel %vm554, %v914, 0
      %v924 = vsel %vm554, %v915, 0
      %v927 = vsel %vm554, %v916, 0
      %v930 = vsel %vm567, %v904, 0
      %932 = vmatpush.bf16.msra.mxu0 0
      %933 = vmatpush.bf16.msra.mxu0 0
      %934 = vmatpush.bf16.msra.mxu0 0
      %935 = vmatpush.bf16.msra.mxu0 0
      %936 = vmatpush.bf16.msra.mxu0 0
      %937 = vmatpush.bf16.msra.mxu0 0
      %938 = vmatpush.bf16.msra.mxu0 0
      %939 = vmatpush.bf16.msra.mxu0 %v930
      %940 = vmatmul.bf16.gmra.mxu0 %v918
      %v941 = vpop.f32.mrf.mxu0
      %v942 = vadd.f32 0.0, %v941
      %v943 = vpop.f32.mrf.mxu0
      %v944 = vadd.f32 0.0, %v943
      %945 = vmatmul.bf16.gmra.mxu0 %v921
      %v946 = vpop.f32.mrf.mxu0
      %v947 = vadd.f32 0.0, %v946
      %v948 = vpop.f32.mrf.mxu0
      %v949 = vadd.f32 0.0, %v948
      %950 = vmatmul.bf16.gmra.mxu0 %v924
      %v951 = vpop.f32.mrf.mxu0
      %v952 = vadd.f32 0.0, %v951
      %v953 = vpop.f32.mrf.mxu0
      %v954 = vadd.f32 0.0, %v953
      %955 = vmatmul.bf16.gmra.mxu0 %v927
      %v956 = vpop.f32.mrf.mxu0
      %v957 = vadd.f32 0.0, %v956
      %v958 = vpop.f32.mrf.mxu0
      %v959 = vadd.f32 0.0, %v958
      %960 = vdwg.mxu0
      %v961 = vadd.f32 %v896, %v942
      %v962 = vadd.f32 %v897, %v944
      %v963 = vadd.f32 %v898, %v947
      %v964 = vadd.f32 %v899, %v949
      %v965 = vadd.f32 %v900, %v952
      %v966 = vadd.f32 %v901, %v954
      %v967 = vadd.f32 %v902, %v957
      %v968 = vadd.f32 %v903, %v959
      %969 = vst [vmem:[#allocation3] sm:$0xff] %v961
      %970 = vst [vmem:[#allocation3 + $0x8] sm:$0xff] %v962
      %971 = vst [vmem:[#allocation3 + $0x10] sm:$0xff] %v963
      %972 = vst [vmem:[#allocation3 + $0x18] sm:$0xff] %v964
      %973 = vst [vmem:[#allocation3 + $0x20] sm:$0xff] %v965
      %974 = vst [vmem:[#allocation3 + $0x28] sm:$0xff] %v966
      %975 = vst [vmem:[#allocation3 + $0x30] sm:$0xff] %v967
      %976 = vst [vmem:[#allocation3 + $0x38] sm:$0xff] %v968
      %s977 = sadd.s32 0, 1
      %s978 = smul.u32 %s977, 3
      %s979 = smul.addr %s978, 4
      %s980 = scalar_lea.vmem %s207, %s979
      %v981 = vld [vmem:[%s980] sm:$0xf]
      %v982 = vld [vmem:[%s980 + $0xc] sm:$0xf]
      %v983 = vld [vmem:[%s980 + $0x18] sm:$0xf]
      %v984 = vld [vmem:[%s980 + $0x24] sm:$0xf]
      %v985 = vld [vmem:[%s980 + $0x30] sm:$0xf]
      %v986 = vld [vmem:[%s980 + $0x3c] sm:$0xf]
      %v987 = vld [vmem:[%s980 + $0x48] sm:$0xf]
      %v988 = vld [vmem:[%s980 + $0x54] sm:$0xf]
      %v989 = vld [vmem:[#allocation3] sm:$0xff]
      %v990 = vld [vmem:[#allocation3 + $0x8] sm:$0xff]
      %v991 = vld [vmem:[#allocation3 + $0x10] sm:$0xff]
      %v992 = vld [vmem:[#allocation3 + $0x18] sm:$0xff]
      %v993 = vld [vmem:[#allocation3 + $0x20] sm:$0xff]
      %v994 = vld [vmem:[#allocation3 + $0x28] sm:$0xff]
      %v995 = vld [vmem:[#allocation3 + $0x30] sm:$0xff]
      %v996 = vld [vmem:[#allocation3 + $0x38] sm:$0xff]
      %v997 = vld [vmem:[%s2 + $0x18] sm:$0xf]
      %v998 = vld [vmem:[%s2 + $0x1c] sm:$0xf]
      %v1007 = vunpack.c.l.b16 %v981
      %v1008 = vunpack.c.l.b16 %v982
      %v1009 = vunpack.c.l.b16 %v983
      %v1010 = vunpack.c.l.b16 %v984
      %v1011 = vunpack.c.l.b16 %v985
      %v1012 = vunpack.c.l.b16 %v986
      %v1013 = vunpack.c.l.b16 %v987
      %v1014 = vunpack.c.l.b16 %v988
      %v1015 = vpack.c.b16 %v1008, %v1007
      %v1016 = vpack.c.b16 %v1010, %v1009
      %v1017 = vpack.c.b16 %v1012, %v1011
      %v1018 = vpack.c.b16 %v1014, %v1013
      %v1021 = vunpack.c.l.b16 %v997
      %v1022 = vunpack.c.l.b16 %v998
      %v1023 = vpack.c.b16 %v1022, %v1021
      %v1026 = vsel %vm344, %v1015, 0
      %v1029 = vsel %vm344, %v1016, 0
      %v1032 = vsel %vm344, %v1017, 0
      %v1035 = vsel %vm344, %v1018, 0
      %1037 = vmatpush.bf16.msra.mxu0 0
      %1038 = vmatpush.bf16.msra.mxu0 0
      %1039 = vmatpush.bf16.msra.mxu0 0
      %1040 = vmatpush.bf16.msra.mxu0 0
      %1041 = vmatpush.bf16.msra.mxu0 0
      %1042 = vmatpush.bf16.msra.mxu0 0
      %1043 = vmatpush.bf16.msra.mxu0 0
      %1044 = vmatpush.bf16.msra.mxu0 %v1023
      %1045 = vmatmul.bf16.gmra.mxu0 %v1026
      %v1046 = vpop.f32.mrf.mxu0
      %v1047 = vadd.f32 0.0, %v1046
      %v1048 = vpop.f32.mrf.mxu0
      %v1049 = vadd.f32 0.0, %v1048
      %1050 = vmatmul.bf16.gmra.mxu0 %v1029
      %v1051 = vpop.f32.mrf.mxu0
      %v1052 = vadd.f32 0.0, %v1051
      %v1053 = vpop.f32.mrf.mxu0
      %v1054 = vadd.f32 0.0, %v1053
      %1055 = vmatmul.bf16.gmra.mxu0 %v1032
      %v1056 = vpop.f32.mrf.mxu0
      %v1057 = vadd.f32 0.0, %v1056
      %v1058 = vpop.f32.mrf.mxu0
      %v1059 = vadd.f32 0.0, %v1058
      %1060 = vmatmul.bf16.gmra.mxu0 %v1035
      %v1061 = vpop.f32.mrf.mxu0
      %v1062 = vadd.f32 0.0, %v1061
      %v1063 = vpop.f32.mrf.mxu0
      %v1064 = vadd.f32 0.0, %v1063
      %1065 = vdwg.mxu0
      %v1066 = vadd.f32 %v989, %v1047
      %v1067 = vadd.f32 %v990, %v1049
      %v1068 = vadd.f32 %v991, %v1052
      %v1069 = vadd.f32 %v992, %v1054
      %v1070 = vadd.f32 %v993, %v1057
      %v1071 = vadd.f32 %v994, %v1059
      %v1072 = vadd.f32 %v995, %v1062
      %v1073 = vadd.f32 %v996, %v1064
      %1074 = vst [vmem:[#allocation3] sm:$0xff] %v1066
      %1075 = vst [vmem:[#allocation3 + $0x8] sm:$0xff] %v1067
      %1076 = vst [vmem:[#allocation3 + $0x10] sm:$0xff] %v1068
      %1077 = vst [vmem:[#allocation3 + $0x18] sm:$0xff] %v1069
      %1078 = vst [vmem:[#allocation3 + $0x20] sm:$0xff] %v1070
      %1079 = vst [vmem:[#allocation3 + $0x28] sm:$0xff] %v1071
      %1080 = vst [vmem:[#allocation3 + $0x30] sm:$0xff] %v1072
      %1081 = vst [vmem:[#allocation3 + $0x38] sm:$0xff] %v1073
      %v1082 = vld [vmem:[%s980] sm:$0xf]
      %v1083 = vld [vmem:[%s980 + $0x4] sm:$0x1]
      %v1084 = vld [vmem:[%s980 + $0xc] sm:$0xf]
      %v1085 = vld [vmem:[%s980 + $0x10] sm:$0x1]
      %v1086 = vld [vmem:[%s980 + $0x18] sm:$0xf]
      %v1087 = vld [vmem:[%s980 + $0x1c] sm:$0x1]
      %v1088 = vld [vmem:[%s980 + $0x24] sm:$0xf]
      %v1089 = vld [vmem:[%s980 + $0x28] sm:$0x1]
      %v1090 = vld [vmem:[%s980 + $0x30] sm:$0xf]
      %v1091 = vld [vmem:[%s980 + $0x34] sm:$0x1]
      %v1092 = vld [vmem:[%s980 + $0x3c] sm:$0xf]
      %v1093 = vld [vmem:[%s980 + $0x40] sm:$0x1]
      %v1094 = vld [vmem:[%s980 + $0x48] sm:$0xf]
      %v1095 = vld [vmem:[%s980 + $0x4c] sm:$0x1]
      %v1096 = vld [vmem:[%s980 + $0x54] sm:$0xf]
      %v1097 = vld [vmem:[%s980 + $0x58] sm:$0x1]
      %v1099 = vshrl.u32 %v1082, 16
      %v1101 = vrot.slane %v1099, 4
      %v1102 = vshll.u32 %v1082, 16
      %v1104 = vrot.slane %v1102, 5
      %v1105 = vor.u32 %v1101, %v1104
      %v1106 = vrot.slane %v1105, 4
      %v1108 = vshll.u32 %v1083, 16
      %v1110 = vrot.slane %v1108, 5
      %v1111 = vsel %vm420, %v1106, %v1110
      %v1113 = vshrl.u32 %v1084, 16
      %v1115 = vrot.slane %v1113, 4
      %v1116 = vshll.u32 %v1084, 16
      %v1118 = vrot.slane %v1116, 5
      %v1119 = vor.u32 %v1115, %v1118
      %v1120 = vrot.slane %v1119, 4
      %v1122 = vshll.u32 %v1085, 16
      %v1124 = vrot.slane %v1122, 5
      %v1125 = vsel %vm420, %v1120, %v1124
      %v1127 = vshrl.u32 %v1086, 16
      %v1129 = vrot.slane %v1127, 4
      %v1130 = vshll.u32 %v1086, 16
      %v1132 = vrot.slane %v1130, 5
      %v1133 = vor.u32 %v1129, %v1132
      %v1134 = vrot.slane %v1133, 4
      %v1136 = vshll.u32 %v1087, 16
      %v1138 = vrot.slane %v1136, 5
      %v1139 = vsel %vm420, %v1134, %v1138
      %v1141 = vshrl.u32 %v1088, 16
      %v1143 = vrot.slane %v1141, 4
      %v1144 = vshll.u32 %v1088, 16
      %v1146 = vrot.slane %v1144, 5
      %v1147 = vor.u32 %v1143, %v1146
      %v1148 = vrot.slane %v1147, 4
      %v1150 = vshll.u32 %v1089, 16
      %v1152 = vrot.slane %v1150, 5
      %v1153 = vsel %vm420, %v1148, %v1152
      %v1155 = vshrl.u32 %v1090, 16
      %v1157 = vrot.slane %v1155, 4
      %v1158 = vshll.u32 %v1090, 16
      %v1160 = vrot.slane %v1158, 5
      %v1161 = vor.u32 %v1157, %v1160
      %v1162 = vrot.slane %v1161, 4
      %v1164 = vshll.u32 %v1091, 16
      %v1166 = vrot.slane %v1164, 5
      %v1167 = vsel %vm420, %v1162, %v1166
      %v1169 = vshrl.u32 %v1092, 16
      %v1171 = vrot.slane %v1169, 4
      %v1172 = vshll.u32 %v1092, 16
      %v1174 = vrot.slane %v1172, 5
      %v1175 = vor.u32 %v1171, %v1174
      %v1176 = vrot.slane %v1175, 4
      %v1178 = vshll.u32 %v1093, 16
      %v1180 = vrot.slane %v1178, 5
      %v1181 = vsel %vm420, %v1176, %v1180
      %v1183 = vshrl.u32 %v1094, 16
      %v1185 = vrot.slane %v1183, 4
      %v1186 = vshll.u32 %v1094, 16
      %v1188 = vrot.slane %v1186, 5
      %v1189 = vor.u32 %v1185, %v1188
      %v1190 = vrot.slane %v1189, 4
      %v1192 = vshll.u32 %v1095, 16
      %v1194 = vrot.slane %v1192, 5
      %v1195 = vsel %vm420, %v1190, %v1194
      %v1197 = vshrl.u32 %v1096, 16
      %v1199 = vrot.slane %v1197, 4
      %v1200 = vshll.u32 %v1096, 16
      %v1202 = vrot.slane %v1200, 5
      %v1203 = vor.u32 %v1199, %v1202
      %v1204 = vrot.slane %v1203, 4
      %v1206 = vshll.u32 %v1097, 16
      %v1208 = vrot.slane %v1206, 5
      %v1209 = vsel %vm420, %v1204, %v1208
      %v1210 = vld [vmem:[#allocation3] sm:$0xff]
      %v1211 = vld [vmem:[#allocation3 + $0x8] sm:$0xff]
      %v1212 = vld [vmem:[#allocation3 + $0x10] sm:$0xff]
      %v1213 = vld [vmem:[#allocation3 + $0x18] sm:$0xff]
      %v1214 = vld [vmem:[#allocation3 + $0x20] sm:$0xff]
      %v1215 = vld [vmem:[#allocation3 + $0x28] sm:$0xff]
      %v1216 = vld [vmem:[#allocation3 + $0x30] sm:$0xff]
      %v1217 = vld [vmem:[#allocation3 + $0x38] sm:$0xff]
      %v1218 = vld [vmem:[%s2 + $0x20] sm:$0xf]
      %v1219 = vunpack.c.l.b16 %v1111
      %v1220 = vunpack.c.l.b16 %v1125
      %v1221 = vunpack.c.l.b16 %v1139
      %v1222 = vunpack.c.l.b16 %v1153
      %v1223 = vunpack.c.l.b16 %v1167
      %v1224 = vunpack.c.l.b16 %v1181
      %v1225 = vunpack.c.l.b16 %v1195
      %v1226 = vunpack.c.l.b16 %v1209
      %v1227 = vpack.c.b16 %v1220, %v1219
      %v1228 = vpack.c.b16 %v1222, %v1221
      %v1229 = vpack.c.b16 %v1224, %v1223
      %v1230 = vpack.c.b16 %v1226, %v1225
      %v1232 = vsel %vm554, %v1227, 0
      %v1235 = vsel %vm554, %v1228, 0
      %v1238 = vsel %vm554, %v1229, 0
      %v1241 = vsel %vm554, %v1230, 0
      %v1244 = vsel %vm567, %v1218, 0
      %1246 = vmatpush.bf16.msra.mxu0 0
      %1247 = vmatpush.bf16.msra.mxu0 0
      %1248 = vmatpush.bf16.msra.mxu0 0
      %1249 = vmatpush.bf16.msra.mxu0 0
      %1250 = vmatpush.bf16.msra.mxu0 0
      %1251 = vmatpush.bf16.msra.mxu0 0
      %1252 = vmatpush.bf16.msra.mxu0 0
      %1253 = vmatpush.bf16.msra.mxu0 %v1244
      %1254 = vmatmul.bf16.gmra.mxu0 %v1232
      %v1255 = vpop.f32.mrf.mxu0
      %v1256 = vadd.f32 0.0, %v1255
      %v1257 = vpop.f32.mrf.mxu0
      %v1258 = vadd.f32 0.0, %v1257
      %1259 = vmatmul.bf16.gmra.mxu0 %v1235
      %v1260 = vpop.f32.mrf.mxu0
      %v1261 = vadd.f32 0.0, %v1260
      %v1262 = vpop.f32.mrf.mxu0
      %v1263 = vadd.f32 0.0, %v1262
      %1264 = vmatmul.bf16.gmra.mxu0 %v1238
      %v1265 = vpop.f32.mrf.mxu0
      %v1266 = vadd.f32 0.0, %v1265
      %v1267 = vpop.f32.mrf.mxu0
      %v1268 = vadd.f32 0.0, %v1267
      %1269 = vmatmul.bf16.gmra.mxu0 %v1241
      %v1270 = vpop.f32.mrf.mxu0
      %v1271 = vadd.f32 0.0, %v1270
      %v1272 = vpop.f32.mrf.mxu0
      %v1273 = vadd.f32 0.0, %v1272
      %1274 = vdwg.mxu0
      %v1275 = vadd.f32 %v1210, %v1256
      %v1276 = vadd.f32 %v1211, %v1258
      %v1277 = vadd.f32 %v1212, %v1261
      %v1278 = vadd.f32 %v1213, %v1263
      %v1279 = vadd.f32 %v1214, %v1266
      %v1280 = vadd.f32 %v1215, %v1268
      %v1281 = vadd.f32 %v1216, %v1271
      %v1282 = vadd.f32 %v1217, %v1273
      %1283 = vst [vmem:[#allocation3] sm:$0xff] %v1275
      %1284 = vst [vmem:[#allocation3 + $0x8] sm:$0xff] %v1276
      %1285 = vst [vmem:[#allocation3 + $0x10] sm:$0xff] %v1277
      %1286 = vst [vmem:[#allocation3 + $0x18] sm:$0xff] %v1278
      %1287 = vst [vmem:[#allocation3 + $0x20] sm:$0xff] %v1279
      %1288 = vst [vmem:[#allocation3 + $0x28] sm:$0xff] %v1280
      %1289 = vst [vmem:[#allocation3 + $0x30] sm:$0xff] %v1281
      %1290 = vst [vmem:[#allocation3 + $0x38] sm:$0xff] %v1282
      %v1291 = vld [vmem:[#allocation3] sm:$0xff]
      %v1292 = vld [vmem:[#allocation3 + $0x8] sm:$0xff]
      %v1293 = vld [vmem:[#allocation3 + $0x10] sm:$0xff]
      %v1294 = vld [vmem:[#allocation3 + $0x18] sm:$0xff]
      %v1295 = vld [vmem:[#allocation3 + $0x20] sm:$0xff]
      %v1296 = vld [vmem:[#allocation3 + $0x28] sm:$0xff]
      %v1297 = vld [vmem:[#allocation3 + $0x30] sm:$0xff]
      %v1298 = vld [vmem:[#allocation3 + $0x38] sm:$0xff]
      %v1299 = vmax.f32 %v1291, 0.0
      %v1300 = vmax.f32 %v1292, 0.0
      %v1301 = vmax.f32 %v1293, 0.0
      %v1302 = vmax.f32 %v1294, 0.0
      %v1303 = vmax.f32 %v1295, 0.0
      %v1304 = vmax.f32 %v1296, 0.0
      %v1305 = vmax.f32 %v1297, 0.0
      %v1306 = vmax.f32 %v1298, 0.0
      %v1307 = vpack.c.bf16 %v1299, %v1299
      %v1308 = vpack.c.bf16 %v1300, %v1300
      %v1309 = vpack.c.bf16 %v1301, %v1301
      %v1310 = vpack.c.bf16 %v1302, %v1302
      %v1311 = vpack.c.bf16 %v1303, %v1303
      %v1312 = vpack.c.bf16 %v1304, %v1304
      %v1313 = vpack.c.bf16 %v1305, %v1305
      %v1314 = vpack.c.bf16 %v1306, %v1306
      %v1316 = vshrl.u32 %v1307, 16
      %v1318 = vrot.slane %v1316, 7
      %v1319 = vshll.u32 %v1307, 16
      %v1321 = vor.u32 %v1318, %v1319
      %v1322 = vrot.slane %v1318, 4
      %v1324 = vshrl.u32 %v1308, 16
      %v1326 = vrot.slane %v1324, 7
      %v1327 = vshll.u32 %v1308, 16
      %v1329 = vor.u32 %v1326, %v1327
      %v1330 = vrot.slane %v1326, 4
      %v1332 = vshrl.u32 %v1309, 16
      %v1334 = vrot.slane %v1332, 7
      %v1335 = vshll.u32 %v1309, 16
      %v1337 = vor.u32 %v1334, %v1335
      %v1338 = vrot.slane %v1334, 4
      %v1340 = vshrl.u32 %v1310, 16
      %v1342 = vrot.slane %v1340, 7
      %v1343 = vshll.u32 %v1310, 16
      %v1345 = vor.u32 %v1342, %v1343
      %v1346 = vrot.slane %v1342, 4
      %v1348 = vshrl.u32 %v1311, 16
      %v1350 = vrot.slane %v1348, 7
      %v1351 = vshll.u32 %v1311, 16
      %v1353 = vor.u32 %v1350, %v1351
      %v1354 = vrot.slane %v1350, 4
      %v1356 = vshrl.u32 %v1312, 16
      %v1358 = vrot.slane %v1356, 7
      %v1359 = vshll.u32 %v1312, 16
      %v1361 = vor.u32 %v1358, %v1359
      %v1362 = vrot.slane %v1358, 4
      %v1364 = vshrl.u32 %v1313, 16
      %v1366 = vrot.slane %v1364, 7
      %v1367 = vshll.u32 %v1313, 16
      %v1369 = vor.u32 %v1366, %v1367
      %v1370 = vrot.slane %v1366, 4
      %v1372 = vshrl.u32 %v1314, 16
      %v1374 = vrot.slane %v1372, 7
      %v1375 = vshll.u32 %v1314, 16
      %v1377 = vor.u32 %v1374, %v1375
      %v1378 = vrot.slane %v1374, 4
      %s1395 = smul.u32 %s977, 2
      %s1396 = smul.addr %s1395, 4
      %s1397 = scalar_lea.vmem [#allocation2], %s1396
      %vm1398 = vcmask 1043456
      %vm1399 = vmand %vm1398, %vm257
      %v1400 = vld [vmem:[%s1397] sm:$0xf]
      %v1401 = vsel %vm1399, %v1321, %v1400
      %1402 = vst [vmem:[%s1397] sm:$0xf] %v1401
      %v1403 = vld [vmem:[%s1397 + $0x4] sm:$0x1]
      %v1404 = vsel %vm226, %v1322, %v1403
      %1405 = vst [vmem:[%s1397 + $0x4] sm:$0x1] %v1404
      %v1406 = vld [vmem:[%s1397 + $0x8] sm:$0xf]
      %v1407 = vsel %vm1399, %v1329, %v1406
      %1408 = vst [vmem:[%s1397 + $0x8] sm:$0xf] %v1407
      %v1409 = vld [vmem:[%s1397 + $0xc] sm:$0x1]
      %v1410 = vsel %vm226, %v1330, %v1409
      %1411 = vst [vmem:[%s1397 + $0xc] sm:$0x1] %v1410
      %v1412 = vld [vmem:[%s1397 + $0x10] sm:$0xf]
      %v1413 = vsel %vm1399, %v1337, %v1412
      %1414 = vst [vmem:[%s1397 + $0x10] sm:$0xf] %v1413
      %v1415 = vld [vmem:[%s1397 + $0x14] sm:$0x1]
      %v1416 = vsel %vm226, %v1338, %v1415
      %1417 = vst [vmem:[%s1397 + $0x14] sm:$0x1] %v1416
      %v1418 = vld [vmem:[%s1397 + $0x18] sm:$0xf]
      %v1419 = vsel %vm1399, %v1345, %v1418
      %1420 = vst [vmem:[%s1397 + $0x18] sm:$0xf] %v1419
      %v1421 = vld [vmem:[%s1397 + $0x1c] sm:$0x1]
      %v1422 = vsel %vm226, %v1346, %v1421
      %1423 = vst [vmem:[%s1397 + $0x1c] sm:$0x1] %v1422
      %v1424 = vld [vmem:[%s1397 + $0x20] sm:$0xf]
      %v1425 = vsel %vm1399, %v1353, %v1424
      %1426 = vst [vmem:[%s1397 + $0x20] sm:$0xf] %v1425
      %v1427 = vld [vmem:[%s1397 + $0x24] sm:$0x1]
      %v1428 = vsel %vm226, %v1354, %v1427
      %1429 = vst [vmem:[%s1397 + $0x24] sm:$0x1] %v1428
      %v1430 = vld [vmem:[%s1397 + $0x28] sm:$0xf]
      %v1431 = vsel %vm1399, %v1361, %v1430
      %1432 = vst [vmem:[%s1397 + $0x28] sm:$0xf] %v1431
      %v1433 = vld [vmem:[%s1397 + $0x2c] sm:$0x1]
      %v1434 = vsel %vm226, %v1362, %v1433
      %1435 = vst [vmem:[%s1397 + $0x2c] sm:$0x1] %v1434
      %v1436 = vld [vmem:[%s1397 + $0x30] sm:$0xf]
      %v1437 = vsel %vm1399, %v1369, %v1436
      %1438 = vst [vmem:[%s1397 + $0x30] sm:$0xf] %v1437
      %v1439 = vld [vmem:[%s1397 + $0x34] sm:$0x1]
      %v1440 = vsel %vm226, %v1370, %v1439
      %1441 = vst [vmem:[%s1397 + $0x34] sm:$0x1] %v1440
      %v1442 = vld [vmem:[%s1397 + $0x38] sm:$0xf]
      %v1443 = vsel %vm1399, %v1377, %v1442
      %1444 = vst [vmem:[%s1397 + $0x38] sm:$0xf] %v1443
      %v1445 = vld [vmem:[%s1397 + $0x3c] sm:$0x1]
      %v1446 = vsel %vm226, %v1378, %v1445
      %1447 = vst [vmem:[%s1397 + $0x3c] sm:$0x1] %v1446
      %v1448 = vld [vmem:[%s212] sm:$0xf]
      %v1449 = vld [vmem:[%s212 + $0x4] sm:$0xf]
      %v1450 = vld [vmem:[%s212 + $0x8] sm:$0xf]
      %v1451 = vld [vmem:[%s212 + $0xc] sm:$0xf]
      %v1452 = vld [vmem:[%s212 + $0x10] sm:$0xf]
      %v1453 = vld [vmem:[%s212 + $0x14] sm:$0xf]
      %v1454 = vld [vmem:[%s212 + $0x18] sm:$0xf]
      %v1455 = vld [vmem:[%s212 + $0x1c] sm:$0xf]
      %v1457 = vshrl.u32 %v1448, 16
      %v1459 = vrot.slane %v1457, 7
      %v1460 = vshll.u32 %v1448, 16
      %v1462 = vor.u32 %v1459, %v1460
      %v1463 = vrot.slane %v1459, 4
      %v1465 = vshrl.u32 %v1449, 16
      %v1467 = vrot.slane %v1465, 7
      %v1468 = vshll.u32 %v1449, 16
      %v1470 = vor.u32 %v1467, %v1468
      %v1471 = vrot.slane %v1467, 4
      %v1473 = vshrl.u32 %v1450, 16
      %v1475 = vrot.slane %v1473, 7
      %v1476 = vshll.u32 %v1450, 16
      %v1478 = vor.u32 %v1475, %v1476
      %v1479 = vrot.slane %v1475, 4
      %v1481 = vshrl.u32 %v1451, 16
      %v1483 = vrot.slane %v1481, 7
      %v1484 = vshll.u32 %v1451, 16
      %v1486 = vor.u32 %v1483, %v1484
      %v1487 = vrot.slane %v1483, 4
      %v1489 = vshrl.u32 %v1452, 16
      %v1491 = vrot.slane %v1489, 7
      %v1492 = vshll.u32 %v1452, 16
      %v1494 = vor.u32 %v1491, %v1492
      %v1495 = vrot.slane %v1491, 4
      %v1497 = vshrl.u32 %v1453, 16
      %v1499 = vrot.slane %v1497, 7
      %v1500 = vshll.u32 %v1453, 16
      %v1502 = vor.u32 %v1499, %v1500
      %v1503 = vrot.slane %v1499, 4
      %v1505 = vshrl.u32 %v1454, 16
      %v1507 = vrot.slane %v1505, 7
      %v1508 = vshll.u32 %v1454, 16
      %v1510 = vor.u32 %v1507, %v1508
      %v1511 = vrot.slane %v1507, 4
      %v1513 = vshrl.u32 %v1455, 16
      %v1515 = vrot.slane %v1513, 7
      %v1516 = vshll.u32 %v1455, 16
      %v1518 = vor.u32 %v1515, %v1516
      %v1519 = vrot.slane %v1515, 4
      %vm1536 = vcmask 60416
      %vm1537 = vmand %vm1536, %vm257
      %v1538 = vld [vmem:[%s1397] sm:$0xf]
      %v1539 = vsel %vm1537, %v1462, %v1538
      %1540 = vst [vmem:[%s1397] sm:$0xf] %v1539
      %vm1541 = vcmask 57344
      %vm1542 = vmand %vm1541, %vm225
      %v1543 = vld [vmem:[%s1397 + $0x4] sm:$0x1]
      %v1544 = vsel %vm1542, %v1463, %v1543
      %1545 = vst [vmem:[%s1397 + $0x4] sm:$0x1] %v1544
      %v1546 = vld [vmem:[%s1397 + $0x8] sm:$0xf]
      %v1547 = vsel %vm1537, %v1470, %v1546
      %1548 = vst [vmem:[%s1397 + $0x8] sm:$0xf] %v1547
      %v1549 = vld [vmem:[%s1397 + $0xc] sm:$0x1]
      %v1550 = vsel %vm1542, %v1471, %v1549
      %1551 = vst [vmem:[%s1397 + $0xc] sm:$0x1] %v1550
      %v1552 = vld [vmem:[%s1397 + $0x10] sm:$0xf]
      %v1553 = vsel %vm1537, %v1478, %v1552
      %1554 = vst [vmem:[%s1397 + $0x10] sm:$0xf] %v1553
      %v1555 = vld [vmem:[%s1397 + $0x14] sm:$0x1]
      %v1556 = vsel %vm1542, %v1479, %v1555
      %1557 = vst [vmem:[%s1397 + $0x14] sm:$0x1] %v1556
      %v1558 = vld [vmem:[%s1397 + $0x18] sm:$0xf]
      %v1559 = vsel %vm1537, %v1486, %v1558
      %1560 = vst [vmem:[%s1397 + $0x18] sm:$0xf] %v1559
      %v1561 = vld [vmem:[%s1397 + $0x1c] sm:$0x1]
      %v1562 = vsel %vm1542, %v1487, %v1561
      %1563 = vst [vmem:[%s1397 + $0x1c] sm:$0x1] %v1562
      %v1564 = vld [vmem:[%s1397 + $0x20] sm:$0xf]
      %v1565 = vsel %vm1537, %v1494, %v1564
      %1566 = vst [vmem:[%s1397 + $0x20] sm:$0xf] %v1565
      %v1567 = vld [vmem:[%s1397 + $0x24] sm:$0x1]
      %v1568 = vsel %vm1542, %v1495, %v1567
      %1569 = vst [vmem:[%s1397 + $0x24] sm:$0x1] %v1568
      %v1570 = vld [vmem:[%s1397 + $0x28] sm:$0xf]
      %v1571 = vsel %vm1537, %v1502, %v1570
      %1572 = vst [vmem:[%s1397 + $0x28] sm:$0xf] %v1571
      %v1573 = vld [vmem:[%s1397 + $0x2c] sm:$0x1]
      %v1574 = vsel %vm1542, %v1503, %v1573
      %1575 = vst [vmem:[%s1397 + $0x2c] sm:$0x1] %v1574
      %v1576 = vld [vmem:[%s1397 + $0x30] sm:$0xf]
      %v1577 = vsel %vm1537, %v1510, %v1576
      %1578 = vst [vmem:[%s1397 + $0x30] sm:$0xf] %v1577
      %v1579 = vld [vmem:[%s1397 + $0x34] sm:$0x1]
      %v1580 = vsel %vm1542, %v1511, %v1579
      %1581 = vst [vmem:[%s1397 + $0x34] sm:$0x1] %v1580
      %v1582 = vld [vmem:[%s1397 + $0x38] sm:$0xf]
      %v1583 = vsel %vm1537, %v1518, %v1582
      %1584 = vst [vmem:[%s1397 + $0x38] sm:$0xf] %v1583
      %v1585 = vld [vmem:[%s1397 + $0x3c] sm:$0x1]
      %v1586 = vsel %vm1542, %v1519, %v1585
      %1587 = vst [vmem:[%s1397 + $0x3c] sm:$0x1] %v1586
      %1588 = vst.msk [vmem:[#allocation4] sm:$0xff] %vm554, 0.0
      %1589 = vst.msk [vmem:[#allocation4 + $0x8] sm:$0xff] %vm554, 0.0
      %1590 = vst.msk [vmem:[#allocation4 + $0x10] sm:$0xff] %vm554, 0.0
      %1591 = vst.msk [vmem:[#allocation4 + $0x18] sm:$0xff] %vm554, 0.0
      %1592 = vst.msk [vmem:[#allocation4 + $0x20] sm:$0xff] %vm554, 0.0
      %1593 = vst.msk [vmem:[#allocation4 + $0x28] sm:$0xff] %vm554, 0.0
      %1594 = vst.msk [vmem:[#allocation4 + $0x30] sm:$0xff] %vm554, 0.0
      %1595 = vst.msk [vmem:[#allocation4 + $0x38] sm:$0xff] %vm554, 0.0
      %s1596 = smul.u32 0, 2
      %s1597 = smul.addr %s1596, 4
      %s1598 = scalar_lea.vmem [#allocation2], %s1597
      %v1599 = vld [vmem:[%s1598] sm:$0xf]
      %v1600 = vld [vmem:[%s1598 + $0x8] sm:$0xf]
      %v1601 = vld [vmem:[%s1598 + $0x10] sm:$0xf]
      %v1602 = vld [vmem:[%s1598 + $0x18] sm:$0xf]
      %v1603 = vld [vmem:[%s1598 + $0x20] sm:$0xf]
      %v1604 = vld [vmem:[%s1598 + $0x28] sm:$0xf]
      %v1605 = vld [vmem:[%s1598 + $0x30] sm:$0xf]
      %v1606 = vld [vmem:[%s1598 + $0x38] sm:$0xf]
      %v1607 = vld [vmem:[#allocation4] sm:$0xff]
      %v1608 = vld [vmem:[#allocation4 + $0x8] sm:$0xff]
      %v1609 = vld [vmem:[#allocation4 + $0x10] sm:$0xff]
      %v1610 = vld [vmem:[#allocation4 + $0x18] sm:$0xff]
      %v1611 = vld [vmem:[#allocation4 + $0x20] sm:$0xff]
      %v1612 = vld [vmem:[#allocation4 + $0x28] sm:$0xff]
      %v1613 = vld [vmem:[#allocation4 + $0x30] sm:$0xff]
      %v1614 = vld [vmem:[#allocation4 + $0x38] sm:$0xff]
      %v1615 = vld [vmem:[%s3] sm:$0xf]
      %v1616 = vld [vmem:[%s3 + $0x4] sm:$0xf]
      %v1617 = vld [vmem:[%s3 + $0x8] sm:$0xf]
      %v1618 = vld [vmem:[%s3 + $0xc] sm:$0xf]
      %v1619 = vld [vmem:[%s3 + $0x10] sm:$0xf]
      %v1620 = vld [vmem:[%s3 + $0x14] sm:$0xf]
      %v1621 = vld [vmem:[%s3 + $0x18] sm:$0xf]
      %v1622 = vld [vmem:[%s3 + $0x1c] sm:$0xf]
      %v1623 = vld [vmem:[%s3 + $0x20] sm:$0xf]
      %v1624 = vld [vmem:[%s3 + $0x24] sm:$0xf]
      %v1625 = vld [vmem:[%s3 + $0x28] sm:$0xf]
      %v1626 = vld [vmem:[%s3 + $0x2c] sm:$0xf]
      %v1627 = vld [vmem:[%s3 + $0x30] sm:$0xf]
      %v1628 = vld [vmem:[%s3 + $0x34] sm:$0xf]
      %v1629 = vld [vmem:[%s3 + $0x38] sm:$0xf]
      %v1630 = vld [vmem:[%s3 + $0x3c] sm:$0xf]
      %v1639 = vunpack.c.l.b16 %v1599
      %v1640 = vunpack.c.l.b16 %v1600
      %v1641 = vunpack.c.l.b16 %v1601
      %v1642 = vunpack.c.l.b16 %v1602
      %v1643 = vunpack.c.l.b16 %v1603
      %v1644 = vunpack.c.l.b16 %v1604
      %v1645 = vunpack.c.l.b16 %v1605
      %v1646 = vunpack.c.l.b16 %v1606
      %v1647 = vpack.c.b16 %v1640, %v1639
      %v1648 = vpack.c.b16 %v1642, %v1641
      %v1649 = vpack.c.b16 %v1644, %v1643
      %v1650 = vpack.c.b16 %v1646, %v1645
      %v1671 = vunpack.c.l.b16 %v1615
      %v1672 = vunpack.c.l.b16 %v1616
      %v1673 = vunpack.c.l.b16 %v1617
      %v1674 = vunpack.c.l.b16 %v1618
      %v1675 = vunpack.c.l.b16 %v1619
      %v1676 = vunpack.c.l.b16 %v1620
      %v1677 = vunpack.c.l.b16 %v1621
      %v1678 = vunpack.c.l.b16 %v1622
      %v1679 = vunpack.c.l.b16 %v1623
      %v1680 = vunpack.c.l.b16 %v1624
      %v1681 = vunpack.c.l.b16 %v1625
      %v1682 = vunpack.c.l.b16 %v1626
      %v1683 = vunpack.c.l.b16 %v1627
      %v1684 = vunpack.c.l.b16 %v1628
      %v1685 = vunpack.c.l.b16 %v1629
      %v1686 = vunpack.c.l.b16 %v1630
      %v1687 = vpack.c.b16 %v1672, %v1671
      %v1688 = vpack.c.b16 %v1674, %v1673
      %v1689 = vpack.c.b16 %v1676, %v1675
      %v1690 = vpack.c.b16 %v1678, %v1677
      %v1691 = vpack.c.b16 %v1680, %v1679
      %v1692 = vpack.c.b16 %v1682, %v1681
      %v1693 = vpack.c.b16 %v1684, %v1683
      %v1694 = vpack.c.b16 %v1686, %v1685
      %1703 = vmatpush.bf16.msra.mxu0 %v1694
      %1704 = vmatpush.bf16.msra.mxu0 %v1693
      %1705 = vmatpush.bf16.msra.mxu0 %v1692
      %1706 = vmatpush.bf16.msra.mxu0 %v1691
      %1707 = vmatpush.bf16.msra.mxu0 %v1690
      %1708 = vmatpush.bf16.msra.mxu0 %v1689
      %1709 = vmatpush.bf16.msra.mxu0 %v1688
      %1710 = vmatpush.bf16.msra.mxu0 %v1687
      %1711 = vmatmul.bf16.gmra.mxu0 %v1647
      %v1712 = vpop.f32.mrf.mxu0
      %v1713 = vadd.f32 0.0, %v1712
      %v1714 = vpop.f32.mrf.mxu0
      %v1715 = vadd.f32 0.0, %v1714
      %1716 = vmatmul.bf16.gmra.mxu0 %v1648
      %v1717 = vpop.f32.mrf.mxu0
      %v1718 = vadd.f32 0.0, %v1717
      %v1719 = vpop.f32.mrf.mxu0
      %v1720 = vadd.f32 0.0, %v1719
      %1721 = vmatmul.bf16.gmra.mxu0 %v1649
      %v1722 = vpop.f32.mrf.mxu0
      %v1723 = vadd.f32 0.0, %v1722
      %v1724 = vpop.f32.mrf.mxu0
      %v1725 = vadd.f32 0.0, %v1724
      %1726 = vmatmul.bf16.gmra.mxu0 %v1650
      %v1727 = vpop.f32.mrf.mxu0
      %v1728 = vadd.f32 0.0, %v1727
      %v1729 = vpop.f32.mrf.mxu0
      %v1730 = vadd.f32 0.0, %v1729
      %1731 = vdwg.mxu0
      %v1732 = vadd.f32 %v1607, %v1713
      %v1733 = vadd.f32 %v1608, %v1715
      %v1734 = vadd.f32 %v1609, %v1718
      %v1735 = vadd.f32 %v1610, %v1720
      %v1736 = vadd.f32 %v1611, %v1723
      %v1737 = vadd.f32 %v1612, %v1725
      %v1738 = vadd.f32 %v1613, %v1728
      %v1739 = vadd.f32 %v1614, %v1730
      %1740 = vst.msk [vmem:[#allocation4] sm:$0xff] %vm554, %v1732
      %1741 = vst.msk [vmem:[#allocation4 + $0x8] sm:$0xff] %vm554, %v1733
      %1742 = vst.msk [vmem:[#allocation4 + $0x10] sm:$0xff] %vm554, %v1734
      %1743 = vst.msk [vmem:[#allocation4 + $0x18] sm:$0xff] %vm554, %v1735
      %1744 = vst.msk [vmem:[#allocation4 + $0x20] sm:$0xff] %vm554, %v1736
      %1745 = vst.msk [vmem:[#allocation4 + $0x28] sm:$0xff] %vm554, %v1737
      %1746 = vst.msk [vmem:[#allocation4 + $0x30] sm:$0xff] %vm554, %v1738
      %1747 = vst.msk [vmem:[#allocation4 + $0x38] sm:$0xff] %vm554, %v1739
      %v1748 = vld [vmem:[%s1598] sm:$0xf]
      %v1749 = vld [vmem:[%s1598 + $0x4] sm:$0x1]
      %v1750 = vld [vmem:[%s1598 + $0x8] sm:$0xf]
      %v1751 = vld [vmem:[%s1598 + $0xc] sm:$0x1]
      %v1752 = vld [vmem:[%s1598 + $0x10] sm:$0xf]
      %v1753 = vld [vmem:[%s1598 + $0x14] sm:$0x1]
      %v1754 = vld [vmem:[%s1598 + $0x18] sm:$0xf]
      %v1755 = vld [vmem:[%s1598 + $0x1c] sm:$0x1]
      %v1756 = vld [vmem:[%s1598 + $0x20] sm:$0xf]
      %v1757 = vld [vmem:[%s1598 + $0x24] sm:$0x1]
      %v1758 = vld [vmem:[%s1598 + $0x28] sm:$0xf]
      %v1759 = vld [vmem:[%s1598 + $0x2c] sm:$0x1]
      %v1760 = vld [vmem:[%s1598 + $0x30] sm:$0xf]
      %v1761 = vld [vmem:[%s1598 + $0x34] sm:$0x1]
      %v1762 = vld [vmem:[%s1598 + $0x38] sm:$0xf]
      %v1763 = vld [vmem:[%s1598 + $0x3c] sm:$0x1]
      %v1764 = vld [vmem:[#allocation4] sm:$0xff]
      %v1765 = vld [vmem:[#allocation4 + $0x8] sm:$0xff]
      %v1766 = vld [vmem:[#allocation4 + $0x10] sm:$0xff]
      %v1767 = vld [vmem:[#allocation4 + $0x18] sm:$0xff]
      %v1768 = vld [vmem:[#allocation4 + $0x20] sm:$0xff]
      %v1769 = vld [vmem:[#allocation4 + $0x28] sm:$0xff]
      %v1770 = vld [vmem:[#allocation4 + $0x30] sm:$0xff]
      %v1771 = vld [vmem:[#allocation4 + $0x38] sm:$0xff]
      %v1773 = vshrl.u32 %v1748, 16
      %v1775 = vrot.slane %v1773, 4
      %v1776 = vshll.u32 %v1748, 16
      %v1778 = vrot.slane %v1776, 5
      %v1779 = vor.u32 %v1775, %v1778
      %v1780 = vrot.slane %v1779, 4
      %v1782 = vshll.u32 %v1749, 16
      %v1784 = vrot.slane %v1782, 5
      %v1785 = vsel %vm420, %v1780, %v1784
      %v1787 = vshrl.u32 %v1750, 16
      %v1789 = vrot.slane %v1787, 4
      %v1790 = vshll.u32 %v1750, 16
      %v1792 = vrot.slane %v1790, 5
      %v1793 = vor.u32 %v1789, %v1792
      %v1794 = vrot.slane %v1793, 4
      %v1796 = vshll.u32 %v1751, 16
      %v1798 = vrot.slane %v1796, 5
      %v1799 = vsel %vm420, %v1794, %v1798
      %v1801 = vshrl.u32 %v1752, 16
      %v1803 = vrot.slane %v1801, 4
      %v1804 = vshll.u32 %v1752, 16
      %v1806 = vrot.slane %v1804, 5
      %v1807 = vor.u32 %v1803, %v1806
      %v1808 = vrot.slane %v1807, 4
      %v1810 = vshll.u32 %v1753, 16
      %v1812 = vrot.slane %v1810, 5
      %v1813 = vsel %vm420, %v1808, %v1812
      %v1815 = vshrl.u32 %v1754, 16
      %v1817 = vrot.slane %v1815, 4
      %v1818 = vshll.u32 %v1754, 16
      %v1820 = vrot.slane %v1818, 5
      %v1821 = vor.u32 %v1817, %v1820
      %v1822 = vrot.slane %v1821, 4
      %v1824 = vshll.u32 %v1755, 16
      %v1826 = vrot.slane %v1824, 5
      %v1827 = vsel %vm420, %v1822, %v1826
      %v1829 = vshrl.u32 %v1756, 16
      %v1831 = vrot.slane %v1829, 4
      %v1832 = vshll.u32 %v1756, 16
      %v1834 = vrot.slane %v1832, 5
      %v1835 = vor.u32 %v1831, %v1834
      %v1836 = vrot.slane %v1835, 4
      %v1838 = vshll.u32 %v1757, 16
      %v1840 = vrot.slane %v1838, 5
      %v1841 = vsel %vm420, %v1836, %v1840
      %v1843 = vshrl.u32 %v1758, 16
      %v1845 = vrot.slane %v1843, 4
      %v1846 = vshll.u32 %v1758, 16
      %v1848 = vrot.slane %v1846, 5
      %v1849 = vor.u32 %v1845, %v1848
      %v1850 = vrot.slane %v1849, 4
      %v1852 = vshll.u32 %v1759, 16
      %v1854 = vrot.slane %v1852, 5
      %v1855 = vsel %vm420, %v1850, %v1854
      %v1857 = vshrl.u32 %v1760, 16
      %v1859 = vrot.slane %v1857, 4
      %v1860 = vshll.u32 %v1760, 16
      %v1862 = vrot.slane %v1860, 5
      %v1863 = vor.u32 %v1859, %v1862
      %v1864 = vrot.slane %v1863, 4
      %v1866 = vshll.u32 %v1761, 16
      %v1868 = vrot.slane %v1866, 5
      %v1869 = vsel %vm420, %v1864, %v1868
      %v1871 = vshrl.u32 %v1762, 16
      %v1873 = vrot.slane %v1871, 4
      %v1874 = vshll.u32 %v1762, 16
      %v1876 = vrot.slane %v1874, 5
      %v1877 = vor.u32 %v1873, %v1876
      %v1878 = vrot.slane %v1877, 4
      %v1880 = vshll.u32 %v1763, 16
      %v1882 = vrot.slane %v1880, 5
      %v1883 = vsel %vm420, %v1878, %v1882
      %v1884 = vld [vmem:[%s3 + $0x40] sm:$0xf]
      %v1885 = vld [vmem:[%s3 + $0x44] sm:$0xf]
      %v1886 = vld [vmem:[%s3 + $0x48] sm:$0xf]
      %v1887 = vld [vmem:[%s3 + $0x4c] sm:$0xf]
      %v1888 = vld [vmem:[%s3 + $0x50] sm:$0xf]
      %v1889 = vld [vmem:[%s3 + $0x54] sm:$0xf]
      %v1890 = vld [vmem:[%s3 + $0x58] sm:$0xf]
      %v1891 = vld [vmem:[%s3 + $0x5c] sm:$0xf]
      %v1892 = vld [vmem:[%s3 + $0x60] sm:$0xf]
      %v1893 = vld [vmem:[%s3 + $0x64] sm:$0xf]
      %v1894 = vld [vmem:[%s3 + $0x68] sm:$0xf]
      %v1895 = vld [vmem:[%s3 + $0x6c] sm:$0xf]
      %v1896 = vld [vmem:[%s3 + $0x70] sm:$0xf]
      %v1897 = vld [vmem:[%s3 + $0x74] sm:$0xf]
      %v1898 = vld [vmem:[%s3 + $0x78] sm:$0xf]
      %v1899 = vld [vmem:[%s3 + $0x7c] sm:$0xf]
      %v1900 = vunpack.c.l.b16 %v1785
      %v1901 = vunpack.c.l.b16 %v1799
      %v1902 = vunpack.c.l.b16 %v1813
      %v1903 = vunpack.c.l.b16 %v1827
      %v1904 = vunpack.c.l.b16 %v1841
      %v1905 = vunpack.c.l.b16 %v1855
      %v1906 = vunpack.c.l.b16 %v1869
      %v1907 = vunpack.c.l.b16 %v1883
      %v1908 = vpack.c.b16 %v1901, %v1900
      %v1909 = vpack.c.b16 %v1903, %v1902
      %v1910 = vpack.c.b16 %v1905, %v1904
      %v1911 = vpack.c.b16 %v1907, %v1906
      %v1932 = vunpack.c.l.b16 %v1884
      %v1933 = vunpack.c.l.b16 %v1885
      %v1934 = vunpack.c.l.b16 %v1886
      %v1935 = vunpack.c.l.b16 %v1887
      %v1936 = vunpack.c.l.b16 %v1888
      %v1937 = vunpack.c.l.b16 %v1889
      %v1938 = vunpack.c.l.b16 %v1890
      %v1939 = vunpack.c.l.b16 %v1891
      %v1940 = vunpack.c.l.b16 %v1892
      %v1941 = vunpack.c.l.b16 %v1893
      %v1942 = vunpack.c.l.b16 %v1894
      %v1943 = vunpack.c.l.b16 %v1895
      %v1944 = vunpack.c.l.b16 %v1896
      %v1945 = vunpack.c.l.b16 %v1897
      %v1946 = vunpack.c.l.b16 %v1898
      %v1947 = vunpack.c.l.b16 %v1899
      %v1948 = vpack.c.b16 %v1933, %v1932
      %v1949 = vpack.c.b16 %v1935, %v1934
      %v1950 = vpack.c.b16 %v1937, %v1936
      %v1951 = vpack.c.b16 %v1939, %v1938
      %v1952 = vpack.c.b16 %v1941, %v1940
      %v1953 = vpack.c.b16 %v1943, %v1942
      %v1954 = vpack.c.b16 %v1945, %v1944
      %v1955 = vpack.c.b16 %v1947, %v1946
      %1964 = vmatpush.bf16.msra.mxu0 %v1955
      %1965 = vmatpush.bf16.msra.mxu0 %v1954
      %1966 = vmatpush.bf16.msra.mxu0 %v1953
      %1967 = vmatpush.bf16.msra.mxu0 %v1952
      %1968 = vmatpush.bf16.msra.mxu0 %v1951
      %1969 = vmatpush.bf16.msra.mxu0 %v1950
      %1970 = vmatpush.bf16.msra.mxu0 %v1949
      %1971 = vmatpush.bf16.msra.mxu0 %v1948
      %1972 = vmatmul.bf16.gmra.mxu0 %v1908
      %v1973 = vpop.f32.mrf.mxu0
      %v1974 = vadd.f32 0.0, %v1973
      %v1975 = vpop.f32.mrf.mxu0
      %v1976 = vadd.f32 0.0, %v1975
      %1977 = vmatmul.bf16.gmra.mxu0 %v1909
      %v1978 = vpop.f32.mrf.mxu0
      %v1979 = vadd.f32 0.0, %v1978
      %v1980 = vpop.f32.mrf.mxu0
      %v1981 = vadd.f32 0.0, %v1980
      %1982 = vmatmul.bf16.gmra.mxu0 %v1910
      %v1983 = vpop.f32.mrf.mxu0
      %v1984 = vadd.f32 0.0, %v1983
      %v1985 = vpop.f32.mrf.mxu0
      %v1986 = vadd.f32 0.0, %v1985
      %1987 = vmatmul.bf16.gmra.mxu0 %v1911
      %v1988 = vpop.f32.mrf.mxu0
      %v1989 = vadd.f32 0.0, %v1988
      %v1990 = vpop.f32.mrf.mxu0
      %v1991 = vadd.f32 0.0, %v1990
      %1992 = vdwg.mxu0
      %v1993 = vadd.f32 %v1764, %v1974
      %v1994 = vadd.f32 %v1765, %v1976
      %v1995 = vadd.f32 %v1766, %v1979
      %v1996 = vadd.f32 %v1767, %v1981
      %v1997 = vadd.f32 %v1768, %v1984
      %v1998 = vadd.f32 %v1769, %v1986
      %v1999 = vadd.f32 %v1770, %v1989
      %v2000 = vadd.f32 %v1771, %v1991
      %2001 = vst.msk [vmem:[#allocation4] sm:$0xff] %vm554, %v1993
      %2002 = vst.msk [vmem:[#allocation4 + $0x8] sm:$0xff] %vm554, %v1994
      %2003 = vst.msk [vmem:[#allocation4 + $0x10] sm:$0xff] %vm554, %v1995
      %2004 = vst.msk [vmem:[#allocation4 + $0x18] sm:$0xff] %vm554, %v1996
      %2005 = vst.msk [vmem:[#allocation4 + $0x20] sm:$0xff] %vm554, %v1997
      %2006 = vst.msk [vmem:[#allocation4 + $0x28] sm:$0xff] %vm554, %v1998
      %2007 = vst.msk [vmem:[#allocation4 + $0x30] sm:$0xff] %vm554, %v1999
      %2008 = vst.msk [vmem:[#allocation4 + $0x38] sm:$0xff] %vm554, %v2000
      %v2009 = vld [vmem:[%s1598] sm:$0xe]
      %v2010 = vld [vmem:[%s1598 + $0x4] sm:$0x1]
      %v2011 = vld [vmem:[%s1598 + $0x8] sm:$0xe]
      %v2012 = vld [vmem:[%s1598 + $0xc] sm:$0x1]
      %v2013 = vld [vmem:[%s1598 + $0x10] sm:$0xe]
      %v2014 = vld [vmem:[%s1598 + $0x14] sm:$0x1]
      %v2015 = vld [vmem:[%s1598 + $0x18] sm:$0xe]
      %v2016 = vld [vmem:[%s1598 + $0x1c] sm:$0x1]
      %v2017 = vld [vmem:[%s1598 + $0x20] sm:$0xe]
      %v2018 = vld [vmem:[%s1598 + $0x24] sm:$0x1]
      %v2019 = vld [vmem:[%s1598 + $0x28] sm:$0xe]
      %v2020 = vld [vmem:[%s1598 + $0x2c] sm:$0x1]
      %v2021 = vld [vmem:[%s1598 + $0x30] sm:$0xe]
      %v2022 = vld [vmem:[%s1598 + $0x34] sm:$0x1]
      %v2023 = vld [vmem:[%s1598 + $0x38] sm:$0xe]
      %v2024 = vld [vmem:[%s1598 + $0x3c] sm:$0x1]
      %v2025 = vld [vmem:[#allocation4] sm:$0xff]
      %v2026 = vld [vmem:[#allocation4 + $0x8] sm:$0xff]
      %v2027 = vld [vmem:[#allocation4 + $0x10] sm:$0xff]
      %v2028 = vld [vmem:[#allocation4 + $0x18] sm:$0xff]
      %v2029 = vld [vmem:[#allocation4 + $0x20] sm:$0xff]
      %v2030 = vld [vmem:[#allocation4 + $0x28] sm:$0xff]
      %v2031 = vld [vmem:[#allocation4 + $0x30] sm:$0xff]
      %v2032 = vld [vmem:[#allocation4 + $0x38] sm:$0xff]
      %v2049 = vrot.slane %v2009, 5
      %v2050 = vrot.slane %v2049, 4
      %v2051 = vrot.slane %v2010, 5
      %v2052 = vsel %vm863, %v2050, %v2051
      %v2053 = vrot.slane %v2011, 5
      %v2054 = vrot.slane %v2053, 4
      %v2055 = vrot.slane %v2012, 5
      %v2056 = vsel %vm863, %v2054, %v2055
      %v2057 = vrot.slane %v2013, 5
      %v2058 = vrot.slane %v2057, 4
      %v2059 = vrot.slane %v2014, 5
      %v2060 = vsel %vm863, %v2058, %v2059
      %v2061 = vrot.slane %v2015, 5
      %v2062 = vrot.slane %v2061, 4
      %v2063 = vrot.slane %v2016, 5
      %v2064 = vsel %vm863, %v2062, %v2063
      %v2065 = vrot.slane %v2017, 5
      %v2066 = vrot.slane %v2065, 4
      %v2067 = vrot.slane %v2018, 5
      %v2068 = vsel %vm863, %v2066, %v2067
      %v2069 = vrot.slane %v2019, 5
      %v2070 = vrot.slane %v2069, 4
      %v2071 = vrot.slane %v2020, 5
      %v2072 = vsel %vm863, %v2070, %v2071
      %v2073 = vrot.slane %v2021, 5
      %v2074 = vrot.slane %v2073, 4
      %v2075 = vrot.slane %v2022, 5
      %v2076 = vsel %vm863, %v2074, %v2075
      %v2077 = vrot.slane %v2023, 5
      %v2078 = vrot.slane %v2077, 4
      %v2079 = vrot.slane %v2024, 5
      %v2080 = vsel %vm863, %v2078, %v2079
      %v2081 = vld [vmem:[%s3 + $0x80] sm:$0xf]
      %v2082 = vld [vmem:[%s3 + $0x84] sm:$0xf]
      %v2083 = vld [vmem:[%s3 + $0x88] sm:$0xf]
      %v2084 = vld [vmem:[%s3 + $0x8c] sm:$0xf]
      %v2085 = vld [vmem:[%s3 + $0x90] sm:$0xf]
      %v2086 = vld [vmem:[%s3 + $0x94] sm:$0xf]
      %v2087 = vld [vmem:[%s3 + $0x98] sm:$0xf]
      %v2088 = vld [vmem:[%s3 + $0x9c] sm:$0xf]
      %v2089 = vld [vmem:[%s3 + $0xa0] sm:$0xf]
      %v2090 = vld [vmem:[%s3 + $0xa4] sm:$0xf]
      %v2091 = vld [vmem:[%s3 + $0xa8] sm:$0xf]
      %v2092 = vld [vmem:[%s3 + $0xac] sm:$0xf]
      %v2093 = vld [vmem:[%s3 + $0xb0] sm:$0xf]
      %v2094 = vld [vmem:[%s3 + $0xb4] sm:$0xf]
      %v2095 = vld [vmem:[%s3 + $0xb8] sm:$0xf]
      %v2096 = vld [vmem:[%s3 + $0xbc] sm:$0xf]
      %v2097 = vunpack.c.l.b16 %v2052
      %v2098 = vunpack.c.l.b16 %v2056
      %v2099 = vunpack.c.l.b16 %v2060
      %v2100 = vunpack.c.l.b16 %v2064
      %v2101 = vunpack.c.l.b16 %v2068
      %v2102 = vunpack.c.l.b16 %v2072
      %v2103 = vunpack.c.l.b16 %v2076
      %v2104 = vunpack.c.l.b16 %v2080
      %v2105 = vpack.c.b16 %v2098, %v2097
      %v2106 = vpack.c.b16 %v2100, %v2099
      %v2107 = vpack.c.b16 %v2102, %v2101
      %v2108 = vpack.c.b16 %v2104, %v2103
      %v2129 = vunpack.c.l.b16 %v2081
      %v2130 = vunpack.c.l.b16 %v2082
      %v2131 = vunpack.c.l.b16 %v2083
      %v2132 = vunpack.c.l.b16 %v2084
      %v2133 = vunpack.c.l.b16 %v2085
      %v2134 = vunpack.c.l.b16 %v2086
      %v2135 = vunpack.c.l.b16 %v2087
      %v2136 = vunpack.c.l.b16 %v2088
      %v2137 = vunpack.c.l.b16 %v2089
      %v2138 = vunpack.c.l.b16 %v2090
      %v2139 = vunpack.c.l.b16 %v2091
      %v2140 = vunpack.c.l.b16 %v2092
      %v2141 = vunpack.c.l.b16 %v2093
      %v2142 = vunpack.c.l.b16 %v2094
      %v2143 = vunpack.c.l.b16 %v2095
      %v2144 = vunpack.c.l.b16 %v2096
      %v2145 = vpack.c.b16 %v2130, %v2129
      %v2146 = vpack.c.b16 %v2132, %v2131
      %v2147 = vpack.c.b16 %v2134, %v2133
      %v2148 = vpack.c.b16 %v2136, %v2135
      %v2149 = vpack.c.b16 %v2138, %v2137
      %v2150 = vpack.c.b16 %v2140, %v2139
      %v2151 = vpack.c.b16 %v2142, %v2141
      %v2152 = vpack.c.b16 %v2144, %v2143
      %2161 = vmatpush.bf16.msra.mxu0 %v2152
      %2162 = vmatpush.bf16.msra.mxu0 %v2151
      %2163 = vmatpush.bf16.msra.mxu0 %v2150
      %2164 = vmatpush.bf16.msra.mxu0 %v2149
      %2165 = vmatpush.bf16.msra.mxu0 %v2148
      %2166 = vmatpush.bf16.msra.mxu0 %v2147
      %2167 = vmatpush.bf16.msra.mxu0 %v2146
      %2168 = vmatpush.bf16.msra.mxu0 %v2145
      %2169 = vmatmul.bf16.gmra.mxu0 %v2105
      %v2170 = vpop.f32.mrf.mxu0
      %v2171 = vadd.f32 0.0, %v2170
      %v2172 = vpop.f32.mrf.mxu0
      %v2173 = vadd.f32 0.0, %v2172
      %2174 = vmatmul.bf16.gmra.mxu0 %v2106
      %v2175 = vpop.f32.mrf.mxu0
      %v2176 = vadd.f32 0.0, %v2175
      %v2177 = vpop.f32.mrf.mxu0
      %v2178 = vadd.f32 0.0, %v2177
      %2179 = vmatmul.bf16.gmra.mxu0 %v2107
      %v2180 = vpop.f32.mrf.mxu0
      %v2181 = vadd.f32 0.0, %v2180
      %v2182 = vpop.f32.mrf.mxu0
      %v2183 = vadd.f32 0.0, %v2182
      %2184 = vmatmul.bf16.gmra.mxu0 %v2108
      %v2185 = vpop.f32.mrf.mxu0
      %v2186 = vadd.f32 0.0, %v2185
      %v2187 = vpop.f32.mrf.mxu0
      %v2188 = vadd.f32 0.0, %v2187
      %2189 = vdwg.mxu0
      %v2190 = vadd.f32 %v2025, %v2171
      %v2191 = vadd.f32 %v2026, %v2173
      %v2192 = vadd.f32 %v2027, %v2176
      %v2193 = vadd.f32 %v2028, %v2178
      %v2194 = vadd.f32 %v2029, %v2181
      %v2195 = vadd.f32 %v2030, %v2183
      %v2196 = vadd.f32 %v2031, %v2186
      %v2197 = vadd.f32 %v2032, %v2188
      %2198 = vst.msk [vmem:[#allocation4] sm:$0xff] %vm554, %v2190
      %2199 = vst.msk [vmem:[#allocation4 + $0x8] sm:$0xff] %vm554, %v2191
      %2200 = vst.msk [vmem:[#allocation4 + $0x10] sm:$0xff] %vm554, %v2192
      %2201 = vst.msk [vmem:[#allocation4 + $0x18] sm:$0xff] %vm554, %v2193
      %2202 = vst.msk [vmem:[#allocation4 + $0x20] sm:$0xff] %vm554, %v2194
      %2203 = vst.msk [vmem:[#allocation4 + $0x28] sm:$0xff] %vm554, %v2195
      %2204 = vst.msk [vmem:[#allocation4 + $0x30] sm:$0xff] %vm554, %v2196
      %2205 = vst.msk [vmem:[#allocation4 + $0x38] sm:$0xff] %vm554, %v2197
      %v2206 = vld [vmem:[%s1397] sm:$0xf]
      %v2207 = vld [vmem:[%s1397 + $0x8] sm:$0xf]
      %v2208 = vld [vmem:[%s1397 + $0x10] sm:$0xf]
      %v2209 = vld [vmem:[%s1397 + $0x18] sm:$0xf]
      %v2210 = vld [vmem:[%s1397 + $0x20] sm:$0xf]
      %v2211 = vld [vmem:[%s1397 + $0x28] sm:$0xf]
      %v2212 = vld [vmem:[%s1397 + $0x30] sm:$0xf]
      %v2213 = vld [vmem:[%s1397 + $0x38] sm:$0xf]
      %v2214 = vld [vmem:[#allocation4] sm:$0xff]
      %v2215 = vld [vmem:[#allocation4 + $0x8] sm:$0xff]
      %v2216 = vld [vmem:[#allocation4 + $0x10] sm:$0xff]
      %v2217 = vld [vmem:[#allocation4 + $0x18] sm:$0xff]
      %v2218 = vld [vmem:[#allocation4 + $0x20] sm:$0xff]
      %v2219 = vld [vmem:[#allocation4 + $0x28] sm:$0xff]
      %v2220 = vld [vmem:[#allocation4 + $0x30] sm:$0xff]
      %v2221 = vld [vmem:[#allocation4 + $0x38] sm:$0xff]
      %v2222 = vld [vmem:[%s3 + $0xc0] sm:$0xf]
      %v2223 = vld [vmem:[%s3 + $0xc4] sm:$0xf]
      %v2224 = vld [vmem:[%s3 + $0xc8] sm:$0xf]
      %v2225 = vld [vmem:[%s3 + $0xcc] sm:$0xf]
      %v2226 = vld [vmem:[%s3 + $0xd0] sm:$0xf]
      %v2227 = vld [vmem:[%s3 + $0xd4] sm:$0xf]
      %v2228 = vld [vmem:[%s3 + $0xd8] sm:$0xf]
      %v2229 = vld [vmem:[%s3 + $0xdc] sm:$0xf]
      %v2230 = vld [vmem:[%s3 + $0xe0] sm:$0xf]
      %v2231 = vld [vmem:[%s3 + $0xe4] sm:$0xf]
      %v2232 = vld [vmem:[%s3 + $0xe8] sm:$0xf]
      %v2233 = vld [vmem:[%s3 + $0xec] sm:$0xf]
      %v2234 = vld [vmem:[%s3 + $0xf0] sm:$0xf]
      %v2235 = vld [vmem:[%s3 + $0xf4] sm:$0xf]
      %v2236 = vld [vmem:[%s3 + $0xf8] sm:$0xf]
      %v2237 = vld [vmem:[%s3 + $0xfc] sm:$0xf]
      %v2246 = vunpack.c.l.b16 %v2206
      %v2247 = vunpack.c.l.b16 %v2207
      %v2248 = vunpack.c.l.b16 %v2208
      %v2249 = vunpack.c.l.b16 %v2209
      %v2250 = vunpack.c.l.b16 %v2210
      %v2251 = vunpack.c.l.b16 %v2211
      %v2252 = vunpack.c.l.b16 %v2212
      %v2253 = vunpack.c.l.b16 %v2213
      %v2254 = vpack.c.b16 %v2247, %v2246
      %v2255 = vpack.c.b16 %v2249, %v2248
      %v2256 = vpack.c.b16 %v2251, %v2250
      %v2257 = vpack.c.b16 %v2253, %v2252
      %v2278 = vunpack.c.l.b16 %v2222
      %v2279 = vunpack.c.l.b16 %v2223
      %v2280 = vunpack.c.l.b16 %v2224
      %v2281 = vunpack.c.l.b16 %v2225
      %v2282 = vunpack.c.l.b16 %v2226
      %v2283 = vunpack.c.l.b16 %v2227
      %v2284 = vunpack.c.l.b16 %v2228
      %v2285 = vunpack.c.l.b16 %v2229
      %v2286 = vunpack.c.l.b16 %v2230
      %v2287 = vunpack.c.l.b16 %v2231
      %v2288 = vunpack.c.l.b16 %v2232
      %v2289 = vunpack.c.l.b16 %v2233
      %v2290 = vunpack.c.l.b16 %v2234
      %v2291 = vunpack.c.l.b16 %v2235
      %v2292 = vunpack.c.l.b16 %v2236
      %v2293 = vunpack.c.l.b16 %v2237
      %v2294 = vpack.c.b16 %v2279, %v2278
      %v2295 = vpack.c.b16 %v2281, %v2280
      %v2296 = vpack.c.b16 %v2283, %v2282
      %v2297 = vpack.c.b16 %v2285, %v2284
      %v2298 = vpack.c.b16 %v2287, %v2286
      %v2299 = vpack.c.b16 %v2289, %v2288
      %v2300 = vpack.c.b16 %v2291, %v2290
      %v2301 = vpack.c.b16 %v2293, %v2292
      %2310 = vmatpush.bf16.msra.mxu0 %v2301
      %2311 = vmatpush.bf16.msra.mxu0 %v2300
      %2312 = vmatpush.bf16.msra.mxu0 %v2299
      %2313 = vmatpush.bf16.msra.mxu0 %v2298
      %2314 = vmatpush.bf16.msra.mxu0 %v2297
      %2315 = vmatpush.bf16.msra.mxu0 %v2296
      %2316 = vmatpush.bf16.msra.mxu0 %v2295
      %2317 = vmatpush.bf16.msra.mxu0 %v2294
      %2318 = vmatmul.bf16.gmra.mxu0 %v2254
      %v2319 = vpop.f32.mrf.mxu0
      %v2320 = vadd.f32 0.0, %v2319
      %v2321 = vpop.f32.mrf.mxu0
      %v2322 = vadd.f32 0.0, %v2321
      %2323 = vmatmul.bf16.gmra.mxu0 %v2255
      %v2324 = vpop.f32.mrf.mxu0
      %v2325 = vadd.f32 0.0, %v2324
      %v2326 = vpop.f32.mrf.mxu0
      %v2327 = vadd.f32 0.0, %v2326
      %2328 = vmatmul.bf16.gmra.mxu0 %v2256
      %v2329 = vpop.f32.mrf.mxu0
      %v2330 = vadd.f32 0.0, %v2329
      %v2331 = vpop.f32.mrf.mxu0
      %v2332 = vadd.f32 0.0, %v2331
      %2333 = vmatmul.bf16.gmra.mxu0 %v2257
      %v2334 = vpop.f32.mrf.mxu0
      %v2335 = vadd.f32 0.0, %v2334
      %v2336 = vpop.f32.mrf.mxu0
      %v2337 = vadd.f32 0.0, %v2336
      %2338 = vdwg.mxu0
      %v2339 = vadd.f32 %v2214, %v2320
      %v2340 = vadd.f32 %v2215, %v2322
      %v2341 = vadd.f32 %v2216, %v2325
      %v2342 = vadd.f32 %v2217, %v2327
      %v2343 = vadd.f32 %v2218, %v2330
      %v2344 = vadd.f32 %v2219, %v2332
      %v2345 = vadd.f32 %v2220, %v2335
      %v2346 = vadd.f32 %v2221, %v2337
      %2347 = vst.msk [vmem:[#allocation4] sm:$0xff] %vm554, %v2339
      %2348 = vst.msk [vmem:[#allocation4 + $0x8] sm:$0xff] %vm554, %v2340
      %2349 = vst.msk [vmem:[#allocation4 + $0x10] sm:$0xff] %vm554, %v2341
      %2350 = vst.msk [vmem:[#allocation4 + $0x18] sm:$0xff] %vm554, %v2342
      %2351 = vst.msk [vmem:[#allocation4 + $0x20] sm:$0xff] %vm554, %v2343
      %2352 = vst.msk [vmem:[#allocation4 + $0x28] sm:$0xff] %vm554, %v2344
      %2353 = vst.msk [vmem:[#allocation4 + $0x30] sm:$0xff] %vm554, %v2345
      %2354 = vst.msk [vmem:[#allocation4 + $0x38] sm:$0xff] %vm554, %v2346
      %v2355 = vld [vmem:[%s1397] sm:$0xf]
      %v2356 = vld [vmem:[%s1397 + $0x4] sm:$0x1]
      %v2357 = vld [vmem:[%s1397 + $0x8] sm:$0xf]
      %v2358 = vld [vmem:[%s1397 + $0xc] sm:$0x1]
      %v2359 = vld [vmem:[%s1397 + $0x10] sm:$0xf]
      %v2360 = vld [vmem:[%s1397 + $0x14] sm:$0x1]
      %v2361 = vld [vmem:[%s1397 + $0x18] sm:$0xf]
      %v2362 = vld [vmem:[%s1397 + $0x1c] sm:$0x1]
      %v2363 = vld [vmem:[%s1397 + $0x20] sm:$0xf]
      %v2364 = vld [vmem:[%s1397 + $0x24] sm:$0x1]
      %v2365 = vld [vmem:[%s1397 + $0x28] sm:$0xf]
      %v2366 = vld [vmem:[%s1397 + $0x2c] sm:$0x1]
      %v2367 = vld [vmem:[%s1397 + $0x30] sm:$0xf]
      %v2368 = vld [vmem:[%s1397 + $0x34] sm:$0x1]
      %v2369 = vld [vmem:[%s1397 + $0x38] sm:$0xf]
      %v2370 = vld [vmem:[%s1397 + $0x3c] sm:$0x1]
      %v2371 = vld [vmem:[#allocation4] sm:$0xff]
      %v2372 = vld [vmem:[#allocation4 + $0x8] sm:$0xff]
      %v2373 = vld [vmem:[#allocation4 + $0x10] sm:$0xff]
      %v2374 = vld [vmem:[#allocation4 + $0x18] sm:$0xff]
      %v2375 = vld [vmem:[#allocation4 + $0x20] sm:$0xff]
      %v2376 = vld [vmem:[#allocation4 + $0x28] sm:$0xff]
      %v2377 = vld [vmem:[#allocation4 + $0x30] sm:$0xff]
      %v2378 = vld [vmem:[#allocation4 + $0x38] sm:$0xff]
      %v2380 = vshrl.u32 %v2355, 16
      %v2382 = vrot.slane %v2380, 4
      %v2383 = vshll.u32 %v2355, 16
      %v2385 = vrot.slane %v2383, 5
      %v2386 = vor.u32 %v2382, %v2385
      %v2387 = vrot.slane %v2386, 4
      %v2389 = vshll.u32 %v2356, 16
      %v2391 = vrot.slane %v2389, 5
      %v2392 = vsel %vm420, %v2387, %v2391
      %v2394 = vshrl.u32 %v2357, 16
      %v2396 = vrot.slane %v2394, 4
      %v2397 = vshll.u32 %v2357, 16
      %v2399 = vrot.slane %v2397, 5
      %v2400 = vor.u32 %v2396, %v2399
      %v2401 = vrot.slane %v2400, 4
      %v2403 = vshll.u32 %v2358, 16
      %v2405 = vrot.slane %v2403, 5
      %v2406 = vsel %vm420, %v2401, %v2405
      %v2408 = vshrl.u32 %v2359, 16
      %v2410 = vrot.slane %v2408, 4
      %v2411 = vshll.u32 %v2359, 16
      %v2413 = vrot.slane %v2411, 5
      %v2414 = vor.u32 %v2410, %v2413
      %v2415 = vrot.slane %v2414, 4
      %v2417 = vshll.u32 %v2360, 16
      %v2419 = vrot.slane %v2417, 5
      %v2420 = vsel %vm420, %v2415, %v2419
      %v2422 = vshrl.u32 %v2361, 16
      %v2424 = vrot.slane %v2422, 4
      %v2425 = vshll.u32 %v2361, 16
      %v2427 = vrot.slane %v2425, 5
      %v2428 = vor.u32 %v2424, %v2427
      %v2429 = vrot.slane %v2428, 4
      %v2431 = vshll.u32 %v2362, 16
      %v2433 = vrot.slane %v2431, 5
      %v2434 = vsel %vm420, %v2429, %v2433
      %v2436 = vshrl.u32 %v2363, 16
      %v2438 = vrot.slane %v2436, 4
      %v2439 = vshll.u32 %v2363, 16
      %v2441 = vrot.slane %v2439, 5
      %v2442 = vor.u32 %v2438, %v2441
      %v2443 = vrot.slane %v2442, 4
      %v2445 = vshll.u32 %v2364, 16
      %v2447 = vrot.slane %v2445, 5
      %v2448 = vsel %vm420, %v2443, %v2447
      %v2450 = vshrl.u32 %v2365, 16
      %v2452 = vrot.slane %v2450, 4
      %v2453 = vshll.u32 %v2365, 16
      %v2455 = vrot.slane %v2453, 5
      %v2456 = vor.u32 %v2452, %v2455
      %v2457 = vrot.slane %v2456, 4
      %v2459 = vshll.u32 %v2366, 16
      %v2461 = vrot.slane %v2459, 5
      %v2462 = vsel %vm420, %v2457, %v2461
      %v2464 = vshrl.u32 %v2367, 16
      %v2466 = vrot.slane %v2464, 4
      %v2467 = vshll.u32 %v2367, 16
      %v2469 = vrot.slane %v2467, 5
      %v2470 = vor.u32 %v2466, %v2469
      %v2471 = vrot.slane %v2470, 4
      %v2473 = vshll.u32 %v2368, 16
      %v2475 = vrot.slane %v2473, 5
      %v2476 = vsel %vm420, %v2471, %v2475
      %v2478 = vshrl.u32 %v2369, 16
      %v2480 = vrot.slane %v2478, 4
      %v2481 = vshll.u32 %v2369, 16
      %v2483 = vrot.slane %v2481, 5
      %v2484 = vor.u32 %v2480, %v2483
      %v2485 = vrot.slane %v2484, 4
      %v2487 = vshll.u32 %v2370, 16
      %v2489 = vrot.slane %v2487, 5
      %v2490 = vsel %vm420, %v2485, %v2489
      %v2491 = vld [vmem:[%s3 + $0x100] sm:$0xf]
      %v2492 = vld [vmem:[%s3 + $0x104] sm:$0xf]
      %v2493 = vld [vmem:[%s3 + $0x108] sm:$0xf]
      %v2494 = vld [vmem:[%s3 + $0x10c] sm:$0xf]
      %v2495 = vld [vmem:[%s3 + $0x110] sm:$0xf]
      %v2496 = vld [vmem:[%s3 + $0x114] sm:$0xf]
      %v2497 = vld [vmem:[%s3 + $0x118] sm:$0xf]
      %v2498 = vld [vmem:[%s3 + $0x11c] sm:$0xf]
      %v2499 = vld [vmem:[%s3 + $0x120] sm:$0xf]
      %v2500 = vld [vmem:[%s3 + $0x124] sm:$0xf]
      %v2501 = vld [vmem:[%s3 + $0x128] sm:$0xf]
      %v2502 = vld [vmem:[%s3 + $0x12c] sm:$0xf]
      %v2503 = vld [vmem:[%s3 + $0x130] sm:$0xf]
      %v2504 = vld [vmem:[%s3 + $0x134] sm:$0xf]
      %v2505 = vld [vmem:[%s3 + $0x138] sm:$0xf]
      %v2506 = vld [vmem:[%s3 + $0x13c] sm:$0xf]
      %v2507 = vunpack.c.l.b16 %v2392
      %v2508 = vunpack.c.l.b16 %v2406
      %v2509 = vunpack.c.l.b16 %v2420
      %v2510 = vunpack.c.l.b16 %v2434
      %v2511 = vunpack.c.l.b16 %v2448
      %v2512 = vunpack.c.l.b16 %v2462
      %v2513 = vunpack.c.l.b16 %v2476
      %v2514 = vunpack.c.l.b16 %v2490
      %v2515 = vpack.c.b16 %v2508, %v2507
      %v2516 = vpack.c.b16 %v2510, %v2509
      %v2517 = vpack.c.b16 %v2512, %v2511
      %v2518 = vpack.c.b16 %v2514, %v2513
      %v2539 = vunpack.c.l.b16 %v2491
      %v2540 = vunpack.c.l.b16 %v2492
      %v2541 = vunpack.c.l.b16 %v2493
      %v2542 = vunpack.c.l.b16 %v2494
      %v2543 = vunpack.c.l.b16 %v2495
      %v2544 = vunpack.c.l.b16 %v2496
      %v2545 = vunpack.c.l.b16 %v2497
      %v2546 = vunpack.c.l.b16 %v2498
      %v2547 = vunpack.c.l.b16 %v2499
      %v2548 = vunpack.c.l.b16 %v2500
      %v2549 = vunpack.c.l.b16 %v2501
      %v2550 = vunpack.c.l.b16 %v2502
      %v2551 = vunpack.c.l.b16 %v2503
      %v2552 = vunpack.c.l.b16 %v2504
      %v2553 = vunpack.c.l.b16 %v2505
      %v2554 = vunpack.c.l.b16 %v2506
      %v2555 = vpack.c.b16 %v2540, %v2539
      %v2556 = vpack.c.b16 %v2542, %v2541
      %v2557 = vpack.c.b16 %v2544, %v2543
      %v2558 = vpack.c.b16 %v2546, %v2545
      %v2559 = vpack.c.b16 %v2548, %v2547
      %v2560 = vpack.c.b16 %v2550, %v2549
      %v2561 = vpack.c.b16 %v2552, %v2551
      %v2562 = vpack.c.b16 %v2554, %v2553
      %2571 = vmatpush.bf16.msra.mxu0 %v2562
      %2572 = vmatpush.bf16.msra.mxu0 %v2561
      %2573 = vmatpush.bf16.msra.mxu0 %v2560
      %2574 = vmatpush.bf16.msra.mxu0 %v2559
      %2575 = vmatpush.bf16.msra.mxu0 %v2558
      %2576 = vmatpush.bf16.msra.mxu0 %v2557
      %2577 = vmatpush.bf16.msra.mxu0 %v2556
      %2578 = vmatpush.bf16.msra.mxu0 %v2555
      %2579 = vmatmul.bf16.gmra.mxu0 %v2515
      %v2580 = vpop.f32.mrf.mxu0
      %v2581 = vadd.f32 0.0, %v2580
      %v2582 = vpop.f32.mrf.mxu0
      %v2583 = vadd.f32 0.0, %v2582
      %2584 = vmatmul.bf16.gmra.mxu0 %v2516
      %v2585 = vpop.f32.mrf.mxu0
      %v2586 = vadd.f32 0.0, %v2585
      %v2587 = vpop.f32.mrf.mxu0
      %v2588 = vadd.f32 0.0, %v2587
      %2589 = vmatmul.bf16.gmra.mxu0 %v2517
      %v2590 = vpop.f32.mrf.mxu0
      %v2591 = vadd.f32 0.0, %v2590
      %v2592 = vpop.f32.mrf.mxu0
      %v2593 = vadd.f32 0.0, %v2592
      %2594 = vmatmul.bf16.gmra.mxu0 %v2518
      %v2595 = vpop.f32.mrf.mxu0
      %v2596 = vadd.f32 0.0, %v2595
      %v2597 = vpop.f32.mrf.mxu0
      %v2598 = vadd.f32 0.0, %v2597
      %2599 = vdwg.mxu0
      %v2600 = vadd.f32 %v2371, %v2581
      %v2601 = vadd.f32 %v2372, %v2583
      %v2602 = vadd.f32 %v2373, %v2586
      %v2603 = vadd.f32 %v2374, %v2588
      %v2604 = vadd.f32 %v2375, %v2591
      %v2605 = vadd.f32 %v2376, %v2593
      %v2606 = vadd.f32 %v2377, %v2596
      %v2607 = vadd.f32 %v2378, %v2598
      %2608 = vst.msk [vmem:[#allocation4] sm:$0xff] %vm554, %v2600
      %2609 = vst.msk [vmem:[#allocation4 + $0x8] sm:$0xff] %vm554, %v2601
      %2610 = vst.msk [vmem:[#allocation4 + $0x10] sm:$0xff] %vm554, %v2602
      %2611 = vst.msk [vmem:[#allocation4 + $0x18] sm:$0xff] %vm554, %v2603
      %2612 = vst.msk [vmem:[#allocation4 + $0x20] sm:$0xff] %vm554, %v2604
      %2613 = vst.msk [vmem:[#allocation4 + $0x28] sm:$0xff] %vm554, %v2605
      %2614 = vst.msk [vmem:[#allocation4 + $0x30] sm:$0xff] %vm554, %v2606
      %2615 = vst.msk [vmem:[#allocation4 + $0x38] sm:$0xff] %vm554, %v2607
      %v2616 = vld [vmem:[%s1397] sm:$0xe]
      %v2617 = vld [vmem:[%s1397 + $0x4] sm:$0x1]
      %v2618 = vld [vmem:[%s1397 + $0x8] sm:$0xe]
      %v2619 = vld [vmem:[%s1397 + $0xc] sm:$0x1]
      %v2620 = vld [vmem:[%s1397 + $0x10] sm:$0xe]
      %v2621 = vld [vmem:[%s1397 + $0x14] sm:$0x1]
      %v2622 = vld [vmem:[%s1397 + $0x18] sm:$0xe]
      %v2623 = vld [vmem:[%s1397 + $0x1c] sm:$0x1]
      %v2624 = vld [vmem:[%s1397 + $0x20] sm:$0xe]
      %v2625 = vld [vmem:[%s1397 + $0x24] sm:$0x1]
      %v2626 = vld [vmem:[%s1397 + $0x28] sm:$0xe]
      %v2627 = vld [vmem:[%s1397 + $0x2c] sm:$0x1]
      %v2628 = vld [vmem:[%s1397 + $0x30] sm:$0xe]
      %v2629 = vld [vmem:[%s1397 + $0x34] sm:$0x1]
      %v2630 = vld [vmem:[%s1397 + $0x38] sm:$0xe]
      %v2631 = vld [vmem:[%s1397 + $0x3c] sm:$0x1]
      %v2632 = vld [vmem:[#allocation4] sm:$0xff]
      %v2633 = vld [vmem:[#allocation4 + $0x8] sm:$0xff]
      %v2634 = vld [vmem:[#allocation4 + $0x10] sm:$0xff]
      %v2635 = vld [vmem:[#allocation4 + $0x18] sm:$0xff]
      %v2636 = vld [vmem:[#allocation4 + $0x20] sm:$0xff]
      %v2637 = vld [vmem:[#allocation4 + $0x28] sm:$0xff]
      %v2638 = vld [vmem:[#allocation4 + $0x30] sm:$0xff]
      %v2639 = vld [vmem:[#allocation4 + $0x38] sm:$0xff]
      %v2656 = vrot.slane %v2616, 5
      %v2657 = vrot.slane %v2656, 4
      %v2658 = vrot.slane %v2617, 5
      %v2659 = vsel %vm863, %v2657, %v2658
      %v2660 = vrot.slane %v2618, 5
      %v2661 = vrot.slane %v2660, 4
      %v2662 = vrot.slane %v2619, 5
      %v2663 = vsel %vm863, %v2661, %v2662
      %v2664 = vrot.slane %v2620, 5
      %v2665 = vrot.slane %v2664, 4
      %v2666 = vrot.slane %v2621, 5
      %v2667 = vsel %vm863, %v2665, %v2666
      %v2668 = vrot.slane %v2622, 5
      %v2669 = vrot.slane %v2668, 4
      %v2670 = vrot.slane %v2623, 5
      %v2671 = vsel %vm863, %v2669, %v2670
      %v2672 = vrot.slane %v2624, 5
      %v2673 = vrot.slane %v2672, 4
      %v2674 = vrot.slane %v2625, 5
      %v2675 = vsel %vm863, %v2673, %v2674
      %v2676 = vrot.slane %v2626, 5
      %v2677 = vrot.slane %v2676, 4
      %v2678 = vrot.slane %v2627, 5
      %v2679 = vsel %vm863, %v2677, %v2678
      %v2680 = vrot.slane %v2628, 5
      %v2681 = vrot.slane %v2680, 4
      %v2682 = vrot.slane %v2629, 5
      %v2683 = vsel %vm863, %v2681, %v2682
      %v2684 = vrot.slane %v2630, 5
      %v2685 = vrot.slane %v2684, 4
      %v2686 = vrot.slane %v2631, 5
      %v2687 = vsel %vm863, %v2685, %v2686
      %v2688 = vld [vmem:[%s3 + $0x140] sm:$0xf]
      %v2689 = vld [vmem:[%s3 + $0x144] sm:$0xf]
      %v2690 = vld [vmem:[%s3 + $0x148] sm:$0xf]
      %v2691 = vld [vmem:[%s3 + $0x14c] sm:$0xf]
      %v2692 = vld [vmem:[%s3 + $0x150] sm:$0xf]
      %v2693 = vld [vmem:[%s3 + $0x154] sm:$0xf]
      %v2694 = vld [vmem:[%s3 + $0x158] sm:$0xf]
      %v2695 = vld [vmem:[%s3 + $0x15c] sm:$0xf]
      %v2696 = vld [vmem:[%s3 + $0x160] sm:$0xf]
      %v2697 = vld [vmem:[%s3 + $0x164] sm:$0xf]
      %v2698 = vld [vmem:[%s3 + $0x168] sm:$0xf]
      %v2699 = vld [vmem:[%s3 + $0x16c] sm:$0xf]
      %v2700 = vld [vmem:[%s3 + $0x170] sm:$0xf]
      %v2701 = vld [vmem:[%s3 + $0x174] sm:$0xf]
      %v2702 = vld [vmem:[%s3 + $0x178] sm:$0xf]
      %v2703 = vld [vmem:[%s3 + $0x17c] sm:$0xf]
      %v2704 = vunpack.c.l.b16 %v2659
      %v2705 = vunpack.c.l.b16 %v2663
      %v2706 = vunpack.c.l.b16 %v2667
      %v2707 = vunpack.c.l.b16 %v2671
      %v2708 = vunpack.c.l.b16 %v2675
      %v2709 = vunpack.c.l.b16 %v2679
      %v2710 = vunpack.c.l.b16 %v2683
      %v2711 = vunpack.c.l.b16 %v2687
      %v2712 = vpack.c.b16 %v2705, %v2704
      %v2713 = vpack.c.b16 %v2707, %v2706
      %v2714 = vpack.c.b16 %v2709, %v2708
      %v2715 = vpack.c.b16 %v2711, %v2710
      %v2736 = vunpack.c.l.b16 %v2688
      %v2737 = vunpack.c.l.b16 %v2689
      %v2738 = vunpack.c.l.b16 %v2690
      %v2739 = vunpack.c.l.b16 %v2691
      %v2740 = vunpack.c.l.b16 %v2692
      %v2741 = vunpack.c.l.b16 %v2693
      %v2742 = vunpack.c.l.b16 %v2694
      %v2743 = vunpack.c.l.b16 %v2695
      %v2744 = vunpack.c.l.b16 %v2696
      %v2745 = vunpack.c.l.b16 %v2697
      %v2746 = vunpack.c.l.b16 %v2698
      %v2747 = vunpack.c.l.b16 %v2699
      %v2748 = vunpack.c.l.b16 %v2700
      %v2749 = vunpack.c.l.b16 %v2701
      %v2750 = vunpack.c.l.b16 %v2702
      %v2751 = vunpack.c.l.b16 %v2703
      %v2752 = vpack.c.b16 %v2737, %v2736
      %v2753 = vpack.c.b16 %v2739, %v2738
      %v2754 = vpack.c.b16 %v2741, %v2740
      %v2755 = vpack.c.b16 %v2743, %v2742
      %v2756 = vpack.c.b16 %v2745, %v2744
      %v2757 = vpack.c.b16 %v2747, %v2746
      %v2758 = vpack.c.b16 %v2749, %v2748
      %v2759 = vpack.c.b16 %v2751, %v2750
      %2768 = vmatpush.bf16.msra.mxu0 %v2759
      %2769 = vmatpush.bf16.msra.mxu0 %v2758
      %2770 = vmatpush.bf16.msra.mxu0 %v2757
      %2771 = vmatpush.bf16.msra.mxu0 %v2756
      %2772 = vmatpush.bf16.msra.mxu0 %v2755
      %2773 = vmatpush.bf16.msra.mxu0 %v2754
      %2774 = vmatpush.bf16.msra.mxu0 %v2753
      %2775 = vmatpush.bf16.msra.mxu0 %v2752
      %2776 = vmatmul.bf16.gmra.mxu0 %v2712
      %v2777 = vpop.f32.mrf.mxu0
      %v2778 = vadd.f32 0.0, %v2777
      %v2779 = vpop.f32.mrf.mxu0
      %v2780 = vadd.f32 0.0, %v2779
      %2781 = vmatmul.bf16.gmra.mxu0 %v2713
      %v2782 = vpop.f32.mrf.mxu0
      %v2783 = vadd.f32 0.0, %v2782
      %v2784 = vpop.f32.mrf.mxu0
      %v2785 = vadd.f32 0.0, %v2784
      %2786 = vmatmul.bf16.gmra.mxu0 %v2714
      %v2787 = vpop.f32.mrf.mxu0
      %v2788 = vadd.f32 0.0, %v2787
      %v2789 = vpop.f32.mrf.mxu0
      %v2790 = vadd.f32 0.0, %v2789
      %2791 = vmatmul.bf16.gmra.mxu0 %v2715
      %v2792 = vpop.f32.mrf.mxu0
      %v2793 = vadd.f32 0.0, %v2792
      %v2794 = vpop.f32.mrf.mxu0
      %v2795 = vadd.f32 0.0, %v2794
      %2796 = vdwg.mxu0
      %v2797 = vadd.f32 %v2632, %v2778
      %v2798 = vadd.f32 %v2633, %v2780
      %v2799 = vadd.f32 %v2634, %v2783
      %v2800 = vadd.f32 %v2635, %v2785
      %v2801 = vadd.f32 %v2636, %v2788
      %v2802 = vadd.f32 %v2637, %v2790
      %v2803 = vadd.f32 %v2638, %v2793
      %v2804 = vadd.f32 %v2639, %v2795
      %2805 = vst.msk [vmem:[#allocation4] sm:$0xff] %vm554, %v2797
      %2806 = vst.msk [vmem:[#allocation4 + $0x8] sm:$0xff] %vm554, %v2798
      %2807 = vst.msk [vmem:[#allocation4 + $0x10] sm:$0xff] %vm554, %v2799
      %2808 = vst.msk [vmem:[#allocation4 + $0x18] sm:$0xff] %vm554, %v2800
      %2809 = vst.msk [vmem:[#allocation4 + $0x20] sm:$0xff] %vm554, %v2801
      %2810 = vst.msk [vmem:[#allocation4 + $0x28] sm:$0xff] %vm554, %v2802
      %2811 = vst.msk [vmem:[#allocation4 + $0x30] sm:$0xff] %vm554, %v2803
      %2812 = vst.msk [vmem:[#allocation4 + $0x38] sm:$0xff] %vm554, %v2804
      %s2813 = sadd.s32 0, 2
      %s2814 = smul.u32 %s2813, 2
      %s2815 = smul.addr %s2814, 4
      %s2816 = scalar_lea.vmem [#allocation2], %s2815
      %v2817 = vld [vmem:[%s2816] sm:$0xf]
      %v2818 = vld [vmem:[%s2816 + $0x8] sm:$0xf]
      %v2819 = vld [vmem:[%s2816 + $0x10] sm:$0xf]
      %v2820 = vld [vmem:[%s2816 + $0x18] sm:$0xf]
      %v2821 = vld [vmem:[%s2816 + $0x20] sm:$0xf]
      %v2822 = vld [vmem:[%s2816 + $0x28] sm:$0xf]
      %v2823 = vld [vmem:[%s2816 + $0x30] sm:$0xf]
      %v2824 = vld [vmem:[%s2816 + $0x38] sm:$0xf]
      %v2825 = vld [vmem:[#allocation4] sm:$0xff]
      %v2826 = vld [vmem:[#allocation4 + $0x8] sm:$0xff]
      %v2827 = vld [vmem:[#allocation4 + $0x10] sm:$0xff]
      %v2828 = vld [vmem:[#allocation4 + $0x18] sm:$0xff]
      %v2829 = vld [vmem:[#allocation4 + $0x20] sm:$0xff]
      %v2830 = vld [vmem:[#allocation4 + $0x28] sm:$0xff]
      %v2831 = vld [vmem:[#allocation4 + $0x30] sm:$0xff]
      %v2832 = vld [vmem:[#allocation4 + $0x38] sm:$0xff]
      %v2833 = vld [vmem:[%s3 + $0x180] sm:$0xf]
      %v2834 = vld [vmem:[%s3 + $0x184] sm:$0xf]
      %v2835 = vld [vmem:[%s3 + $0x188] sm:$0xf]
      %v2836 = vld [vmem:[%s3 + $0x18c] sm:$0xf]
      %v2837 = vld [vmem:[%s3 + $0x190] sm:$0xf]
      %v2838 = vld [vmem:[%s3 + $0x194] sm:$0xf]
      %v2839 = vld [vmem:[%s3 + $0x198] sm:$0xf]
      %v2840 = vld [vmem:[%s3 + $0x19c] sm:$0xf]
      %v2841 = vld [vmem:[%s3 + $0x1a0] sm:$0xf]
      %v2842 = vld [vmem:[%s3 + $0x1a4] sm:$0xf]
      %v2843 = vld [vmem:[%s3 + $0x1a8] sm:$0xf]
      %v2844 = vld [vmem:[%s3 + $0x1ac] sm:$0xf]
      %v2845 = vld [vmem:[%s3 + $0x1b0] sm:$0xf]
      %v2846 = vld [vmem:[%s3 + $0x1b4] sm:$0xf]
      %v2847 = vld [vmem:[%s3 + $0x1b8] sm:$0xf]
      %v2848 = vld [vmem:[%s3 + $0x1bc] sm:$0xf]
      %v2857 = vunpack.c.l.b16 %v2817
      %v2858 = vunpack.c.l.b16 %v2818
      %v2859 = vunpack.c.l.b16 %v2819
      %v2860 = vunpack.c.l.b16 %v2820
      %v2861 = vunpack.c.l.b16 %v2821
      %v2862 = vunpack.c.l.b16 %v2822
      %v2863 = vunpack.c.l.b16 %v2823
      %v2864 = vunpack.c.l.b16 %v2824
      %v2865 = vpack.c.b16 %v2858, %v2857
      %v2866 = vpack.c.b16 %v2860, %v2859
      %v2867 = vpack.c.b16 %v2862, %v2861
      %v2868 = vpack.c.b16 %v2864, %v2863
      %v2889 = vunpack.c.l.b16 %v2833
      %v2890 = vunpack.c.l.b16 %v2834
      %v2891 = vunpack.c.l.b16 %v2835
      %v2892 = vunpack.c.l.b16 %v2836
      %v2893 = vunpack.c.l.b16 %v2837
      %v2894 = vunpack.c.l.b16 %v2838
      %v2895 = vunpack.c.l.b16 %v2839
      %v2896 = vunpack.c.l.b16 %v2840
      %v2897 = vunpack.c.l.b16 %v2841
      %v2898 = vunpack.c.l.b16 %v2842
      %v2899 = vunpack.c.l.b16 %v2843
      %v2900 = vunpack.c.l.b16 %v2844
      %v2901 = vunpack.c.l.b16 %v2845
      %v2902 = vunpack.c.l.b16 %v2846
      %v2903 = vunpack.c.l.b16 %v2847
      %v2904 = vunpack.c.l.b16 %v2848
      %v2905 = vpack.c.b16 %v2890, %v2889
      %v2906 = vpack.c.b16 %v2892, %v2891
      %v2907 = vpack.c.b16 %v2894, %v2893
      %v2908 = vpack.c.b16 %v2896, %v2895
      %v2909 = vpack.c.b16 %v2898, %v2897
      %v2910 = vpack.c.b16 %v2900, %v2899
      %v2911 = vpack.c.b16 %v2902, %v2901
      %v2912 = vpack.c.b16 %v2904, %v2903
      %2921 = vmatpush.bf16.msra.mxu0 %v2912
      %2922 = vmatpush.bf16.msra.mxu0 %v2911
      %2923 = vmatpush.bf16.msra.mxu0 %v2910
      %2924 = vmatpush.bf16.msra.mxu0 %v2909
      %2925 = vmatpush.bf16.msra.mxu0 %v2908
      %2926 = vmatpush.bf16.msra.mxu0 %v2907
      %2927 = vmatpush.bf16.msra.mxu0 %v2906
      %2928 = vmatpush.bf16.msra.mxu0 %v2905
      %2929 = vmatmul.bf16.gmra.mxu0 %v2865
      %v2930 = vpop.f32.mrf.mxu0
      %v2931 = vadd.f32 0.0, %v2930
      %v2932 = vpop.f32.mrf.mxu0
      %v2933 = vadd.f32 0.0, %v2932
      %2934 = vmatmul.bf16.gmra.mxu0 %v2866
      %v2935 = vpop.f32.mrf.mxu0
      %v2936 = vadd.f32 0.0, %v2935
      %v2937 = vpop.f32.mrf.mxu0
      %v2938 = vadd.f32 0.0, %v2937
      %2939 = vmatmul.bf16.gmra.mxu0 %v2867
      %v2940 = vpop.f32.mrf.mxu0
      %v2941 = vadd.f32 0.0, %v2940
      %v2942 = vpop.f32.mrf.mxu0
      %v2943 = vadd.f32 0.0, %v2942
      %2944 = vmatmul.bf16.gmra.mxu0 %v2868
      %v2945 = vpop.f32.mrf.mxu0
      %v2946 = vadd.f32 0.0, %v2945
      %v2947 = vpop.f32.mrf.mxu0
      %v2948 = vadd.f32 0.0, %v2947
      %2949 = vdwg.mxu0
      %v2950 = vadd.f32 %v2825, %v2931
      %v2951 = vadd.f32 %v2826, %v2933
      %v2952 = vadd.f32 %v2827, %v2936
      %v2953 = vadd.f32 %v2828, %v2938
      %v2954 = vadd.f32 %v2829, %v2941
      %v2955 = vadd.f32 %v2830, %v2943
      %v2956 = vadd.f32 %v2831, %v2946
      %v2957 = vadd.f32 %v2832, %v2948
      %2958 = vst.msk [vmem:[#allocation4] sm:$0xff] %vm554, %v2950
      %2959 = vst.msk [vmem:[#allocation4 + $0x8] sm:$0xff] %vm554, %v2951
      %2960 = vst.msk [vmem:[#allocation4 + $0x10] sm:$0xff] %vm554, %v2952
      %2961 = vst.msk [vmem:[#allocation4 + $0x18] sm:$0xff] %vm554, %v2953
      %2962 = vst.msk [vmem:[#allocation4 + $0x20] sm:$0xff] %vm554, %v2954
      %2963 = vst.msk [vmem:[#allocation4 + $0x28] sm:$0xff] %vm554, %v2955
      %2964 = vst.msk [vmem:[#allocation4 + $0x30] sm:$0xff] %vm554, %v2956
      %2965 = vst.msk [vmem:[#allocation4 + $0x38] sm:$0xff] %vm554, %v2957
      %v2966 = vld [vmem:[%s2816] sm:$0xf]
      %v2967 = vld [vmem:[%s2816 + $0x4] sm:$0x1]
      %v2968 = vld [vmem:[%s2816 + $0x8] sm:$0xf]
      %v2969 = vld [vmem:[%s2816 + $0xc] sm:$0x1]
      %v2970 = vld [vmem:[%s2816 + $0x10] sm:$0xf]
      %v2971 = vld [vmem:[%s2816 + $0x14] sm:$0x1]
      %v2972 = vld [vmem:[%s2816 + $0x18] sm:$0xf]
      %v2973 = vld [vmem:[%s2816 + $0x1c] sm:$0x1]
      %v2974 = vld [vmem:[%s2816 + $0x20] sm:$0xf]
      %v2975 = vld [vmem:[%s2816 + $0x24] sm:$0x1]
      %v2976 = vld [vmem:[%s2816 + $0x28] sm:$0xf]
      %v2977 = vld [vmem:[%s2816 + $0x2c] sm:$0x1]
      %v2978 = vld [vmem:[%s2816 + $0x30] sm:$0xf]
      %v2979 = vld [vmem:[%s2816 + $0x34] sm:$0x1]
      %v2980 = vld [vmem:[%s2816 + $0x38] sm:$0xf]
      %v2981 = vld [vmem:[%s2816 + $0x3c] sm:$0x1]
      %v2982 = vld [vmem:[#allocation4] sm:$0xff]
      %v2983 = vld [vmem:[#allocation4 + $0x8] sm:$0xff]
      %v2984 = vld [vmem:[#allocation4 + $0x10] sm:$0xff]
      %v2985 = vld [vmem:[#allocation4 + $0x18] sm:$0xff]
      %v2986 = vld [vmem:[#allocation4 + $0x20] sm:$0xff]
      %v2987 = vld [vmem:[#allocation4 + $0x28] sm:$0xff]
      %v2988 = vld [vmem:[#allocation4 + $0x30] sm:$0xff]
      %v2989 = vld [vmem:[#allocation4 + $0x38] sm:$0xff]
      %v2991 = vshrl.u32 %v2966, 16
      %v2993 = vrot.slane %v2991, 4
      %v2994 = vshll.u32 %v2966, 16
      %v2996 = vrot.slane %v2994, 5
      %v2997 = vor.u32 %v2993, %v2996
      %v2998 = vrot.slane %v2997, 4
      %v3000 = vshll.u32 %v2967, 16
      %v3002 = vrot.slane %v3000, 5
      %v3003 = vsel %vm420, %v2998, %v3002
      %v3005 = vshrl.u32 %v2968, 16
      %v3007 = vrot.slane %v3005, 4
      %v3008 = vshll.u32 %v2968, 16
      %v3010 = vrot.slane %v3008, 5
      %v3011 = vor.u32 %v3007, %v3010
      %v3012 = vrot.slane %v3011, 4
      %v3014 = vshll.u32 %v2969, 16
      %v3016 = vrot.slane %v3014, 5
      %v3017 = vsel %vm420, %v3012, %v3016
      %v3019 = vshrl.u32 %v2970, 16
      %v3021 = vrot.slane %v3019, 4
      %v3022 = vshll.u32 %v2970, 16
      %v3024 = vrot.slane %v3022, 5
      %v3025 = vor.u32 %v3021, %v3024
      %v3026 = vrot.slane %v3025, 4
      %v3028 = vshll.u32 %v2971, 16
      %v3030 = vrot.slane %v3028, 5
      %v3031 = vsel %vm420, %v3026, %v3030
      %v3033 = vshrl.u32 %v2972, 16
      %v3035 = vrot.slane %v3033, 4
      %v3036 = vshll.u32 %v2972, 16
      %v3038 = vrot.slane %v3036, 5
      %v3039 = vor.u32 %v3035, %v3038
      %v3040 = vrot.slane %v3039, 4
      %v3042 = vshll.u32 %v2973, 16
      %v3044 = vrot.slane %v3042, 5
      %v3045 = vsel %vm420, %v3040, %v3044
      %v3047 = vshrl.u32 %v2974, 16
      %v3049 = vrot.slane %v3047, 4
      %v3050 = vshll.u32 %v2974, 16
      %v3052 = vrot.slane %v3050, 5
      %v3053 = vor.u32 %v3049, %v3052
      %v3054 = vrot.slane %v3053, 4
      %v3056 = vshll.u32 %v2975, 16
      %v3058 = vrot.slane %v3056, 5
      %v3059 = vsel %vm420, %v3054, %v3058
      %v3061 = vshrl.u32 %v2976, 16
      %v3063 = vrot.slane %v3061, 4
      %v3064 = vshll.u32 %v2976, 16
      %v3066 = vrot.slane %v3064, 5
      %v3067 = vor.u32 %v3063, %v3066
      %v3068 = vrot.slane %v3067, 4
      %v3070 = vshll.u32 %v2977, 16
      %v3072 = vrot.slane %v3070, 5
      %v3073 = vsel %vm420, %v3068, %v3072
      %v3075 = vshrl.u32 %v2978, 16
      %v3077 = vrot.slane %v3075, 4
      %v3078 = vshll.u32 %v2978, 16
      %v3080 = vrot.slane %v3078, 5
      %v3081 = vor.u32 %v3077, %v3080
      %v3082 = vrot.slane %v3081, 4
      %v3084 = vshll.u32 %v2979, 16
      %v3086 = vrot.slane %v3084, 5
      %v3087 = vsel %vm420, %v3082, %v3086
      %v3089 = vshrl.u32 %v2980, 16
      %v3091 = vrot.slane %v3089, 4
      %v3092 = vshll.u32 %v2980, 16
      %v3094 = vrot.slane %v3092, 5
      %v3095 = vor.u32 %v3091, %v3094
      %v3096 = vrot.slane %v3095, 4
      %v3098 = vshll.u32 %v2981, 16
      %v3100 = vrot.slane %v3098, 5
      %v3101 = vsel %vm420, %v3096, %v3100
      %v3102 = vld [vmem:[%s3 + $0x1c0] sm:$0xf]
      %v3103 = vld [vmem:[%s3 + $0x1c4] sm:$0xf]
      %v3104 = vld [vmem:[%s3 + $0x1c8] sm:$0xf]
      %v3105 = vld [vmem:[%s3 + $0x1cc] sm:$0xf]
      %v3106 = vld [vmem:[%s3 + $0x1d0] sm:$0xf]
      %v3107 = vld [vmem:[%s3 + $0x1d4] sm:$0xf]
      %v3108 = vld [vmem:[%s3 + $0x1d8] sm:$0xf]
      %v3109 = vld [vmem:[%s3 + $0x1dc] sm:$0xf]
      %v3110 = vld [vmem:[%s3 + $0x1e0] sm:$0xf]
      %v3111 = vld [vmem:[%s3 + $0x1e4] sm:$0xf]
      %v3112 = vld [vmem:[%s3 + $0x1e8] sm:$0xf]
      %v3113 = vld [vmem:[%s3 + $0x1ec] sm:$0xf]
      %v3114 = vld [vmem:[%s3 + $0x1f0] sm:$0xf]
      %v3115 = vld [vmem:[%s3 + $0x1f4] sm:$0xf]
      %v3116 = vld [vmem:[%s3 + $0x1f8] sm:$0xf]
      %v3117 = vld [vmem:[%s3 + $0x1fc] sm:$0xf]
      %v3118 = vunpack.c.l.b16 %v3003
      %v3119 = vunpack.c.l.b16 %v3017
      %v3120 = vunpack.c.l.b16 %v3031
      %v3121 = vunpack.c.l.b16 %v3045
      %v3122 = vunpack.c.l.b16 %v3059
      %v3123 = vunpack.c.l.b16 %v3073
      %v3124 = vunpack.c.l.b16 %v3087
      %v3125 = vunpack.c.l.b16 %v3101
      %v3126 = vpack.c.b16 %v3119, %v3118
      %v3127 = vpack.c.b16 %v3121, %v3120
      %v3128 = vpack.c.b16 %v3123, %v3122
      %v3129 = vpack.c.b16 %v3125, %v3124
      %v3150 = vunpack.c.l.b16 %v3102
      %v3151 = vunpack.c.l.b16 %v3103
      %v3152 = vunpack.c.l.b16 %v3104
      %v3153 = vunpack.c.l.b16 %v3105
      %v3154 = vunpack.c.l.b16 %v3106
      %v3155 = vunpack.c.l.b16 %v3107
      %v3156 = vunpack.c.l.b16 %v3108
      %v3157 = vunpack.c.l.b16 %v3109
      %v3158 = vunpack.c.l.b16 %v3110
      %v3159 = vunpack.c.l.b16 %v3111
      %v3160 = vunpack.c.l.b16 %v3112
      %v3161 = vunpack.c.l.b16 %v3113
      %v3162 = vunpack.c.l.b16 %v3114
      %v3163 = vunpack.c.l.b16 %v3115
      %v3164 = vunpack.c.l.b16 %v3116
      %v3165 = vunpack.c.l.b16 %v3117
      %v3166 = vpack.c.b16 %v3151, %v3150
      %v3167 = vpack.c.b16 %v3153, %v3152
      %v3168 = vpack.c.b16 %v3155, %v3154
      %v3169 = vpack.c.b16 %v3157, %v3156
      %v3170 = vpack.c.b16 %v3159, %v3158
      %v3171 = vpack.c.b16 %v3161, %v3160
      %v3172 = vpack.c.b16 %v3163, %v3162
      %v3173 = vpack.c.b16 %v3165, %v3164
      %3182 = vmatpush.bf16.msra.mxu0 %v3173
      %3183 = vmatpush.bf16.msra.mxu0 %v3172
      %3184 = vmatpush.bf16.msra.mxu0 %v3171
      %3185 = vmatpush.bf16.msra.mxu0 %v3170
      %3186 = vmatpush.bf16.msra.mxu0 %v3169
      %3187 = vmatpush.bf16.msra.mxu0 %v3168
      %3188 = vmatpush.bf16.msra.mxu0 %v3167
      %3189 = vmatpush.bf16.msra.mxu0 %v3166
      %3190 = vmatmul.bf16.gmra.mxu0 %v3126
      %v3191 = vpop.f32.mrf.mxu0
      %v3192 = vadd.f32 0.0, %v3191
      %v3193 = vpop.f32.mrf.mxu0
      %v3194 = vadd.f32 0.0, %v3193
      %3195 = vmatmul.bf16.gmra.mxu0 %v3127
      %v3196 = vpop.f32.mrf.mxu0
      %v3197 = vadd.f32 0.0, %v3196
      %v3198 = vpop.f32.mrf.mxu0
      %v3199 = vadd.f32 0.0, %v3198
      %3200 = vmatmul.bf16.gmra.mxu0 %v3128
      %v3201 = vpop.f32.mrf.mxu0
      %v3202 = vadd.f32 0.0, %v3201
      %v3203 = vpop.f32.mrf.mxu0
      %v3204 = vadd.f32 0.0, %v3203
      %3205 = vmatmul.bf16.gmra.mxu0 %v3129
      %v3206 = vpop.f32.mrf.mxu0
      %v3207 = vadd.f32 0.0, %v3206
      %v3208 = vpop.f32.mrf.mxu0
      %v3209 = vadd.f32 0.0, %v3208
      %3210 = vdwg.mxu0
      %v3211 = vadd.f32 %v2982, %v3192
      %v3212 = vadd.f32 %v2983, %v3194
      %v3213 = vadd.f32 %v2984, %v3197
      %v3214 = vadd.f32 %v2985, %v3199
      %v3215 = vadd.f32 %v2986, %v3202
      %v3216 = vadd.f32 %v2987, %v3204
      %v3217 = vadd.f32 %v2988, %v3207
      %v3218 = vadd.f32 %v2989, %v3209
      %3219 = vst.msk [vmem:[#allocation4] sm:$0xff] %vm554, %v3211
      %3220 = vst.msk [vmem:[#allocation4 + $0x8] sm:$0xff] %vm554, %v3212
      %3221 = vst.msk [vmem:[#allocation4 + $0x10] sm:$0xff] %vm554, %v3213
      %3222 = vst.msk [vmem:[#allocation4 + $0x18] sm:$0xff] %vm554, %v3214
      %3223 = vst.msk [vmem:[#allocation4 + $0x20] sm:$0xff] %vm554, %v3215
      %3224 = vst.msk [vmem:[#allocation4 + $0x28] sm:$0xff] %vm554, %v3216
      %3225 = vst.msk [vmem:[#allocation4 + $0x30] sm:$0xff] %vm554, %v3217
      %3226 = vst.msk [vmem:[#allocation4 + $0x38] sm:$0xff] %vm554, %v3218
      %v3227 = vld [vmem:[%s2816] sm:$0xe]
      %v3228 = vld [vmem:[%s2816 + $0x4] sm:$0x1]
      %v3229 = vld [vmem:[%s2816 + $0x8] sm:$0xe]
      %v3230 = vld [vmem:[%s2816 + $0xc] sm:$0x1]
      %v3231 = vld [vmem:[%s2816 + $0x10] sm:$0xe]
      %v3232 = vld [vmem:[%s2816 + $0x14] sm:$0x1]
      %v3233 = vld [vmem:[%s2816 + $0x18] sm:$0xe]
      %v3234 = vld [vmem:[%s2816 + $0x1c] sm:$0x1]
      %v3235 = vld [vmem:[%s2816 + $0x20] sm:$0xe]
      %v3236 = vld [vmem:[%s2816 + $0x24] sm:$0x1]
      %v3237 = vld [vmem:[%s2816 + $0x28] sm:$0xe]
      %v3238 = vld [vmem:[%s2816 + $0x2c] sm:$0x1]
      %v3239 = vld [vmem:[%s2816 + $0x30] sm:$0xe]
      %v3240 = vld [vmem:[%s2816 + $0x34] sm:$0x1]
      %v3241 = vld [vmem:[%s2816 + $0x38] sm:$0xe]
      %v3242 = vld [vmem:[%s2816 + $0x3c] sm:$0x1]
      %v3243 = vld [vmem:[#allocation4] sm:$0xff]
      %v3244 = vld [vmem:[#allocation4 + $0x8] sm:$0xff]
      %v3245 = vld [vmem:[#allocation4 + $0x10] sm:$0xff]
      %v3246 = vld [vmem:[#allocation4 + $0x18] sm:$0xff]
      %v3247 = vld [vmem:[#allocation4 + $0x20] sm:$0xff]
      %v3248 = vld [vmem:[#allocation4 + $0x28] sm:$0xff]
      %v3249 = vld [vmem:[#allocation4 + $0x30] sm:$0xff]
      %v3250 = vld [vmem:[#allocation4 + $0x38] sm:$0xff]
      %v3267 = vrot.slane %v3227, 5
      %v3268 = vrot.slane %v3267, 4
      %v3269 = vrot.slane %v3228, 5
      %v3270 = vsel %vm863, %v3268, %v3269
      %v3271 = vrot.slane %v3229, 5
      %v3272 = vrot.slane %v3271, 4
      %v3273 = vrot.slane %v3230, 5
      %v3274 = vsel %vm863, %v3272, %v3273
      %v3275 = vrot.slane %v3231, 5
      %v3276 = vrot.slane %v3275, 4
      %v3277 = vrot.slane %v3232, 5
      %v3278 = vsel %vm863, %v3276, %v3277
      %v3279 = vrot.slane %v3233, 5
      %v3280 = vrot.slane %v3279, 4
      %v3281 = vrot.slane %v3234, 5
      %v3282 = vsel %vm863, %v3280, %v3281
      %v3283 = vrot.slane %v3235, 5
      %v3284 = vrot.slane %v3283, 4
      %v3285 = vrot.slane %v3236, 5
      %v3286 = vsel %vm863, %v3284, %v3285
      %v3287 = vrot.slane %v3237, 5
      %v3288 = vrot.slane %v3287, 4
      %v3289 = vrot.slane %v3238, 5
      %v3290 = vsel %vm863, %v3288, %v3289
      %v3291 = vrot.slane %v3239, 5
      %v3292 = vrot.slane %v3291, 4
      %v3293 = vrot.slane %v3240, 5
      %v3294 = vsel %vm863, %v3292, %v3293
      %v3295 = vrot.slane %v3241, 5
      %v3296 = vrot.slane %v3295, 4
      %v3297 = vrot.slane %v3242, 5
      %v3298 = vsel %vm863, %v3296, %v3297
      %v3299 = vld [vmem:[%s3 + $0x200] sm:$0xf]
      %v3300 = vld [vmem:[%s3 + $0x204] sm:$0xf]
      %v3301 = vld [vmem:[%s3 + $0x208] sm:$0xf]
      %v3302 = vld [vmem:[%s3 + $0x20c] sm:$0xf]
      %v3303 = vld [vmem:[%s3 + $0x210] sm:$0xf]
      %v3304 = vld [vmem:[%s3 + $0x214] sm:$0xf]
      %v3305 = vld [vmem:[%s3 + $0x218] sm:$0xf]
      %v3306 = vld [vmem:[%s3 + $0x21c] sm:$0xf]
      %v3307 = vld [vmem:[%s3 + $0x220] sm:$0xf]
      %v3308 = vld [vmem:[%s3 + $0x224] sm:$0xf]
      %v3309 = vld [vmem:[%s3 + $0x228] sm:$0xf]
      %v3310 = vld [vmem:[%s3 + $0x22c] sm:$0xf]
      %v3311 = vld [vmem:[%s3 + $0x230] sm:$0xf]
      %v3312 = vld [vmem:[%s3 + $0x234] sm:$0xf]
      %v3313 = vld [vmem:[%s3 + $0x238] sm:$0xf]
      %v3314 = vld [vmem:[%s3 + $0x23c] sm:$0xf]
      %v3315 = vunpack.c.l.b16 %v3270
      %v3316 = vunpack.c.l.b16 %v3274
      %v3317 = vunpack.c.l.b16 %v3278
      %v3318 = vunpack.c.l.b16 %v3282
      %v3319 = vunpack.c.l.b16 %v3286
      %v3320 = vunpack.c.l.b16 %v3290
      %v3321 = vunpack.c.l.b16 %v3294
      %v3322 = vunpack.c.l.b16 %v3298
      %v3323 = vpack.c.b16 %v3316, %v3315
      %v3324 = vpack.c.b16 %v3318, %v3317
      %v3325 = vpack.c.b16 %v3320, %v3319
      %v3326 = vpack.c.b16 %v3322, %v3321
      %v3347 = vunpack.c.l.b16 %v3299
      %v3348 = vunpack.c.l.b16 %v3300
      %v3349 = vunpack.c.l.b16 %v3301
      %v3350 = vunpack.c.l.b16 %v3302
      %v3351 = vunpack.c.l.b16 %v3303
      %v3352 = vunpack.c.l.b16 %v3304
      %v3353 = vunpack.c.l.b16 %v3305
      %v3354 = vunpack.c.l.b16 %v3306
      %v3355 = vunpack.c.l.b16 %v3307
      %v3356 = vunpack.c.l.b16 %v3308
      %v3357 = vunpack.c.l.b16 %v3309
      %v3358 = vunpack.c.l.b16 %v3310
      %v3359 = vunpack.c.l.b16 %v3311
      %v3360 = vunpack.c.l.b16 %v3312
      %v3361 = vunpack.c.l.b16 %v3313
      %v3362 = vunpack.c.l.b16 %v3314
      %v3363 = vpack.c.b16 %v3348, %v3347
      %v3364 = vpack.c.b16 %v3350, %v3349
      %v3365 = vpack.c.b16 %v3352, %v3351
      %v3366 = vpack.c.b16 %v3354, %v3353
      %v3367 = vpack.c.b16 %v3356, %v3355
      %v3368 = vpack.c.b16 %v3358, %v3357
      %v3369 = vpack.c.b16 %v3360, %v3359
      %v3370 = vpack.c.b16 %v3362, %v3361
      %3379 = vmatpush.bf16.msra.mxu0 %v3370
      %3380 = vmatpush.bf16.msra.mxu0 %v3369
      %3381 = vmatpush.bf16.msra.mxu0 %v3368
      %3382 = vmatpush.bf16.msra.mxu0 %v3367
      %3383 = vmatpush.bf16.msra.mxu0 %v3366
      %3384 = vmatpush.bf16.msra.mxu0 %v3365
      %3385 = vmatpush.bf16.msra.mxu0 %v3364
      %3386 = vmatpush.bf16.msra.mxu0 %v3363
      %3387 = vmatmul.bf16.gmra.mxu0 %v3323
      %v3388 = vpop.f32.mrf.mxu0
      %v3389 = vadd.f32 0.0, %v3388
      %v3390 = vpop.f32.mrf.mxu0
      %v3391 = vadd.f32 0.0, %v3390
      %3392 = vmatmul.bf16.gmra.mxu0 %v3324
      %v3393 = vpop.f32.mrf.mxu0
      %v3394 = vadd.f32 0.0, %v3393
      %v3395 = vpop.f32.mrf.mxu0
      %v3396 = vadd.f32 0.0, %v3395
      %3397 = vmatmul.bf16.gmra.mxu0 %v3325
      %v3398 = vpop.f32.mrf.mxu0
      %v3399 = vadd.f32 0.0, %v3398
      %v3400 = vpop.f32.mrf.mxu0
      %v3401 = vadd.f32 0.0, %v3400
      %3402 = vmatmul.bf16.gmra.mxu0 %v3326
      %v3403 = vpop.f32.mrf.mxu0
      %v3404 = vadd.f32 0.0, %v3403
      %v3405 = vpop.f32.mrf.mxu0
      %v3406 = vadd.f32 0.0, %v3405
      %3407 = vdwg.mxu0
      %v3408 = vadd.f32 %v3243, %v3389
      %v3409 = vadd.f32 %v3244, %v3391
      %v3410 = vadd.f32 %v3245, %v3394
      %v3411 = vadd.f32 %v3246, %v3396
      %v3412 = vadd.f32 %v3247, %v3399
      %v3413 = vadd.f32 %v3248, %v3401
      %v3414 = vadd.f32 %v3249, %v3404
      %v3415 = vadd.f32 %v3250, %v3406
      %3416 = vst.msk [vmem:[#allocation4] sm:$0xff] %vm554, %v3408
      %3417 = vst.msk [vmem:[#allocation4 + $0x8] sm:$0xff] %vm554, %v3409
      %3418 = vst.msk [vmem:[#allocation4 + $0x10] sm:$0xff] %vm554, %v3410
      %3419 = vst.msk [vmem:[#allocation4 + $0x18] sm:$0xff] %vm554, %v3411
      %3420 = vst.msk [vmem:[#allocation4 + $0x20] sm:$0xff] %vm554, %v3412
      %3421 = vst.msk [vmem:[#allocation4 + $0x28] sm:$0xff] %vm554, %v3413
      %3422 = vst.msk [vmem:[#allocation4 + $0x30] sm:$0xff] %vm554, %v3414
      %3423 = vst.msk [vmem:[#allocation4 + $0x38] sm:$0xff] %vm554, %v3415
      %v3424 = vld [vmem:[#allocation4] sm:$0xff]
      %v3425 = vld [vmem:[#allocation4 + $0x8] sm:$0xff]
      %v3426 = vld [vmem:[#allocation4 + $0x10] sm:$0xff]
      %v3427 = vld [vmem:[#allocation4 + $0x18] sm:$0xff]
      %v3428 = vld [vmem:[#allocation4 + $0x20] sm:$0xff]
      %v3429 = vld [vmem:[#allocation4 + $0x28] sm:$0xff]
      %v3430 = vld [vmem:[#allocation4 + $0x30] sm:$0xff]
      %v3431 = vld [vmem:[#allocation4 + $0x38] sm:$0xff]
      %v3432 = vmax.f32 %v3424, 0.0
      %v3433 = vmax.f32 %v3425, 0.0
      %v3434 = vmax.f32 %v3426, 0.0
      %v3435 = vmax.f32 %v3427, 0.0
      %v3436 = vmax.f32 %v3428, 0.0
      %v3437 = vmax.f32 %v3429, 0.0
      %v3438 = vmax.f32 %v3430, 0.0
      %v3439 = vmax.f32 %v3431, 0.0
      %s3440 = smul.u32 0, 8
      %s3441 = scalar_lea.vmem %s217, %s3440
      %3442 = vst.msk [vmem:[%s3441] sm:$0xff] %vm554, %v3432
      %3443 = vst.msk [vmem:[%s3441 + $0x8] sm:$0xff] %vm554, %v3433
      %3444 = vst.msk [vmem:[%s3441 + $0x10] sm:$0xff] %vm554, %v3434
      %3445 = vst.msk [vmem:[%s3441 + $0x18] sm:$0xff] %vm554, %v3435
      %3446 = vst.msk [vmem:[%s3441 + $0x20] sm:$0xff] %vm554, %v3436
      %3447 = vst.msk [vmem:[%s3441 + $0x28] sm:$0xff] %vm554, %v3437
      %3448 = vst.msk [vmem:[%s3441 + $0x30] sm:$0xff] %vm554, %v3438
      %3449 = vst.msk [vmem:[%s3441 + $0x38] sm:$0xff] %vm554, %v3439
      %p3450 = scmp.lt.s32.totalorder %s15, 1
      %s3451 = scalar_select %p3450, %s15, 1
      %s3452 = smul.addr %s3451, 8
      %s3453 = smul.addr %s3452, 8
      %s3454 = scalar_lea.vmem %s4, %s3453
      // Predicated region
      $region37: #{conv2x_forward.1} parent=35 // pred_check
        %p3455 = pneg %p127
      $region38: #{conv2x_forward.1} parent=35 // pred_check_branch
        %3457 = sbr.rel (%p3455) target = $region40
      $region39: #{conv2x_forward.1} parent=35 // pred_region
        _
      $region40: #{conv2x_forward.1} parent=35 // pred_fallthru
        _
    $region36: #{conv2x_forward.1} parent=5 // pred_fallthru
      _
    %p3458 = scmp.le.s32.totalorder 2, %s10
    // Predicated region
    $region41: #{conv2x_forward.1} parent=5 // pred_check
      %p3459 = pneg %p3458
    $region42: #{conv2x_forward.1} parent=5 // pred_check_branch
      %3461 = sbr.rel (%p3459) target = $region44
    $region43: #{conv2x_forward.1} parent=5 // pred_region
      %s3462 = ssub.s32 %s10, 2
      // Predicated region
      $region45: #{conv2x_forward.1} parent=43 // pred_check
        %p3463 = pneg %p133
      $region46: #{conv2x_forward.1} parent=43 // pred_check_branch
        %3465 = sbr.rel (%p3463) target = $region48
      $region47: #{conv2x_forward.1} parent=43 // pred_region
        %p3466 = scmp.lt.s32.totalorder %s16, 1
        %s3467 = scalar_select %p3466, %s16, 1
        %s3468 = smul.addr %s3467, 8
        %s3469 = smul.addr %s3468, 8
        %s3470 = scalar_lea.vmem %s4, %s3469
      $region48: #{conv2x_forward.1} parent=43 // pred_fallthru
        _
    $region44: #{conv2x_forward.1} parent=5 // pred_fallthru
      _
  $region6: #{conv2x_forward.1} parent=0 // loop_footer
    %s14 = sadd.s32 1, %s10
  $region7: #{conv2x_forward.1} parent=0 // loop_footer_branch
    %9 = sbr.rel target = $region3
  $region8: #{conv2x_forward.1} parent=0 // loop_exit
    _

</llo_original>
